<compile_context>
chip_gen: v7x
topology: tpu7x:2x2x1
jax: 0.10.0
libtpu: 0.0.40
codegen_flags: <defaults>
</compile_context>

<pallas_src>
import functools

import jax
import jax.numpy as jnp
from jax.experimental import pallas as pl
from jax.experimental.pallas import tpu as pltpu  # noqa: F401  (kept for tuning hooks)

_SUBLANE = 8  # f32 sublane tile


# ----------------------------------------------------------------------------
# Fused kernel (single invocation, no grid)
# ----------------------------------------------------------------------------
def _fused_gru_kernel(num_layers, L, N, H, *refs):
    """Fused multi-layer GRU + FC head.

    refs layout:
      x_ref      : (L*N, Din)            time-major flattened input, f32
      h0_ref     : (num_layers, N, H)    initial hidden states, f32
      per layer  : w_ih (Din, 3H) bf16,  w_hh (H, 3H) bf16,
                   b_ih (1, 3H)  f32,    b_hh (1, 3H)  f32     gate order (r|z|n)
      w_fc_ref   : (H, O) bf16
      b_fc_ref   : (1, O) f32
      out_ref    : (L*N, O) f32          [output]
    """
    x_ref, h0_ref = refs[0], refs[1]
    w_refs = refs[2:2 + 4 * num_layers]
    w_fc_ref = refs[2 + 4 * num_layers]
    b_fc_ref = refs[3 + 4 * num_layers]
    out_ref = refs[4 + 4 * num_layers]

    inp2d = x_ref[...].astype(jnp.bfloat16)                      # (L*N, Din)

    for layer in range(num_layers):
        w_ih = w_refs[4 * layer + 0][...]                        # (Din, 3H) bf16
        w_hh = w_refs[4 * layer + 1][...]                        # (H, 3H)  bf16
        b_ih = w_refs[4 * layer + 2][...]                        # (1, 3H)  f32
        b_hh = w_refs[4 * layer + 3][...]                        # (1, 3H)  f32

        # Fold b_hh[r], b_hh[z] into the hoisted input-projection bias;
        # only b_hh[n] must stay inside the r*(.) term.  Done once per layer.
        gi_bias = jnp.concatenate(
            [b_ih[:, :2 * H] + b_hh[:, :2 * H], b_ih[:, 2 * H:]], axis=-1)   # (1, 3H)
        bhn = jnp.broadcast_to(b_hh[:, 2 * H:], (N, H))          # hoisted broadcast

        # Hoisted input projection: one (L*N, Din) @ (Din, 3H) matmul per layer.
        gi_all = jnp.dot(inp2d, w_ih,
                         preferred_element_type=jnp.float32) + gi_bias       # (L*N, 3H)

        h = h0_ref[layer]                                        # (N, H) f32
        outs = []
        for t in range(L):                                       # unrolled serial recurrence
            # ONE fused recurrent matmul per timestep (all 3 gates).
            gh = jnp.dot(h.astype(jnp.bfloat16), w_hh,
                         preferred_element_type=jnp.float32)     # (N, 3H) f32
            gi_t = gi_all[t * N:(t + 1) * N, :]                  # sublane-aligned (N % 8 == 0)

            rz = jax.nn.sigmoid(gi_t[:, :2 * H] + gh[:, :2 * H])  # (N, 2H) in one pass
            r = rz[:, :H]
            z = rz[:, H:]
            n = jnp.tanh(gi_t[:, 2 * H:] + r * (gh[:, 2 * H:] + bhn))
            h = (1.0 - z) * n + z * h                            # (N, H) f32
            outs.append(h)                                       # register-carried

        inp_f32 = jnp.concatenate(outs, axis=0)                  # (L*N, H), never touches VMEM scratch
        inp2d = inp_f32.astype(jnp.bfloat16)                     # feed next layer / FC head

    # Fused FC head: one (L*N, H) @ (H, O) matmul, output written exactly once.
    out_ref[...] = jnp.dot(inp2d, w_fc_ref[...],
                           preferred_element_type=jnp.float32) + b_fc_ref[...]


# ----------------------------------------------------------------------------
# Wrapper (batch-first PyTorch convention at the boundary)
# ----------------------------------------------------------------------------
def our_gru_forward(params, x, h):
    """Equivalent of our_GRU.forward(x, h).

    x: (N, L, input_size)  batch-first
    h: (num_layers, N, H)
    returns: (N, L, output_size)
    """
    N, L, D = x.shape
    num_layers, _, H = h.shape
    O = params["w_fc"].shape[-1]

    # Pad batch to a full f32 sublane tile so all per-timestep tiles are aligned.
    Np = max(_SUBLANE, ((N + _SUBLANE - 1) // _SUBLANE) * _SUBLANE)
    if Np != N:
        x = jnp.pad(x, ((0, Np - N), (0, 0), (0, 0)))
        h = jnp.pad(h, ((0, 0), (0, Np - N), (0, 0)))

    # Single tiny transpose/reshape outside the kernel: time-major, flattened.
    x_tm = jnp.transpose(x, (1, 0, 2)).reshape(L * Np, D)

    args = [x_tm, h]
    for p in params["gru"]:
        args += [p["w_ih"], p["w_hh"], p["b_ih"], p["b_hh"]]     # already bf16/f32, no converts
    args += [params["w_fc"], params["b_fc"]]

    kernel = functools.partial(_fused_gru_kernel, num_layers, L, Np, H)
    out2d = pl.pallas_call(
        kernel,
        out_shape=jax.ShapeDtypeStruct((L * Np, O), jnp.float32),
    )(*args)

    out = jnp.transpose(out2d.reshape(L, Np, O), (1, 0, 2))      # (Np, L, O)
    return out[:N]                                               # drop padded rows


# ----------------------------------------------------------------------------
# Deterministic parameter construction (matches nn.GRU / nn.Linear init bounds).
# Weights are gate-concatenated (r|z|n) along the last dim, transposed w.r.t.
# PyTorch, and stored in bf16 ONCE here (no per-call converts in the wrapper).
# ----------------------------------------------------------------------------
def init_params(key, input_size, hidden_size, output_size, num_layers):
    H = hidden_size
    scale = 1.0 / jnp.sqrt(jnp.float32(H))                       # PyTorch uniform bound
    params = {"gru": []}
    for layer in range(num_layers):
        d_in = input_size if layer == 0 else H
        key, k1, k2, k3, k4 = jax.random.split(key, 5)
        params["gru"].append({
            "w_ih": jax.random.uniform(k1, (d_in, 3 * H), jnp.float32,
                                       -scale, scale).astype(jnp.bfloat16),
            "w_hh": jax.random.uniform(k2, (H, 3 * H), jnp.float32,
                                       -scale, scale).astype(jnp.bfloat16),
            "b_ih": jax.random.uniform(k3, (1, 3 * H), jnp.float32, -scale, scale),
            "b_hh": jax.random.uniform(k4, (1, 3 * H), jnp.float32, -scale, scale),
        })
    key, k1, k2 = jax.random.split(key, 3)
    params["w_fc"] = jax.random.uniform(k1, (H, output_size), jnp.float32,
                                        -scale, scale).astype(jnp.bfloat16)
    params["b_fc"] = jax.random.uniform(k2, (1, output_size), jnp.float32, -scale, scale)
    return params


# ----------------------------------------------------------------------------
# Pure-JAX reference (same math / same bf16 operand casts) for correctness.
# TODO(synk): if exact torch.nn.GRU f32 parity is required, keep matmul
#   operands in f32 here and in the kernel and re-validate tolerances.
# ----------------------------------------------------------------------------
def reference_forward(params, x, h):
    N, L, _ = x.shape
    H = h.shape[-1]
    seq = x
    for layer, p in enumerate(params["gru"]):
        w_ih, w_hh = p["w_ih"], p["w_hh"]                        # bf16, gate-concat
        b_ih, b_hh = p["b_ih"], p["b_hh"]                        # f32 (1, 3H)
        h_t = h[layer]
        outs = []
        for t in range(L):
            x_t = seq[:, t, :].astype(jnp.bfloat16)
            gi = jnp.dot(x_t, w_ih, preferred_element_type=jnp.float32) + b_ih
            gh = jnp.dot(h_t.astype(jnp.bfloat16), w_hh,
                         preferred_element_type=jnp.float32) + b_hh
            r = jax.nn.sigmoid(gi[:, :H] + gh[:, :H])
            z = jax.nn.sigmoid(gi[:, H:2 * H] + gh[:, H:2 * H])
            n = jnp.tanh(gi[:, 2 * H:] + r * gh[:, 2 * H:])
            h_t = (1.0 - z) * n + z * h_t
            outs.append(h_t)
        seq = jnp.stack(outs, axis=1)                            # (N, L, H)
    flat = seq.reshape(N * L, H).astype(jnp.bfloat16)
    out = jnp.dot(flat, params["w_fc"],
                  preferred_element_type=jnp.float32) + params["b_fc"]
    return out.reshape(N, L, -1)


if __name__ == "__main__":
    # input (RF, T1, T2, TE, TR) => input_size = 5
    batch, seq_len = 2, 8
    input_size, hidden_size, output_size, num_layers = 5, 32, 1, 3

    key = jax.random.PRNGKey(0)
    key, kx = jax.random.split(key)
    params = init_params(key, input_size, hidden_size, output_size, num_layers)

    x = jax.random.normal(kx, (batch, seq_len, input_size), jnp.float32)
    # init_hidden_set: zeros of shape (num_layers, batch, hidden)
    h0 = jnp.zeros((num_layers, batch, hidden_size), jnp.float32)

    out = our_gru_forward(params, x, h0)
    out = jax.block_until_ready(out)

    assert out.shape == (batch, seq_len, output_size), out.shape

    ref = reference_forward(params, x, h0)
    max_err = float(jnp.max(jnp.abs(out - ref)))
    assert jnp.allclose(out, ref, atol=2e-3, rtol=2e-3), f"max abs err = {max_err}"

    print("KERNEL_OK")
</pallas_src>

<mosaic_0001>
module attributes {stable_mosaic.version = 11 : i64} {
  func.func @_fused_gru_kernel(%arg0: memref<64x5xf32, #tpu.memory_space<vmem>>, %arg1: memref<3x8x32xf32, #tpu.memory_space<vmem>>, %arg2: memref<5x96xbf16, #tpu.memory_space<vmem>>, %arg3: memref<32x96xbf16, #tpu.memory_space<vmem>>, %arg4: memref<1x96xf32, #tpu.memory_space<vmem>>, %arg5: memref<1x96xf32, #tpu.memory_space<vmem>>, %arg6: memref<32x96xbf16, #tpu.memory_space<vmem>>, %arg7: memref<32x96xbf16, #tpu.memory_space<vmem>>, %arg8: memref<1x96xf32, #tpu.memory_space<vmem>>, %arg9: memref<1x96xf32, #tpu.memory_space<vmem>>, %arg10: memref<32x96xbf16, #tpu.memory_space<vmem>>, %arg11: memref<32x96xbf16, #tpu.memory_space<vmem>>, %arg12: memref<1x96xf32, #tpu.memory_space<vmem>>, %arg13: memref<1x96xf32, #tpu.memory_space<vmem>>, %arg14: memref<32x1xbf16, #tpu.memory_space<vmem>>, %arg15: memref<1x1xf32, #tpu.memory_space<vmem>>, %arg16: memref<64x1xf32, #tpu.memory_space<vmem>>) attributes {dimension_semantics = [], scalar_prefetch = 0 : i64, scratch_operands = 0 : i64, tpu.core_type = #tpu.core_type<tc>} {
    %c0 = arith.constant 0 : index
    %c0_0 = arith.constant 0 : index
    %0 = vector.load %arg0[%c0, %c0_0] : memref<64x5xf32, #tpu.memory_space<vmem>>, vector<64x5xf32>
    %1 = arith.truncf %0 : vector<64x5xf32> to vector<64x5xbf16>
    %c0_1 = arith.constant 0 : index
    %c0_2 = arith.constant 0 : index
    %2 = vector.load %arg2[%c0_1, %c0_2] : memref<5x96xbf16, #tpu.memory_space<vmem>>, vector<5x96xbf16>
    %c0_3 = arith.constant 0 : index
    %c0_4 = arith.constant 0 : index
    %3 = vector.load %arg3[%c0_3, %c0_4] : memref<32x96xbf16, #tpu.memory_space<vmem>>, vector<32x96xbf16>
    %c0_5 = arith.constant 0 : index
    %c0_6 = arith.constant 0 : index
    %4 = vector.load %arg4[%c0_5, %c0_6] : memref<1x96xf32, #tpu.memory_space<vmem>>, vector<1x96xf32>
    %c0_7 = arith.constant 0 : index
    %c0_8 = arith.constant 0 : index
    %5 = vector.load %arg5[%c0_7, %c0_8] : memref<1x96xf32, #tpu.memory_space<vmem>>, vector<1x96xf32>
    %6 = vector.extract_strided_slice %4 {offsets = [0, 0], sizes = [1, 64], strides = [1, 1]} : vector<1x96xf32> to vector<1x64xf32>
    %7 = vector.extract_strided_slice %5 {offsets = [0, 0], sizes = [1, 64], strides = [1, 1]} : vector<1x96xf32> to vector<1x64xf32>
    %8 = arith.addf %6, %7 : vector<1x64xf32>
    %9 = vector.extract_strided_slice %4 {offsets = [0, 64], sizes = [1, 32], strides = [1, 1]} : vector<1x96xf32> to vector<1x32xf32>
    %10 = tpu.concatenate %8, %9 in 1 : vector<1x64xf32>, vector<1x32xf32> -> vector<1x96xf32>
    %11 = vector.extract_strided_slice %5 {offsets = [0, 64], sizes = [1, 32], strides = [1, 1]} : vector<1x96xf32> to vector<1x32xf32>
    %12 = vector.shape_cast %11 : vector<1x32xf32> to vector<1x32xf32>
    %13 = vector.broadcast %12 : vector<1x32xf32> to vector<8x32xf32>
    %cst = arith.constant dense<0.000000e+00> : vector<64x96xf32>
    %14 = tpu.matmul %1, %2, %cst {dimension_numbers = #tpu.dot_dimension_numbers<[1], [0], [0], [1], [0, 0, 1, 1], [], []>} : vector<64x5xbf16>, vector<5x96xbf16>, vector<64x96xf32> -> vector<64x96xf32>
    %15 = vector.broadcast %10 : vector<1x96xf32> to vector<64x96xf32>
    %16 = arith.addf %14, %15 : vector<64x96xf32>
    %c0_9 = arith.constant 0 : index
    %c0_10 = arith.constant 0 : index
    %c0_11 = arith.constant 0 : index
    %17 = vector.load %arg1[%c0_9, %c0_10, %c0_11] : memref<3x8x32xf32, #tpu.memory_space<vmem>>, vector<1x8x32xf32>
    %18 = vector.shape_cast %17 : vector<1x8x32xf32> to vector<8x32xf32>
    %19 = arith.truncf %18 : vector<8x32xf32> to vector<8x32xbf16>
    %cst_12 = arith.constant dense<0.000000e+00> : vector<8x96xf32>
    %20 = tpu.matmul %19, %3, %cst_12 {dimension_numbers = #tpu.dot_dimension_numbers<[1], [0], [0], [1], [0, 0, 1, 1], [], []>} : vector<8x32xbf16>, vector<32x96xbf16>, vector<8x96xf32> -> vector<8x96xf32>
    %21 = vector.extract_strided_slice %16 {offsets = [0, 0], sizes = [8, 96], strides = [1, 1]} : vector<64x96xf32> to vector<8x96xf32>
    %22 = vector.extract_strided_slice %21 {offsets = [0, 0], sizes = [8, 64], strides = [1, 1]} : vector<8x96xf32> to vector<8x64xf32>
    %23 = vector.extract_strided_slice %20 {offsets = [0, 0], sizes = [8, 64], strides = [1, 1]} : vector<8x96xf32> to vector<8x64xf32>
    %24 = arith.addf %22, %23 : vector<8x64xf32>
    %25 = arith.negf %24 : vector<8x64xf32>
    %26 = math.exp %25 : vector<8x64xf32>
    %cst_13 = arith.constant 1.000000e+00 : f32
    %27 = vector.broadcast %cst_13 : f32 to vector<8x64xf32>
    %28 = arith.addf %27, %26 : vector<8x64xf32>
    %29 = arith.divf %27, %28 : vector<8x64xf32>
    %30 = vector.extract_strided_slice %29 {offsets = [0, 0], sizes = [8, 32], strides = [1, 1]} : vector<8x64xf32> to vector<8x32xf32>
    %31 = vector.extract_strided_slice %29 {offsets = [0, 32], sizes = [8, 32], strides = [1, 1]} : vector<8x64xf32> to vector<8x32xf32>
    %32 = vector.extract_strided_slice %21 {offsets = [0, 64], sizes = [8, 32], strides = [1, 1]} : vector<8x96xf32> to vector<8x32xf32>
    %33 = vector.extract_strided_slice %20 {offsets = [0, 64], sizes = [8, 32], strides = [1, 1]} : vector<8x96xf32> to vector<8x32xf32>
    %34 = arith.addf %33, %13 : vector<8x32xf32>
    %35 = arith.mulf %30, %34 : vector<8x32xf32>
    %36 = arith.addf %32, %35 : vector<8x32xf32>
    %37 = math.tanh %36 : vector<8x32xf32>
    %cst_14 = arith.constant 1.000000e+00 : f32
    %38 = vector.broadcast %cst_14 : f32 to vector<8x32xf32>
    %39 = arith.subf %38, %31 : vector<8x32xf32>
    %40 = arith.mulf %39, %37 : vector<8x32xf32>
    %41 = arith.mulf %31, %18 : vector<8x32xf32>
    %42 = arith.addf %40, %41 : vector<8x32xf32>
    %43 = arith.truncf %42 : vector<8x32xf32> to vector<8x32xbf16>
    %cst_15 = arith.constant dense<0.000000e+00> : vector<8x96xf32>
    %44 = tpu.matmul %43, %3, %cst_15 {dimension_numbers = #tpu.dot_dimension_numbers<[1], [0], [0], [1], [0, 0, 1, 1], [], []>} : vector<8x32xbf16>, vector<32x96xbf16>, vector<8x96xf32> -> vector<8x96xf32>
    %45 = vector.extract_strided_slice %16 {offsets = [8, 0], sizes = [8, 96], strides = [1, 1]} : vector<64x96xf32> to vector<8x96xf32>
    %46 = vector.extract_strided_slice %45 {offsets = [0, 0], sizes = [8, 64], strides = [1, 1]} : vector<8x96xf32> to vector<8x64xf32>
    %47 = vector.extract_strided_slice %44 {offsets = [0, 0], sizes = [8, 64], strides = [1, 1]} : vector<8x96xf32> to vector<8x64xf32>
    %48 = arith.addf %46, %47 : vector<8x64xf32>
    %49 = arith.negf %48 : vector<8x64xf32>
    %50 = math.exp %49 : vector<8x64xf32>
    %cst_16 = arith.constant 1.000000e+00 : f32
    %51 = vector.broadcast %cst_16 : f32 to vector<8x64xf32>
    %52 = arith.addf %51, %50 : vector<8x64xf32>
    %53 = arith.divf %51, %52 : vector<8x64xf32>
    %54 = vector.extract_strided_slice %53 {offsets = [0, 0], sizes = [8, 32], strides = [1, 1]} : vector<8x64xf32> to vector<8x32xf32>
    %55 = vector.extract_strided_slice %53 {offsets = [0, 32], sizes = [8, 32], strides = [1, 1]} : vector<8x64xf32> to vector<8x32xf32>
    %56 = vector.extract_strided_slice %45 {offsets = [0, 64], sizes = [8, 32], strides = [1, 1]} : vector<8x96xf32> to vector<8x32xf32>
    %57 = vector.extract_strided_slice %44 {offsets = [0, 64], sizes = [8, 32], strides = [1, 1]} : vector<8x96xf32> to vector<8x32xf32>
    %58 = arith.addf %57, %13 : vector<8x32xf32>
    %59 = arith.mulf %54, %58 : vector<8x32xf32>
    %60 = arith.addf %56, %59 : vector<8x32xf32>
    %61 = math.tanh %60 : vector<8x32xf32>
    %cst_17 = arith.constant 1.000000e+00 : f32
    %62 = vector.broadcast %cst_17 : f32 to vector<8x32xf32>
    %63 = arith.subf %62, %55 : vector<8x32xf32>
    %64 = arith.mulf %63, %61 : vector<8x32xf32>
    %65 = arith.mulf %55, %42 : vector<8x32xf32>
    %66 = arith.addf %64, %65 : vector<8x32xf32>
    %67 = arith.truncf %66 : vector<8x32xf32> to vector<8x32xbf16>
    %cst_18 = arith.constant dense<0.000000e+00> : vector<8x96xf32>
    %68 = tpu.matmul %67, %3, %cst_18 {dimension_numbers = #tpu.dot_dimension_numbers<[1], [0], [0], [1], [0, 0, 1, 1], [], []>} : vector<8x32xbf16>, vector<32x96xbf16>, vector<8x96xf32> -> vector<8x96xf32>
    %69 = vector.extract_strided_slice %16 {offsets = [16, 0], sizes = [8, 96], strides = [1, 1]} : vector<64x96xf32> to vector<8x96xf32>
    %70 = vector.extract_strided_slice %69 {offsets = [0, 0], sizes = [8, 64], strides = [1, 1]} : vector<8x96xf32> to vector<8x64xf32>
    %71 = vector.extract_strided_slice %68 {offsets = [0, 0], sizes = [8, 64], strides = [1, 1]} : vector<8x96xf32> to vector<8x64xf32>
    %72 = arith.addf %70, %71 : vector<8x64xf32>
    %73 = arith.negf %72 : vector<8x64xf32>
    %74 = math.exp %73 : vector<8x64xf32>
    %cst_19 = arith.constant 1.000000e+00 : f32
    %75 = vector.broadcast %cst_19 : f32 to vector<8x64xf32>
    %76 = arith.addf %75, %74 : vector<8x64xf32>
    %77 = arith.divf %75, %76 : vector<8x64xf32>
    %78 = vector.extract_strided_slice %77 {offsets = [0, 0], sizes = [8, 32], strides = [1, 1]} : vector<8x64xf32> to vector<8x32xf32>
    %79 = vector.extract_strided_slice %77 {offsets = [0, 32], sizes = [8, 32], strides = [1, 1]} : vector<8x64xf32> to vector<8x32xf32>
    %80 = vector.extract_strided_slice %69 {offsets = [0, 64], sizes = [8, 32], strides = [1, 1]} : vector<8x96xf32> to vector<8x32xf32>
    %81 = vector.extract_strided_slice %68 {offsets = [0, 64], sizes = [8, 32], strides = [1, 1]} : vector<8x96xf32> to vector<8x32xf32>
    %82 = arith.addf %81, %13 : vector<8x32xf32>
    %83 = arith.mulf %78, %82 : vector<8x32xf32>
    %84 = arith.addf %80, %83 : vector<8x32xf32>
    %85 = math.tanh %84 : vector<8x32xf32>
    %cst_20 = arith.constant 1.000000e+00 : f32
    %86 = vector.broadcast %cst_20 : f32 to vector<8x32xf32>
    %87 = arith.subf %86, %79 : vector<8x32xf32>
    %88 = arith.mulf %87, %85 : vector<8x32xf32>
    %89 = arith.mulf %79, %66 : vector<8x32xf32>
    %90 = arith.addf %88, %89 : vector<8x32xf32>
    %91 = arith.truncf %90 : vector<8x32xf32> to vector<8x32xbf16>
    %cst_21 = arith.constant dense<0.000000e+00> : vector<8x96xf32>
    %92 = tpu.matmul %91, %3, %cst_21 {dimension_numbers = #tpu.dot_dimension_numbers<[1], [0], [0], [1], [0, 0, 1, 1], [], []>} : vector<8x32xbf16>, vector<32x96xbf16>, vector<8x96xf32> -> vector<8x96xf32>
    %93 = vector.extract_strided_slice %16 {offsets = [24, 0], sizes = [8, 96], strides = [1, 1]} : vector<64x96xf32> to vector<8x96xf32>
    %94 = vector.extract_strided_slice %93 {offsets = [0, 0], sizes = [8, 64], strides = [1, 1]} : vector<8x96xf32> to vector<8x64xf32>
    %95 = vector.extract_strided_slice %92 {offsets = [0, 0], sizes = [8, 64], strides = [1, 1]} : vector<8x96xf32> to vector<8x64xf32>
    %96 = arith.addf %94, %95 : vector<8x64xf32>
    %97 = arith.negf %96 : vector<8x64xf32>
    %98 = math.exp %97 : vector<8x64xf32>
    %cst_22 = arith.constant 1.000000e+00 : f32
    %99 = vector.broadcast %cst_22 : f32 to vector<8x64xf32>
    %100 = arith.addf %99, %98 : vector<8x64xf32>
    %101 = arith.divf %99, %100 : vector<8x64xf32>
    %102 = vector.extract_strided_slice %101 {offsets = [0, 0], sizes = [8, 32], strides = [1, 1]} : vector<8x64xf32> to vector<8x32xf32>
    %103 = vector.extract_strided_slice %101 {offsets = [0, 32], sizes = [8, 32], strides = [1, 1]} : vector<8x64xf32> to vector<8x32xf32>
    %104 = vector.extract_strided_slice %93 {offsets = [0, 64], sizes = [8, 32], strides = [1, 1]} : vector<8x96xf32> to vector<8x32xf32>
    %105 = vector.extract_strided_slice %92 {offsets = [0, 64], sizes = [8, 32], strides = [1, 1]} : vector<8x96xf32> to vector<8x32xf32>
    %106 = arith.addf %105, %13 : vector<8x32xf32>
    %107 = arith.mulf %102, %106 : vector<8x32xf32>
    %108 = arith.addf %104, %107 : vector<8x32xf32>
    %109 = math.tanh %108 : vector<8x32xf32>
    %cst_23 = arith.constant 1.000000e+00 : f32
    %110 = vector.broadcast %cst_23 : f32 to vector<8x32xf32>
    %111 = arith.subf %110, %103 : vector<8x32xf32>
    %112 = arith.mulf %111, %109 : vector<8x32xf32>
    %113 = arith.mulf %103, %90 : vector<8x32xf32>
    %114 = arith.addf %112, %113 : vector<8x32xf32>
    %115 = arith.truncf %114 : vector<8x32xf32> to vector<8x32xbf16>
    %cst_24 = arith.constant dense<0.000000e+00> : vector<8x96xf32>
    %116 = tpu.matmul %115, %3, %cst_24 {dimension_numbers = #tpu.dot_dimension_numbers<[1], [0], [0], [1], [0, 0, 1, 1], [], []>} : vector<8x32xbf16>, vector<32x96xbf16>, vector<8x96xf32> -> vector<8x96xf32>
    %117 = vector.extract_strided_slice %16 {offsets = [32, 0], sizes = [8, 96], strides = [1, 1]} : vector<64x96xf32> to vector<8x96xf32>
    %118 = vector.extract_strided_slice %117 {offsets = [0, 0], sizes = [8, 64], strides = [1, 1]} : vector<8x96xf32> to vector<8x64xf32>
    %119 = vector.extract_strided_slice %116 {offsets = [0, 0], sizes = [8, 64], strides = [1, 1]} : vector<8x96xf32> to vector<8x64xf32>
    %120 = arith.addf %118, %119 : vector<8x64xf32>
    %121 = arith.negf %120 : vector<8x64xf32>
    %122 = math.exp %121 : vector<8x64xf32>
    %cst_25 = arith.constant 1.000000e+00 : f32
    %123 = vector.broadcast %cst_25 : f32 to vector<8x64xf32>
    %124 = arith.addf %123, %122 : vector<8x64xf32>
    %125 = arith.divf %123, %124 : vector<8x64xf32>
    %126 = vector.extract_strided_slice %125 {offsets = [0, 0], sizes = [8, 32], strides = [1, 1]} : vector<8x64xf32> to vector<8x32xf32>
    %127 = vector.extract_strided_slice %125 {offsets = [0, 32], sizes = [8, 32], strides = [1, 1]} : vector<8x64xf32> to vector<8x32xf32>
    %128 = vector.extract_strided_slice %117 {offsets = [0, 64], sizes = [8, 32], strides = [1, 1]} : vector<8x96xf32> to vector<8x32xf32>
    %129 = vector.extract_strided_slice %116 {offsets = [0, 64], sizes = [8, 32], strides = [1, 1]} : vector<8x96xf32> to vector<8x32xf32>
    %130 = arith.addf %129, %13 : vector<8x32xf32>
    %131 = arith.mulf %126, %130 : vector<8x32xf32>
    %132 = arith.addf %128, %131 : vector<8x32xf32>
    %133 = math.tanh %132 : vector<8x32xf32>
    %cst_26 = arith.constant 1.000000e+00 : f32
    %134 = vector.broadcast %cst_26 : f32 to vector<8x32xf32>
    %135 = arith.subf %134, %127 : vector<8x32xf32>
    %136 = arith.mulf %135, %133 : vector<8x32xf32>
    %137 = arith.mulf %127, %114 : vector<8x32xf32>
    %138 = arith.addf %136, %137 : vector<8x32xf32>
    %139 = arith.truncf %138 : vector<8x32xf32> to vector<8x32xbf16>
    %cst_27 = arith.constant dense<0.000000e+00> : vector<8x96xf32>
    %140 = tpu.matmul %139, %3, %cst_27 {dimension_numbers = #tpu.dot_dimension_numbers<[1], [0], [0], [1], [0, 0, 1, 1], [], []>} : vector<8x32xbf16>, vector<32x96xbf16>, vector<8x96xf32> -> vector<8x96xf32>
    %141 = vector.extract_strided_slice %16 {offsets = [40, 0], sizes = [8, 96], strides = [1, 1]} : vector<64x96xf32> to vector<8x96xf32>
    %142 = vector.extract_strided_slice %141 {offsets = [0, 0], sizes = [8, 64], strides = [1, 1]} : vector<8x96xf32> to vector<8x64xf32>
    %143 = vector.extract_strided_slice %140 {offsets = [0, 0], sizes = [8, 64], strides = [1, 1]} : vector<8x96xf32> to vector<8x64xf32>
    %144 = arith.addf %142, %143 : vector<8x64xf32>
    %145 = arith.negf %144 : vector<8x64xf32>
    %146 = math.exp %145 : vector<8x64xf32>
    %cst_28 = arith.constant 1.000000e+00 : f32
    %147 = vector.broadcast %cst_28 : f32 to vector<8x64xf32>
    %148 = arith.addf %147, %146 : vector<8x64xf32>
    %149 = arith.divf %147, %148 : vector<8x64xf32>
    %150 = vector.extract_strided_slice %149 {offsets = [0, 0], sizes = [8, 32], strides = [1, 1]} : vector<8x64xf32> to vector<8x32xf32>
    %151 = vector.extract_strided_slice %149 {offsets = [0, 32], sizes = [8, 32], strides = [1, 1]} : vector<8x64xf32> to vector<8x32xf32>
    %152 = vector.extract_strided_slice %141 {offsets = [0, 64], sizes = [8, 32], strides = [1, 1]} : vector<8x96xf32> to vector<8x32xf32>
    %153 = vector.extract_strided_slice %140 {offsets = [0, 64], sizes = [8, 32], strides = [1, 1]} : vector<8x96xf32> to vector<8x32xf32>
    %154 = arith.addf %153, %13 : vector<8x32xf32>
    %155 = arith.mulf %150, %154 : vector<8x32xf32>
    %156 = arith.addf %152, %155 : vector<8x32xf32>
    %157 = math.tanh %156 : vector<8x32xf32>
    %cst_29 = arith.constant 1.000000e+00 : f32
    %158 = vector.broadcast %cst_29 : f32 to vector<8x32xf32>
    %159 = arith.subf %158, %151 : vector<8x32xf32>
    %160 = arith.mulf %159, %157 : vector<8x32xf32>
    %161 = arith.mulf %151, %138 : vector<8x32xf32>
    %162 = arith.addf %160, %161 : vector<8x32xf32>
    %163 = arith.truncf %162 : vector<8x32xf32> to vector<8x32xbf16>
    %cst_30 = arith.constant dense<0.000000e+00> : vector<8x96xf32>
    %164 = tpu.matmul %163, %3, %cst_30 {dimension_numbers = #tpu.dot_dimension_numbers<[1], [0], [0], [1], [0, 0, 1, 1], [], []>} : vector<8x32xbf16>, vector<32x96xbf16>, vector<8x96xf32> -> vector<8x96xf32>
    %165 = vector.extract_strided_slice %16 {offsets = [48, 0], sizes = [8, 96], strides = [1, 1]} : vector<64x96xf32> to vector<8x96xf32>
    %166 = vector.extract_strided_slice %165 {offsets = [0, 0], sizes = [8, 64], strides = [1, 1]} : vector<8x96xf32> to vector<8x64xf32>
    %167 = vector.extract_strided_slice %164 {offsets = [0, 0], sizes = [8, 64], strides = [1, 1]} : vector<8x96xf32> to vector<8x64xf32>
    %168 = arith.addf %166, %167 : vector<8x64xf32>
    %169 = arith.negf %168 : vector<8x64xf32>
    %170 = math.exp %169 : vector<8x64xf32>
    %cst_31 = arith.constant 1.000000e+00 : f32
    %171 = vector.broadcast %cst_31 : f32 to vector<8x64xf32>
    %172 = arith.addf %171, %170 : vector<8x64xf32>
    %173 = arith.divf %171, %172 : vector<8x64xf32>
    %174 = vector.extract_strided_slice %173 {offsets = [0, 0], sizes = [8, 32], strides = [1, 1]} : vector<8x64xf32> to vector<8x32xf32>
    %175 = vector.extract_strided_slice %173 {offsets = [0, 32], sizes = [8, 32], strides = [1, 1]} : vector<8x64xf32> to vector<8x32xf32>
    %176 = vector.extract_strided_slice %165 {offsets = [0, 64], sizes = [8, 32], strides = [1, 1]} : vector<8x96xf32> to vector<8x32xf32>
    %177 = vector.extract_strided_slice %164 {offsets = [0, 64], sizes = [8, 32], strides = [1, 1]} : vector<8x96xf32> to vector<8x32xf32>
    %178 = arith.addf %177, %13 : vector<8x32xf32>
    %179 = arith.mulf %174, %178 : vector<8x32xf32>
    %180 = arith.addf %176, %179 : vector<8x32xf32>
    %181 = math.tanh %180 : vector<8x32xf32>
    %cst_32 = arith.constant 1.000000e+00 : f32
    %182 = vector.broadcast %cst_32 : f32 to vector<8x32xf32>
    %183 = arith.subf %182, %175 : vector<8x32xf32>
    %184 = arith.mulf %183, %181 : vector<8x32xf32>
    %185 = arith.mulf %175, %162 : vector<8x32xf32>
    %186 = arith.addf %184, %185 : vector<8x32xf32>
    %187 = arith.truncf %186 : vector<8x32xf32> to vector<8x32xbf16>
    %cst_33 = arith.constant dense<0.000000e+00> : vector<8x96xf32>
    %188 = tpu.matmul %187, %3, %cst_33 {dimension_numbers = #tpu.dot_dimension_numbers<[1], [0], [0], [1], [0, 0, 1, 1], [], []>} : vector<8x32xbf16>, vector<32x96xbf16>, vector<8x96xf32> -> vector<8x96xf32>
    %189 = vector.extract_strided_slice %16 {offsets = [56, 0], sizes = [8, 96], strides = [1, 1]} : vector<64x96xf32> to vector<8x96xf32>
    %190 = vector.extract_strided_slice %189 {offsets = [0, 0], sizes = [8, 64], strides = [1, 1]} : vector<8x96xf32> to vector<8x64xf32>
    %191 = vector.extract_strided_slice %188 {offsets = [0, 0], sizes = [8, 64], strides = [1, 1]} : vector<8x96xf32> to vector<8x64xf32>
    %192 = arith.addf %190, %191 : vector<8x64xf32>
    %193 = arith.negf %192 : vector<8x64xf32>
    %194 = math.exp %193 : vector<8x64xf32>
    %cst_34 = arith.constant 1.000000e+00 : f32
    %195 = vector.broadcast %cst_34 : f32 to vector<8x64xf32>
    %196 = arith.addf %195, %194 : vector<8x64xf32>
    %197 = arith.divf %195, %196 : vector<8x64xf32>
    %198 = vector.extract_strided_slice %197 {offsets = [0, 0], sizes = [8, 32], strides = [1, 1]} : vector<8x64xf32> to vector<8x32xf32>
    %199 = vector.extract_strided_slice %197 {offsets = [0, 32], sizes = [8, 32], strides = [1, 1]} : vector<8x64xf32> to vector<8x32xf32>
    %200 = vector.extract_strided_slice %189 {offsets = [0, 64], sizes = [8, 32], strides = [1, 1]} : vector<8x96xf32> to vector<8x32xf32>
    %201 = vector.extract_strided_slice %188 {offsets = [0, 64], sizes = [8, 32], strides = [1, 1]} : vector<8x96xf32> to vector<8x32xf32>
    %202 = arith.addf %201, %13 : vector<8x32xf32>
    %203 = arith.mulf %198, %202 : vector<8x32xf32>
    %204 = arith.addf %200, %203 : vector<8x32xf32>
    %205 = math.tanh %204 : vector<8x32xf32>
    %cst_35 = arith.constant 1.000000e+00 : f32
    %206 = vector.broadcast %cst_35 : f32 to vector<8x32xf32>
    %207 = arith.subf %206, %199 : vector<8x32xf32>
    %208 = arith.mulf %207, %205 : vector<8x32xf32>
    %209 = arith.mulf %199, %186 : vector<8x32xf32>
    %210 = arith.addf %208, %209 : vector<8x32xf32>
    %211 = tpu.concatenate %42, %66, %90, %114, %138, %162, %186, %210 in 0 : vector<8x32xf32>, vector<8x32xf32>, vector<8x32xf32>, vector<8x32xf32>, vector<8x32xf32>, vector<8x32xf32>, vector<8x32xf32>, vector<8x32xf32> -> vector<64x32xf32>
    %212 = arith.truncf %211 : vector<64x32xf32> to vector<64x32xbf16>
    %c0_36 = arith.constant 0 : index
    %c0_37 = arith.constant 0 : index
    %213 = vector.load %arg6[%c0_36, %c0_37] : memref<32x96xbf16, #tpu.memory_space<vmem>>, vector<32x96xbf16>
    %c0_38 = arith.constant 0 : index
    %c0_39 = arith.constant 0 : index
    %214 = vector.load %arg7[%c0_38, %c0_39] : memref<32x96xbf16, #tpu.memory_space<vmem>>, vector<32x96xbf16>
    %c0_40 = arith.constant 0 : index
    %c0_41 = arith.constant 0 : index
    %215 = vector.load %arg8[%c0_40, %c0_41] : memref<1x96xf32, #tpu.memory_space<vmem>>, vector<1x96xf32>
    %c0_42 = arith.constant 0 : index
    %c0_43 = arith.constant 0 : index
    %216 = vector.load %arg9[%c0_42, %c0_43] : memref<1x96xf32, #tpu.memory_space<vmem>>, vector<1x96xf32>
    %217 = vector.extract_strided_slice %215 {offsets = [0, 0], sizes = [1, 64], strides = [1, 1]} : vector<1x96xf32> to vector<1x64xf32>
    %218 = vector.extract_strided_slice %216 {offsets = [0, 0], sizes = [1, 64], strides = [1, 1]} : vector<1x96xf32> to vector<1x64xf32>
    %219 = arith.addf %217, %218 : vector<1x64xf32>
    %220 = vector.extract_strided_slice %215 {offsets = [0, 64], sizes = [1, 32], strides = [1, 1]} : vector<1x96xf32> to vector<1x32xf32>
    %221 = tpu.concatenate %219, %220 in 1 : vector<1x64xf32>, vector<1x32xf32> -> vector<1x96xf32>
    %222 = vector.extract_strided_slice %216 {offsets = [0, 64], sizes = [1, 32], strides = [1, 1]} : vector<1x96xf32> to vector<1x32xf32>
    %223 = vector.shape_cast %222 : vector<1x32xf32> to vector<1x32xf32>
    %224 = vector.broadcast %223 : vector<1x32xf32> to vector<8x32xf32>
    %cst_44 = arith.constant dense<0.000000e+00> : vector<64x96xf32>
    %225 = tpu.matmul %212, %213, %cst_44 {dimension_numbers = #tpu.dot_dimension_numbers<[1], [0], [0], [1], [0, 0, 1, 1], [], []>} : vector<64x32xbf16>, vector<32x96xbf16>, vector<64x96xf32> -> vector<64x96xf32>
    %226 = vector.broadcast %221 : vector<1x96xf32> to vector<64x96xf32>
    %227 = arith.addf %225, %226 : vector<64x96xf32>
    %c1 = arith.constant 1 : index
    %c0_45 = arith.constant 0 : index
    %c0_46 = arith.constant 0 : index
    %228 = vector.load %arg1[%c1, %c0_45, %c0_46] : memref<3x8x32xf32, #tpu.memory_space<vmem>>, vector<1x8x32xf32>
    %229 = vector.shape_cast %228 : vector<1x8x32xf32> to vector<8x32xf32>
    %230 = arith.truncf %229 : vector<8x32xf32> to vector<8x32xbf16>
    %cst_47 = arith.constant dense<0.000000e+00> : vector<8x96xf32>
    %231 = tpu.matmul %230, %214, %cst_47 {dimension_numbers = #tpu.dot_dimension_numbers<[1], [0], [0], [1], [0, 0, 1, 1], [], []>} : vector<8x32xbf16>, vector<32x96xbf16>, vector<8x96xf32> -> vector<8x96xf32>
    %232 = vector.extract_strided_slice %227 {offsets = [0, 0], sizes = [8, 96], strides = [1, 1]} : vector<64x96xf32> to vector<8x96xf32>
    %233 = vector.extract_strided_slice %232 {offsets = [0, 0], sizes = [8, 64], strides = [1, 1]} : vector<8x96xf32> to vector<8x64xf32>
    %234 = vector.extract_strided_slice %231 {offsets = [0, 0], sizes = [8, 64], strides = [1, 1]} : vector<8x96xf32> to vector<8x64xf32>
    %235 = arith.addf %233, %234 : vector<8x64xf32>
    %236 = arith.negf %235 : vector<8x64xf32>
    %237 = math.exp %236 : vector<8x64xf32>
    %cst_48 = arith.constant 1.000000e+00 : f32
    %238 = vector.broadcast %cst_48 : f32 to vector<8x64xf32>
    %239 = arith.addf %238, %237 : vector<8x64xf32>
    %240 = arith.divf %238, %239 : vector<8x64xf32>
    %241 = vector.extract_strided_slice %240 {offsets = [0, 0], sizes = [8, 32], strides = [1, 1]} : vector<8x64xf32> to vector<8x32xf32>
    %242 = vector.extract_strided_slice %240 {offsets = [0, 32], sizes = [8, 32], strides = [1, 1]} : vector<8x64xf32> to vector<8x32xf32>
    %243 = vector.extract_strided_slice %232 {offsets = [0, 64], sizes = [8, 32], strides = [1, 1]} : vector<8x96xf32> to vector<8x32xf32>
    %244 = vector.extract_strided_slice %231 {offsets = [0, 64], sizes = [8, 32], strides = [1, 1]} : vector<8x96xf32> to vector<8x32xf32>
    %245 = arith.addf %244, %224 : vector<8x32xf32>
    %246 = arith.mulf %241, %245 : vector<8x32xf32>
    %247 = arith.addf %243, %246 : vector<8x32xf32>
    %248 = math.tanh %247 : vector<8x32xf32>
    %cst_49 = arith.constant 1.000000e+00 : f32
    %249 = vector.broadcast %cst_49 : f32 to vector<8x32xf32>
    %250 = arith.subf %249, %242 : vector<8x32xf32>
    %251 = arith.mulf %250, %248 : vector<8x32xf32>
    %252 = arith.mulf %242, %229 : vector<8x32xf32>
    %253 = arith.addf %251, %252 : vector<8x32xf32>
    %254 = arith.truncf %253 : vector<8x32xf32> to vector<8x32xbf16>
    %cst_50 = arith.constant dense<0.000000e+00> : vector<8x96xf32>
    %255 = tpu.matmul %254, %214, %cst_50 {dimension_numbers = #tpu.dot_dimension_numbers<[1], [0], [0], [1], [0, 0, 1, 1], [], []>} : vector<8x32xbf16>, vector<32x96xbf16>, vector<8x96xf32> -> vector<8x96xf32>
    %256 = vector.extract_strided_slice %227 {offsets = [8, 0], sizes = [8, 96], strides = [1, 1]} : vector<64x96xf32> to vector<8x96xf32>
    %257 = vector.extract_strided_slice %256 {offsets = [0, 0], sizes = [8, 64], strides = [1, 1]} : vector<8x96xf32> to vector<8x64xf32>
    %258 = vector.extract_strided_slice %255 {offsets = [0, 0], sizes = [8, 64], strides = [1, 1]} : vector<8x96xf32> to vector<8x64xf32>
    %259 = arith.addf %257, %258 : vector<8x64xf32>
    %260 = arith.negf %259 : vector<8x64xf32>
    %261 = math.exp %260 : vector<8x64xf32>
    %cst_51 = arith.constant 1.000000e+00 : f32
    %262 = vector.broadcast %cst_51 : f32 to vector<8x64xf32>
    %263 = arith.addf %262, %261 : vector<8x64xf32>
    %264 = arith.divf %262, %263 : vector<8x64xf32>
    %265 = vector.extract_strided_slice %264 {offsets = [0, 0], sizes = [8, 32], strides = [1, 1]} : vector<8x64xf32> to vector<8x32xf32>
    %266 = vector.extract_strided_slice %264 {offsets = [0, 32], sizes = [8, 32], strides = [1, 1]} : vector<8x64xf32> to vector<8x32xf32>
    %267 = vector.extract_strided_slice %256 {offsets = [0, 64], sizes = [8, 32], strides = [1, 1]} : vector<8x96xf32> to vector<8x32xf32>
    %268 = vector.extract_strided_slice %255 {offsets = [0, 64], sizes = [8, 32], strides = [1, 1]} : vector<8x96xf32> to vector<8x32xf32>
    %269 = arith.addf %268, %224 : vector<8x32xf32>
    %270 = arith.mulf %265, %269 : vector<8x32xf32>
    %271 = arith.addf %267, %270 : vector<8x32xf32>
    %272 = math.tanh %271 : vector<8x32xf32>
    %cst_52 = arith.constant 1.000000e+00 : f32
    %273 = vector.broadcast %cst_52 : f32 to vector<8x32xf32>
    %274 = arith.subf %273, %266 : vector<8x32xf32>
    %275 = arith.mulf %274, %272 : vector<8x32xf32>
    %276 = arith.mulf %266, %253 : vector<8x32xf32>
    %277 = arith.addf %275, %276 : vector<8x32xf32>
    %278 = arith.truncf %277 : vector<8x32xf32> to vector<8x32xbf16>
    %cst_53 = arith.constant dense<0.000000e+00> : vector<8x96xf32>
    %279 = tpu.matmul %278, %214, %cst_53 {dimension_numbers = #tpu.dot_dimension_numbers<[1], [0], [0], [1], [0, 0, 1, 1], [], []>} : vector<8x32xbf16>, vector<32x96xbf16>, vector<8x96xf32> -> vector<8x96xf32>
    %280 = vector.extract_strided_slice %227 {offsets = [16, 0], sizes = [8, 96], strides = [1, 1]} : vector<64x96xf32> to vector<8x96xf32>
    %281 = vector.extract_strided_slice %280 {offsets = [0, 0], sizes = [8, 64], strides = [1, 1]} : vector<8x96xf32> to vector<8x64xf32>
    %282 = vector.extract_strided_slice %279 {offsets = [0, 0], sizes = [8, 64], strides = [1, 1]} : vector<8x96xf32> to vector<8x64xf32>
    %283 = arith.addf %281, %282 : vector<8x64xf32>
    %284 = arith.negf %283 : vector<8x64xf32>
    %285 = math.exp %284 : vector<8x64xf32>
    %cst_54 = arith.constant 1.000000e+00 : f32
    %286 = vector.broadcast %cst_54 : f32 to vector<8x64xf32>
    %287 = arith.addf %286, %285 : vector<8x64xf32>
    %288 = arith.divf %286, %287 : vector<8x64xf32>
    %289 = vector.extract_strided_slice %288 {offsets = [0, 0], sizes = [8, 32], strides = [1, 1]} : vector<8x64xf32> to vector<8x32xf32>
    %290 = vector.extract_strided_slice %288 {offsets = [0, 32], sizes = [8, 32], strides = [1, 1]} : vector<8x64xf32> to vector<8x32xf32>
    %291 = vector.extract_strided_slice %280 {offsets = [0, 64], sizes = [8, 32], strides = [1, 1]} : vector<8x96xf32> to vector<8x32xf32>
    %292 = vector.extract_strided_slice %279 {offsets = [0, 64], sizes = [8, 32], strides = [1, 1]} : vector<8x96xf32> to vector<8x32xf32>
    %293 = arith.addf %292, %224 : vector<8x32xf32>
    %294 = arith.mulf %289, %293 : vector<8x32xf32>
    %295 = arith.addf %291, %294 : vector<8x32xf32>
    %296 = math.tanh %295 : vector<8x32xf32>
    %cst_55 = arith.constant 1.000000e+00 : f32
    %297 = vector.broadcast %cst_55 : f32 to vector<8x32xf32>
    %298 = arith.subf %297, %290 : vector<8x32xf32>
    %299 = arith.mulf %298, %296 : vector<8x32xf32>
    %300 = arith.mulf %290, %277 : vector<8x32xf32>
    %301 = arith.addf %299, %300 : vector<8x32xf32>
    %302 = arith.truncf %301 : vector<8x32xf32> to vector<8x32xbf16>
    %cst_56 = arith.constant dense<0.000000e+00> : vector<8x96xf32>
    %303 = tpu.matmul %302, %214, %cst_56 {dimension_numbers = #tpu.dot_dimension_numbers<[1], [0], [0], [1], [0, 0, 1, 1], [], []>} : vector<8x32xbf16>, vector<32x96xbf16>, vector<8x96xf32> -> vector<8x96xf32>
    %304 = vector.extract_strided_slice %227 {offsets = [24, 0], sizes = [8, 96], strides = [1, 1]} : vector<64x96xf32> to vector<8x96xf32>
    %305 = vector.extract_strided_slice %304 {offsets = [0, 0], sizes = [8, 64], strides = [1, 1]} : vector<8x96xf32> to vector<8x64xf32>
    %306 = vector.extract_strided_slice %303 {offsets = [0, 0], sizes = [8, 64], strides = [1, 1]} : vector<8x96xf32> to vector<8x64xf32>
    %307 = arith.addf %305, %306 : vector<8x64xf32>
    %308 = arith.negf %307 : vector<8x64xf32>
    %309 = math.exp %308 : vector<8x64xf32>
    %cst_57 = arith.constant 1.000000e+00 : f32
    %310 = vector.broadcast %cst_57 : f32 to vector<8x64xf32>
    %311 = arith.addf %310, %309 : vector<8x64xf32>
    %312 = arith.divf %310, %311 : vector<8x64xf32>
    %313 = vector.extract_strided_slice %312 {offsets = [0, 0], sizes = [8, 32], strides = [1, 1]} : vector<8x64xf32> to vector<8x32xf32>
    %314 = vector.extract_strided_slice %312 {offsets = [0, 32], sizes = [8, 32], strides = [1, 1]} : vector<8x64xf32> to vector<8x32xf32>
    %315 = vector.extract_strided_slice %304 {offsets = [0, 64], sizes = [8, 32], strides = [1, 1]} : vector<8x96xf32> to vector<8x32xf32>
    %316 = vector.extract_strided_slice %303 {offsets = [0, 64], sizes = [8, 32], strides = [1, 1]} : vector<8x96xf32> to vector<8x32xf32>
    %317 = arith.addf %316, %224 : vector<8x32xf32>
    %318 = arith.mulf %313, %317 : vector<8x32xf32>
    %319 = arith.addf %315, %318 : vector<8x32xf32>
    %320 = math.tanh %319 : vector<8x32xf32>
    %cst_58 = arith.constant 1.000000e+00 : f32
    %321 = vector.broadcast %cst_58 : f32 to vector<8x32xf32>
    %322 = arith.subf %321, %314 : vector<8x32xf32>
    %323 = arith.mulf %322, %320 : vector<8x32xf32>
    %324 = arith.mulf %314, %301 : vector<8x32xf32>
    %325 = arith.addf %323, %324 : vector<8x32xf32>
    %326 = arith.truncf %325 : vector<8x32xf32> to vector<8x32xbf16>
    %cst_59 = arith.constant dense<0.000000e+00> : vector<8x96xf32>
    %327 = tpu.matmul %326, %214, %cst_59 {dimension_numbers = #tpu.dot_dimension_numbers<[1], [0], [0], [1], [0, 0, 1, 1], [], []>} : vector<8x32xbf16>, vector<32x96xbf16>, vector<8x96xf32> -> vector<8x96xf32>
    %328 = vector.extract_strided_slice %227 {offsets = [32, 0], sizes = [8, 96], strides = [1, 1]} : vector<64x96xf32> to vector<8x96xf32>
    %329 = vector.extract_strided_slice %328 {offsets = [0, 0], sizes = [8, 64], strides = [1, 1]} : vector<8x96xf32> to vector<8x64xf32>
    %330 = vector.extract_strided_slice %327 {offsets = [0, 0], sizes = [8, 64], strides = [1, 1]} : vector<8x96xf32> to vector<8x64xf32>
    %331 = arith.addf %329, %330 : vector<8x64xf32>
    %332 = arith.negf %331 : vector<8x64xf32>
    %333 = math.exp %332 : vector<8x64xf32>
    %cst_60 = arith.constant 1.000000e+00 : f32
    %334 = vector.broadcast %cst_60 : f32 to vector<8x64xf32>
    %335 = arith.addf %334, %333 : vector<8x64xf32>
    %336 = arith.divf %334, %335 : vector<8x64xf32>
    %337 = vector.extract_strided_slice %336 {offsets = [0, 0], sizes = [8, 32], strides = [1, 1]} : vector<8x64xf32> to vector<8x32xf32>
    %338 = vector.extract_strided_slice %336 {offsets = [0, 32], sizes = [8, 32], strides = [1, 1]} : vector<8x64xf32> to vector<8x32xf32>
    %339 = vector.extract_strided_slice %328 {offsets = [0, 64], sizes = [8, 32], strides = [1, 1]} : vector<8x96xf32> to vector<8x32xf32>
    %340 = vector.extract_strided_slice %327 {offsets = [0, 64], sizes = [8, 32], strides = [1, 1]} : vector<8x96xf32> to vector<8x32xf32>
    %341 = arith.addf %340, %224 : vector<8x32xf32>
    %342 = arith.mulf %337, %341 : vector<8x32xf32>
    %343 = arith.addf %339, %342 : vector<8x32xf32>
    %344 = math.tanh %343 : vector<8x32xf32>
    %cst_61 = arith.constant 1.000000e+00 : f32
    %345 = vector.broadcast %cst_61 : f32 to vector<8x32xf32>
    %346 = arith.subf %345, %338 : vector<8x32xf32>
    %347 = arith.mulf %346, %344 : vector<8x32xf32>
    %348 = arith.mulf %338, %325 : vector<8x32xf32>
    %349 = arith.addf %347, %348 : vector<8x32xf32>
    %350 = arith.truncf %349 : vector<8x32xf32> to vector<8x32xbf16>
    %cst_62 = arith.constant dense<0.000000e+00> : vector<8x96xf32>
    %351 = tpu.matmul %350, %214, %cst_62 {dimension_numbers = #tpu.dot_dimension_numbers<[1], [0], [0], [1], [0, 0, 1, 1], [], []>} : vector<8x32xbf16>, vector<32x96xbf16>, vector<8x96xf32> -> vector<8x96xf32>
    %352 = vector.extract_strided_slice %227 {offsets = [40, 0], sizes = [8, 96], strides = [1, 1]} : vector<64x96xf32> to vector<8x96xf32>
    %353 = vector.extract_strided_slice %352 {offsets = [0, 0], sizes = [8, 64], strides = [1, 1]} : vector<8x96xf32> to vector<8x64xf32>
    %354 = vector.extract_strided_slice %351 {offsets = [0, 0], sizes = [8, 64], strides = [1, 1]} : vector<8x96xf32> to vector<8x64xf32>
    %355 = arith.addf %353, %354 : vector<8x64xf32>
    %356 = arith.negf %355 : vector<8x64xf32>
    %357 = math.exp %356 : vector<8x64xf32>
    %cst_63 = arith.constant 1.000000e+00 : f32
    %358 = vector.broadcast %cst_63 : f32 to vector<8x64xf32>
    %359 = arith.addf %358, %357 : vector<8x64xf32>
    %360 = arith.divf %358, %359 : vector<8x64xf32>
    %361 = vector.extract_strided_slice %360 {offsets = [0, 0], sizes = [8, 32], strides = [1, 1]} : vector<8x64xf32> to vector<8x32xf32>
    %362 = vector.extract_strided_slice %360 {offsets = [0, 32], sizes = [8, 32], strides = [1, 1]} : vector<8x64xf32> to vector<8x32xf32>
    %363 = vector.extract_strided_slice %352 {offsets = [0, 64], sizes = [8, 32], strides = [1, 1]} : vector<8x96xf32> to vector<8x32xf32>
    %364 = vector.extract_strided_slice %351 {offsets = [0, 64], sizes = [8, 32], strides = [1, 1]} : vector<8x96xf32> to vector<8x32xf32>
    %365 = arith.addf %364, %224 : vector<8x32xf32>
    %366 = arith.mulf %361, %365 : vector<8x32xf32>
    %367 = arith.addf %363, %366 : vector<8x32xf32>
    %368 = math.tanh %367 : vector<8x32xf32>
    %cst_64 = arith.constant 1.000000e+00 : f32
    %369 = vector.broadcast %cst_64 : f32 to vector<8x32xf32>
    %370 = arith.subf %369, %362 : vector<8x32xf32>
    %371 = arith.mulf %370, %368 : vector<8x32xf32>
    %372 = arith.mulf %362, %349 : vector<8x32xf32>
    %373 = arith.addf %371, %372 : vector<8x32xf32>
    %374 = arith.truncf %373 : vector<8x32xf32> to vector<8x32xbf16>
    %cst_65 = arith.constant dense<0.000000e+00> : vector<8x96xf32>
    %375 = tpu.matmul %374, %214, %cst_65 {dimension_numbers = #tpu.dot_dimension_numbers<[1], [0], [0], [1], [0, 0, 1, 1], [], []>} : vector<8x32xbf16>, vector<32x96xbf16>, vector<8x96xf32> -> vector<8x96xf32>
    %376 = vector.extract_strided_slice %227 {offsets = [48, 0], sizes = [8, 96], strides = [1, 1]} : vector<64x96xf32> to vector<8x96xf32>
    %377 = vector.extract_strided_slice %376 {offsets = [0, 0], sizes = [8, 64], strides = [1, 1]} : vector<8x96xf32> to vector<8x64xf32>
    %378 = vector.extract_strided_slice %375 {offsets = [0, 0], sizes = [8, 64], strides = [1, 1]} : vector<8x96xf32> to vector<8x64xf32>
    %379 = arith.addf %377, %378 : vector<8x64xf32>
    %380 = arith.negf %379 : vector<8x64xf32>
    %381 = math.exp %380 : vector<8x64xf32>
    %cst_66 = arith.constant 1.000000e+00 : f32
    %382 = vector.broadcast %cst_66 : f32 to vector<8x64xf32>
    %383 = arith.addf %382, %381 : vector<8x64xf32>
    %384 = arith.divf %382, %383 : vector<8x64xf32>
    %385 = vector.extract_strided_slice %384 {offsets = [0, 0], sizes = [8, 32], strides = [1, 1]} : vector<8x64xf32> to vector<8x32xf32>
    %386 = vector.extract_strided_slice %384 {offsets = [0, 32], sizes = [8, 32], strides = [1, 1]} : vector<8x64xf32> to vector<8x32xf32>
    %387 = vector.extract_strided_slice %376 {offsets = [0, 64], sizes = [8, 32], strides = [1, 1]} : vector<8x96xf32> to vector<8x32xf32>
    %388 = vector.extract_strided_slice %375 {offsets = [0, 64], sizes = [8, 32], strides = [1, 1]} : vector<8x96xf32> to vector<8x32xf32>
    %389 = arith.addf %388, %224 : vector<8x32xf32>
    %390 = arith.mulf %385, %389 : vector<8x32xf32>
    %391 = arith.addf %387, %390 : vector<8x32xf32>
    %392 = math.tanh %391 : vector<8x32xf32>
    %cst_67 = arith.constant 1.000000e+00 : f32
    %393 = vector.broadcast %cst_67 : f32 to vector<8x32xf32>
    %394 = arith.subf %393, %386 : vector<8x32xf32>
    %395 = arith.mulf %394, %392 : vector<8x32xf32>
    %396 = arith.mulf %386, %373 : vector<8x32xf32>
    %397 = arith.addf %395, %396 : vector<8x32xf32>
    %398 = arith.truncf %397 : vector<8x32xf32> to vector<8x32xbf16>
    %cst_68 = arith.constant dense<0.000000e+00> : vector<8x96xf32>
    %399 = tpu.matmul %398, %214, %cst_68 {dimension_numbers = #tpu.dot_dimension_numbers<[1], [0], [0], [1], [0, 0, 1, 1], [], []>} : vector<8x32xbf16>, vector<32x96xbf16>, vector<8x96xf32> -> vector<8x96xf32>
    %400 = vector.extract_strided_slice %227 {offsets = [56, 0], sizes = [8, 96], strides = [1, 1]} : vector<64x96xf32> to vector<8x96xf32>
    %401 = vector.extract_strided_slice %400 {offsets = [0, 0], sizes = [8, 64], strides = [1, 1]} : vector<8x96xf32> to vector<8x64xf32>
    %402 = vector.extract_strided_slice %399 {offsets = [0, 0], sizes = [8, 64], strides = [1, 1]} : vector<8x96xf32> to vector<8x64xf32>
    %403 = arith.addf %401, %402 : vector<8x64xf32>
    %404 = arith.negf %403 : vector<8x64xf32>
    %405 = math.exp %404 : vector<8x64xf32>
    %cst_69 = arith.constant 1.000000e+00 : f32
    %406 = vector.broadcast %cst_69 : f32 to vector<8x64xf32>
    %407 = arith.addf %406, %405 : vector<8x64xf32>
    %408 = arith.divf %406, %407 : vector<8x64xf32>
    %409 = vector.extract_strided_slice %408 {offsets = [0, 0], sizes = [8, 32], strides = [1, 1]} : vector<8x64xf32> to vector<8x32xf32>
    %410 = vector.extract_strided_slice %408 {offsets = [0, 32], sizes = [8, 32], strides = [1, 1]} : vector<8x64xf32> to vector<8x32xf32>
    %411 = vector.extract_strided_slice %400 {offsets = [0, 64], sizes = [8, 32], strides = [1, 1]} : vector<8x96xf32> to vector<8x32xf32>
    %412 = vector.extract_strided_slice %399 {offsets = [0, 64], sizes = [8, 32], strides = [1, 1]} : vector<8x96xf32> to vector<8x32xf32>
    %413 = arith.addf %412, %224 : vector<8x32xf32>
    %414 = arith.mulf %409, %413 : vector<8x32xf32>
    %415 = arith.addf %411, %414 : vector<8x32xf32>
    %416 = math.tanh %415 : vector<8x32xf32>
    %cst_70 = arith.constant 1.000000e+00 : f32
    %417 = vector.broadcast %cst_70 : f32 to vector<8x32xf32>
    %418 = arith.subf %417, %410 : vector<8x32xf32>
    %419 = arith.mulf %418, %416 : vector<8x32xf32>
    %420 = arith.mulf %410, %397 : vector<8x32xf32>
    %421 = arith.addf %419, %420 : vector<8x32xf32>
    %422 = tpu.concatenate %253, %277, %301, %325, %349, %373, %397, %421 in 0 : vector<8x32xf32>, vector<8x32xf32>, vector<8x32xf32>, vector<8x32xf32>, vector<8x32xf32>, vector<8x32xf32>, vector<8x32xf32>, vector<8x32xf32> -> vector<64x32xf32>
    %423 = arith.truncf %422 : vector<64x32xf32> to vector<64x32xbf16>
    %c0_71 = arith.constant 0 : index
    %c0_72 = arith.constant 0 : index
    %424 = vector.load %arg10[%c0_71, %c0_72] : memref<32x96xbf16, #tpu.memory_space<vmem>>, vector<32x96xbf16>
    %c0_73 = arith.constant 0 : index
    %c0_74 = arith.constant 0 : index
    %425 = vector.load %arg11[%c0_73, %c0_74] : memref<32x96xbf16, #tpu.memory_space<vmem>>, vector<32x96xbf16>
    %c0_75 = arith.constant 0 : index
    %c0_76 = arith.constant 0 : index
    %426 = vector.load %arg12[%c0_75, %c0_76] : memref<1x96xf32, #tpu.memory_space<vmem>>, vector<1x96xf32>
    %c0_77 = arith.constant 0 : index
    %c0_78 = arith.constant 0 : index
    %427 = vector.load %arg13[%c0_77, %c0_78] : memref<1x96xf32, #tpu.memory_space<vmem>>, vector<1x96xf32>
    %428 = vector.extract_strided_slice %426 {offsets = [0, 0], sizes = [1, 64], strides = [1, 1]} : vector<1x96xf32> to vector<1x64xf32>
    %429 = vector.extract_strided_slice %427 {offsets = [0, 0], sizes = [1, 64], strides = [1, 1]} : vector<1x96xf32> to vector<1x64xf32>
    %430 = arith.addf %428, %429 : vector<1x64xf32>
    %431 = vector.extract_strided_slice %426 {offsets = [0, 64], sizes = [1, 32], strides = [1, 1]} : vector<1x96xf32> to vector<1x32xf32>
    %432 = tpu.concatenate %430, %431 in 1 : vector<1x64xf32>, vector<1x32xf32> -> vector<1x96xf32>
    %433 = vector.extract_strided_slice %427 {offsets = [0, 64], sizes = [1, 32], strides = [1, 1]} : vector<1x96xf32> to vector<1x32xf32>
    %434 = vector.shape_cast %433 : vector<1x32xf32> to vector<1x32xf32>
    %435 = vector.broadcast %434 : vector<1x32xf32> to vector<8x32xf32>
    %cst_79 = arith.constant dense<0.000000e+00> : vector<64x96xf32>
    %436 = tpu.matmul %423, %424, %cst_79 {dimension_numbers = #tpu.dot_dimension_numbers<[1], [0], [0], [1], [0, 0, 1, 1], [], []>} : vector<64x32xbf16>, vector<32x96xbf16>, vector<64x96xf32> -> vector<64x96xf32>
    %437 = vector.broadcast %432 : vector<1x96xf32> to vector<64x96xf32>
    %438 = arith.addf %436, %437 : vector<64x96xf32>
    %c2 = arith.constant 2 : index
    %c0_80 = arith.constant 0 : index
    %c0_81 = arith.constant 0 : index
    %439 = vector.load %arg1[%c2, %c0_80, %c0_81] : memref<3x8x32xf32, #tpu.memory_space<vmem>>, vector<1x8x32xf32>
    %440 = vector.shape_cast %439 : vector<1x8x32xf32> to vector<8x32xf32>
    %441 = arith.truncf %440 : vector<8x32xf32> to vector<8x32xbf16>
    %cst_82 = arith.constant dense<0.000000e+00> : vector<8x96xf32>
    %442 = tpu.matmul %441, %425, %cst_82 {dimension_numbers = #tpu.dot_dimension_numbers<[1], [0], [0], [1], [0, 0, 1, 1], [], []>} : vector<8x32xbf16>, vector<32x96xbf16>, vector<8x96xf32> -> vector<8x96xf32>
    %443 = vector.extract_strided_slice %438 {offsets = [0, 0], sizes = [8, 96], strides = [1, 1]} : vector<64x96xf32> to vector<8x96xf32>
    %444 = vector.extract_strided_slice %443 {offsets = [0, 0], sizes = [8, 64], strides = [1, 1]} : vector<8x96xf32> to vector<8x64xf32>
    %445 = vector.extract_strided_slice %442 {offsets = [0, 0], sizes = [8, 64], strides = [1, 1]} : vector<8x96xf32> to vector<8x64xf32>
    %446 = arith.addf %444, %445 : vector<8x64xf32>
    %447 = arith.negf %446 : vector<8x64xf32>
    %448 = math.exp %447 : vector<8x64xf32>
    %cst_83 = arith.constant 1.000000e+00 : f32
    %449 = vector.broadcast %cst_83 : f32 to vector<8x64xf32>
    %450 = arith.addf %449, %448 : vector<8x64xf32>
    %451 = arith.divf %449, %450 : vector<8x64xf32>
    %452 = vector.extract_strided_slice %451 {offsets = [0, 0], sizes = [8, 32], strides = [1, 1]} : vector<8x64xf32> to vector<8x32xf32>
    %453 = vector.extract_strided_slice %451 {offsets = [0, 32], sizes = [8, 32], strides = [1, 1]} : vector<8x64xf32> to vector<8x32xf32>
    %454 = vector.extract_strided_slice %443 {offsets = [0, 64], sizes = [8, 32], strides = [1, 1]} : vector<8x96xf32> to vector<8x32xf32>
    %455 = vector.extract_strided_slice %442 {offsets = [0, 64], sizes = [8, 32], strides = [1, 1]} : vector<8x96xf32> to vector<8x32xf32>
    %456 = arith.addf %455, %435 : vector<8x32xf32>
    %457 = arith.mulf %452, %456 : vector<8x32xf32>
    %458 = arith.addf %454, %457 : vector<8x32xf32>
    %459 = math.tanh %458 : vector<8x32xf32>
    %cst_84 = arith.constant 1.000000e+00 : f32
    %460 = vector.broadcast %cst_84 : f32 to vector<8x32xf32>
    %461 = arith.subf %460, %453 : vector<8x32xf32>
    %462 = arith.mulf %461, %459 : vector<8x32xf32>
    %463 = arith.mulf %453, %440 : vector<8x32xf32>
    %464 = arith.addf %462, %463 : vector<8x32xf32>
    %465 = arith.truncf %464 : vector<8x32xf32> to vector<8x32xbf16>
    %cst_85 = arith.constant dense<0.000000e+00> : vector<8x96xf32>
    %466 = tpu.matmul %465, %425, %cst_85 {dimension_numbers = #tpu.dot_dimension_numbers<[1], [0], [0], [1], [0, 0, 1, 1], [], []>} : vector<8x32xbf16>, vector<32x96xbf16>, vector<8x96xf32> -> vector<8x96xf32>
    %467 = vector.extract_strided_slice %438 {offsets = [8, 0], sizes = [8, 96], strides = [1, 1]} : vector<64x96xf32> to vector<8x96xf32>
    %468 = vector.extract_strided_slice %467 {offsets = [0, 0], sizes = [8, 64], strides = [1, 1]} : vector<8x96xf32> to vector<8x64xf32>
    %469 = vector.extract_strided_slice %466 {offsets = [0, 0], sizes = [8, 64], strides = [1, 1]} : vector<8x96xf32> to vector<8x64xf32>
    %470 = arith.addf %468, %469 : vector<8x64xf32>
    %471 = arith.negf %470 : vector<8x64xf32>
    %472 = math.exp %471 : vector<8x64xf32>
    %cst_86 = arith.constant 1.000000e+00 : f32
    %473 = vector.broadcast %cst_86 : f32 to vector<8x64xf32>
    %474 = arith.addf %473, %472 : vector<8x64xf32>
    %475 = arith.divf %473, %474 : vector<8x64xf32>
    %476 = vector.extract_strided_slice %475 {offsets = [0, 0], sizes = [8, 32], strides = [1, 1]} : vector<8x64xf32> to vector<8x32xf32>
    %477 = vector.extract_strided_slice %475 {offsets = [0, 32], sizes = [8, 32], strides = [1, 1]} : vector<8x64xf32> to vector<8x32xf32>
    %478 = vector.extract_strided_slice %467 {offsets = [0, 64], sizes = [8, 32], strides = [1, 1]} : vector<8x96xf32> to vector<8x32xf32>
    %479 = vector.extract_strided_slice %466 {offsets = [0, 64], sizes = [8, 32], strides = [1, 1]} : vector<8x96xf32> to vector<8x32xf32>
    %480 = arith.addf %479, %435 : vector<8x32xf32>
    %481 = arith.mulf %476, %480 : vector<8x32xf32>
    %482 = arith.addf %478, %481 : vector<8x32xf32>
    %483 = math.tanh %482 : vector<8x32xf32>
    %cst_87 = arith.constant 1.000000e+00 : f32
    %484 = vector.broadcast %cst_87 : f32 to vector<8x32xf32>
    %485 = arith.subf %484, %477 : vector<8x32xf32>
    %486 = arith.mulf %485, %483 : vector<8x32xf32>
    %487 = arith.mulf %477, %464 : vector<8x32xf32>
    %488 = arith.addf %486, %487 : vector<8x32xf32>
    %489 = arith.truncf %488 : vector<8x32xf32> to vector<8x32xbf16>
    %cst_88 = arith.constant dense<0.000000e+00> : vector<8x96xf32>
    %490 = tpu.matmul %489, %425, %cst_88 {dimension_numbers = #tpu.dot_dimension_numbers<[1], [0], [0], [1], [0, 0, 1, 1], [], []>} : vector<8x32xbf16>, vector<32x96xbf16>, vector<8x96xf32> -> vector<8x96xf32>
    %491 = vector.extract_strided_slice %438 {offsets = [16, 0], sizes = [8, 96], strides = [1, 1]} : vector<64x96xf32> to vector<8x96xf32>
    %492 = vector.extract_strided_slice %491 {offsets = [0, 0], sizes = [8, 64], strides = [1, 1]} : vector<8x96xf32> to vector<8x64xf32>
    %493 = vector.extract_strided_slice %490 {offsets = [0, 0], sizes = [8, 64], strides = [1, 1]} : vector<8x96xf32> to vector<8x64xf32>
    %494 = arith.addf %492, %493 : vector<8x64xf32>
    %495 = arith.negf %494 : vector<8x64xf32>
    %496 = math.exp %495 : vector<8x64xf32>
    %cst_89 = arith.constant 1.000000e+00 : f32
    %497 = vector.broadcast %cst_89 : f32 to vector<8x64xf32>
    %498 = arith.addf %497, %496 : vector<8x64xf32>
    %499 = arith.divf %497, %498 : vector<8x64xf32>
    %500 = vector.extract_strided_slice %499 {offsets = [0, 0], sizes = [8, 32], strides = [1, 1]} : vector<8x64xf32> to vector<8x32xf32>
    %501 = vector.extract_strided_slice %499 {offsets = [0, 32], sizes = [8, 32], strides = [1, 1]} : vector<8x64xf32> to vector<8x32xf32>
    %502 = vector.extract_strided_slice %491 {offsets = [0, 64], sizes = [8, 32], strides = [1, 1]} : vector<8x96xf32> to vector<8x32xf32>
    %503 = vector.extract_strided_slice %490 {offsets = [0, 64], sizes = [8, 32], strides = [1, 1]} : vector<8x96xf32> to vector<8x32xf32>
    %504 = arith.addf %503, %435 : vector<8x32xf32>
    %505 = arith.mulf %500, %504 : vector<8x32xf32>
    %506 = arith.addf %502, %505 : vector<8x32xf32>
    %507 = math.tanh %506 : vector<8x32xf32>
    %cst_90 = arith.constant 1.000000e+00 : f32
    %508 = vector.broadcast %cst_90 : f32 to vector<8x32xf32>
    %509 = arith.subf %508, %501 : vector<8x32xf32>
    %510 = arith.mulf %509, %507 : vector<8x32xf32>
    %511 = arith.mulf %501, %488 : vector<8x32xf32>
    %512 = arith.addf %510, %511 : vector<8x32xf32>
    %513 = arith.truncf %512 : vector<8x32xf32> to vector<8x32xbf16>
    %cst_91 = arith.constant dense<0.000000e+00> : vector<8x96xf32>
    %514 = tpu.matmul %513, %425, %cst_91 {dimension_numbers = #tpu.dot_dimension_numbers<[1], [0], [0], [1], [0, 0, 1, 1], [], []>} : vector<8x32xbf16>, vector<32x96xbf16>, vector<8x96xf32> -> vector<8x96xf32>
    %515 = vector.extract_strided_slice %438 {offsets = [24, 0], sizes = [8, 96], strides = [1, 1]} : vector<64x96xf32> to vector<8x96xf32>
    %516 = vector.extract_strided_slice %515 {offsets = [0, 0], sizes = [8, 64], strides = [1, 1]} : vector<8x96xf32> to vector<8x64xf32>
    %517 = vector.extract_strided_slice %514 {offsets = [0, 0], sizes = [8, 64], strides = [1, 1]} : vector<8x96xf32> to vector<8x64xf32>
    %518 = arith.addf %516, %517 : vector<8x64xf32>
    %519 = arith.negf %518 : vector<8x64xf32>
    %520 = math.exp %519 : vector<8x64xf32>
    %cst_92 = arith.constant 1.000000e+00 : f32
    %521 = vector.broadcast %cst_92 : f32 to vector<8x64xf32>
    %522 = arith.addf %521, %520 : vector<8x64xf32>
    %523 = arith.divf %521, %522 : vector<8x64xf32>
    %524 = vector.extract_strided_slice %523 {offsets = [0, 0], sizes = [8, 32], strides = [1, 1]} : vector<8x64xf32> to vector<8x32xf32>
    %525 = vector.extract_strided_slice %523 {offsets = [0, 32], sizes = [8, 32], strides = [1, 1]} : vector<8x64xf32> to vector<8x32xf32>
    %526 = vector.extract_strided_slice %515 {offsets = [0, 64], sizes = [8, 32], strides = [1, 1]} : vector<8x96xf32> to vector<8x32xf32>
    %527 = vector.extract_strided_slice %514 {offsets = [0, 64], sizes = [8, 32], strides = [1, 1]} : vector<8x96xf32> to vector<8x32xf32>
    %528 = arith.addf %527, %435 : vector<8x32xf32>
    %529 = arith.mulf %524, %528 : vector<8x32xf32>
    %530 = arith.addf %526, %529 : vector<8x32xf32>
    %531 = math.tanh %530 : vector<8x32xf32>
    %cst_93 = arith.constant 1.000000e+00 : f32
    %532 = vector.broadcast %cst_93 : f32 to vector<8x32xf32>
    %533 = arith.subf %532, %525 : vector<8x32xf32>
    %534 = arith.mulf %533, %531 : vector<8x32xf32>
    %535 = arith.mulf %525, %512 : vector<8x32xf32>
    %536 = arith.addf %534, %535 : vector<8x32xf32>
    %537 = arith.truncf %536 : vector<8x32xf32> to vector<8x32xbf16>
    %cst_94 = arith.constant dense<0.000000e+00> : vector<8x96xf32>
    %538 = tpu.matmul %537, %425, %cst_94 {dimension_numbers = #tpu.dot_dimension_numbers<[1], [0], [0], [1], [0, 0, 1, 1], [], []>} : vector<8x32xbf16>, vector<32x96xbf16>, vector<8x96xf32> -> vector<8x96xf32>
    %539 = vector.extract_strided_slice %438 {offsets = [32, 0], sizes = [8, 96], strides = [1, 1]} : vector<64x96xf32> to vector<8x96xf32>
    %540 = vector.extract_strided_slice %539 {offsets = [0, 0], sizes = [8, 64], strides = [1, 1]} : vector<8x96xf32> to vector<8x64xf32>
    %541 = vector.extract_strided_slice %538 {offsets = [0, 0], sizes = [8, 64], strides = [1, 1]} : vector<8x96xf32> to vector<8x64xf32>
    %542 = arith.addf %540, %541 : vector<8x64xf32>
    %543 = arith.negf %542 : vector<8x64xf32>
    %544 = math.exp %543 : vector<8x64xf32>
    %cst_95 = arith.constant 1.000000e+00 : f32
    %545 = vector.broadcast %cst_95 : f32 to vector<8x64xf32>
    %546 = arith.addf %545, %544 : vector<8x64xf32>
    %547 = arith.divf %545, %546 : vector<8x64xf32>
    %548 = vector.extract_strided_slice %547 {offsets = [0, 0], sizes = [8, 32], strides = [1, 1]} : vector<8x64xf32> to vector<8x32xf32>
    %549 = vector.extract_strided_slice %547 {offsets = [0, 32], sizes = [8, 32], strides = [1, 1]} : vector<8x64xf32> to vector<8x32xf32>
    %550 = vector.extract_strided_slice %539 {offsets = [0, 64], sizes = [8, 32], strides = [1, 1]} : vector<8x96xf32> to vector<8x32xf32>
    %551 = vector.extract_strided_slice %538 {offsets = [0, 64], sizes = [8, 32], strides = [1, 1]} : vector<8x96xf32> to vector<8x32xf32>
    %552 = arith.addf %551, %435 : vector<8x32xf32>
    %553 = arith.mulf %548, %552 : vector<8x32xf32>
    %554 = arith.addf %550, %553 : vector<8x32xf32>
    %555 = math.tanh %554 : vector<8x32xf32>
    %cst_96 = arith.constant 1.000000e+00 : f32
    %556 = vector.broadcast %cst_96 : f32 to vector<8x32xf32>
    %557 = arith.subf %556, %549 : vector<8x32xf32>
    %558 = arith.mulf %557, %555 : vector<8x32xf32>
    %559 = arith.mulf %549, %536 : vector<8x32xf32>
    %560 = arith.addf %558, %559 : vector<8x32xf32>
    %561 = arith.truncf %560 : vector<8x32xf32> to vector<8x32xbf16>
    %cst_97 = arith.constant dense<0.000000e+00> : vector<8x96xf32>
    %562 = tpu.matmul %561, %425, %cst_97 {dimension_numbers = #tpu.dot_dimension_numbers<[1], [0], [0], [1], [0, 0, 1, 1], [], []>} : vector<8x32xbf16>, vector<32x96xbf16>, vector<8x96xf32> -> vector<8x96xf32>
    %563 = vector.extract_strided_slice %438 {offsets = [40, 0], sizes = [8, 96], strides = [1, 1]} : vector<64x96xf32> to vector<8x96xf32>
    %564 = vector.extract_strided_slice %563 {offsets = [0, 0], sizes = [8, 64], strides = [1, 1]} : vector<8x96xf32> to vector<8x64xf32>
    %565 = vector.extract_strided_slice %562 {offsets = [0, 0], sizes = [8, 64], strides = [1, 1]} : vector<8x96xf32> to vector<8x64xf32>
    %566 = arith.addf %564, %565 : vector<8x64xf32>
    %567 = arith.negf %566 : vector<8x64xf32>
    %568 = math.exp %567 : vector<8x64xf32>
    %cst_98 = arith.constant 1.000000e+00 : f32
    %569 = vector.broadcast %cst_98 : f32 to vector<8x64xf32>
    %570 = arith.addf %569, %568 : vector<8x64xf32>
    %571 = arith.divf %569, %570 : vector<8x64xf32>
    %572 = vector.extract_strided_slice %571 {offsets = [0, 0], sizes = [8, 32], strides = [1, 1]} : vector<8x64xf32> to vector<8x32xf32>
    %573 = vector.extract_strided_slice %571 {offsets = [0, 32], sizes = [8, 32], strides = [1, 1]} : vector<8x64xf32> to vector<8x32xf32>
    %574 = vector.extract_strided_slice %563 {offsets = [0, 64], sizes = [8, 32], strides = [1, 1]} : vector<8x96xf32> to vector<8x32xf32>
    %575 = vector.extract_strided_slice %562 {offsets = [0, 64], sizes = [8, 32], strides = [1, 1]} : vector<8x96xf32> to vector<8x32xf32>
    %576 = arith.addf %575, %435 : vector<8x32xf32>
    %577 = arith.mulf %572, %576 : vector<8x32xf32>
    %578 = arith.addf %574, %577 : vector<8x32xf32>
    %579 = math.tanh %578 : vector<8x32xf32>
    %cst_99 = arith.constant 1.000000e+00 : f32
    %580 = vector.broadcast %cst_99 : f32 to vector<8x32xf32>
    %581 = arith.subf %580, %573 : vector<8x32xf32>
    %582 = arith.mulf %581, %579 : vector<8x32xf32>
    %583 = arith.mulf %573, %560 : vector<8x32xf32>
    %584 = arith.addf %582, %583 : vector<8x32xf32>
    %585 = arith.truncf %584 : vector<8x32xf32> to vector<8x32xbf16>
    %cst_100 = arith.constant dense<0.000000e+00> : vector<8x96xf32>
    %586 = tpu.matmul %585, %425, %cst_100 {dimension_numbers = #tpu.dot_dimension_numbers<[1], [0], [0], [1], [0, 0, 1, 1], [], []>} : vector<8x32xbf16>, vector<32x96xbf16>, vector<8x96xf32> -> vector<8x96xf32>
    %587 = vector.extract_strided_slice %438 {offsets = [48, 0], sizes = [8, 96], strides = [1, 1]} : vector<64x96xf32> to vector<8x96xf32>
    %588 = vector.extract_strided_slice %587 {offsets = [0, 0], sizes = [8, 64], strides = [1, 1]} : vector<8x96xf32> to vector<8x64xf32>
    %589 = vector.extract_strided_slice %586 {offsets = [0, 0], sizes = [8, 64], strides = [1, 1]} : vector<8x96xf32> to vector<8x64xf32>
    %590 = arith.addf %588, %589 : vector<8x64xf32>
    %591 = arith.negf %590 : vector<8x64xf32>
    %592 = math.exp %591 : vector<8x64xf32>
    %cst_101 = arith.constant 1.000000e+00 : f32
    %593 = vector.broadcast %cst_101 : f32 to vector<8x64xf32>
    %594 = arith.addf %593, %592 : vector<8x64xf32>
    %595 = arith.divf %593, %594 : vector<8x64xf32>
    %596 = vector.extract_strided_slice %595 {offsets = [0, 0], sizes = [8, 32], strides = [1, 1]} : vector<8x64xf32> to vector<8x32xf32>
    %597 = vector.extract_strided_slice %595 {offsets = [0, 32], sizes = [8, 32], strides = [1, 1]} : vector<8x64xf32> to vector<8x32xf32>
    %598 = vector.extract_strided_slice %587 {offsets = [0, 64], sizes = [8, 32], strides = [1, 1]} : vector<8x96xf32> to vector<8x32xf32>
    %599 = vector.extract_strided_slice %586 {offsets = [0, 64], sizes = [8, 32], strides = [1, 1]} : vector<8x96xf32> to vector<8x32xf32>
    %600 = arith.addf %599, %435 : vector<8x32xf32>
    %601 = arith.mulf %596, %600 : vector<8x32xf32>
    %602 = arith.addf %598, %601 : vector<8x32xf32>
    %603 = math.tanh %602 : vector<8x32xf32>
    %cst_102 = arith.constant 1.000000e+00 : f32
    %604 = vector.broadcast %cst_102 : f32 to vector<8x32xf32>
    %605 = arith.subf %604, %597 : vector<8x32xf32>
    %606 = arith.mulf %605, %603 : vector<8x32xf32>
    %607 = arith.mulf %597, %584 : vector<8x32xf32>
    %608 = arith.addf %606, %607 : vector<8x32xf32>
    %609 = arith.truncf %608 : vector<8x32xf32> to vector<8x32xbf16>
    %cst_103 = arith.constant dense<0.000000e+00> : vector<8x96xf32>
    %610 = tpu.matmul %609, %425, %cst_103 {dimension_numbers = #tpu.dot_dimension_numbers<[1], [0], [0], [1], [0, 0, 1, 1], [], []>} : vector<8x32xbf16>, vector<32x96xbf16>, vector<8x96xf32> -> vector<8x96xf32>
    %611 = vector.extract_strided_slice %438 {offsets = [56, 0], sizes = [8, 96], strides = [1, 1]} : vector<64x96xf32> to vector<8x96xf32>
    %612 = vector.extract_strided_slice %611 {offsets = [0, 0], sizes = [8, 64], strides = [1, 1]} : vector<8x96xf32> to vector<8x64xf32>
    %613 = vector.extract_strided_slice %610 {offsets = [0, 0], sizes = [8, 64], strides = [1, 1]} : vector<8x96xf32> to vector<8x64xf32>
    %614 = arith.addf %612, %613 : vector<8x64xf32>
    %615 = arith.negf %614 : vector<8x64xf32>
    %616 = math.exp %615 : vector<8x64xf32>
    %cst_104 = arith.constant 1.000000e+00 : f32
    %617 = vector.broadcast %cst_104 : f32 to vector<8x64xf32>
    %618 = arith.addf %617, %616 : vector<8x64xf32>
    %619 = arith.divf %617, %618 : vector<8x64xf32>
    %620 = vector.extract_strided_slice %619 {offsets = [0, 0], sizes = [8, 32], strides = [1, 1]} : vector<8x64xf32> to vector<8x32xf32>
    %621 = vector.extract_strided_slice %619 {offsets = [0, 32], sizes = [8, 32], strides = [1, 1]} : vector<8x64xf32> to vector<8x32xf32>
    %622 = vector.extract_strided_slice %611 {offsets = [0, 64], sizes = [8, 32], strides = [1, 1]} : vector<8x96xf32> to vector<8x32xf32>
    %623 = vector.extract_strided_slice %610 {offsets = [0, 64], sizes = [8, 32], strides = [1, 1]} : vector<8x96xf32> to vector<8x32xf32>
    %624 = arith.addf %623, %435 : vector<8x32xf32>
    %625 = arith.mulf %620, %624 : vector<8x32xf32>
    %626 = arith.addf %622, %625 : vector<8x32xf32>
    %627 = math.tanh %626 : vector<8x32xf32>
    %cst_105 = arith.constant 1.000000e+00 : f32
    %628 = vector.broadcast %cst_105 : f32 to vector<8x32xf32>
    %629 = arith.subf %628, %621 : vector<8x32xf32>
    %630 = arith.mulf %629, %627 : vector<8x32xf32>
    %631 = arith.mulf %621, %608 : vector<8x32xf32>
    %632 = arith.addf %630, %631 : vector<8x32xf32>
    %633 = tpu.concatenate %464, %488, %512, %536, %560, %584, %608, %632 in 0 : vector<8x32xf32>, vector<8x32xf32>, vector<8x32xf32>, vector<8x32xf32>, vector<8x32xf32>, vector<8x32xf32>, vector<8x32xf32>, vector<8x32xf32> -> vector<64x32xf32>
    %634 = arith.truncf %633 : vector<64x32xf32> to vector<64x32xbf16>
    %c0_106 = arith.constant 0 : index
    %c0_107 = arith.constant 0 : index
    %635 = vector.load %arg14[%c0_106, %c0_107] : memref<32x1xbf16, #tpu.memory_space<vmem>>, vector<32x1xbf16>
    %cst_108 = arith.constant dense<0.000000e+00> : vector<64x1xf32>
    %636 = tpu.matmul %634, %635, %cst_108 {dimension_numbers = #tpu.dot_dimension_numbers<[1], [0], [0], [1], [0, 0, 1, 1], [], []>} : vector<64x32xbf16>, vector<32x1xbf16>, vector<64x1xf32> -> vector<64x1xf32>
    %c0_109 = arith.constant 0 : index
    %c0_110 = arith.constant 0 : index
    %637 = vector.load %arg15[%c0_109, %c0_110] : memref<1x1xf32, #tpu.memory_space<vmem>>, vector<1x1xf32>
    %638 = vector.broadcast %637 : vector<1x1xf32> to vector<64x1xf32>
    %639 = arith.addf %636, %638 : vector<64x1xf32>
    %c0_111 = arith.constant 0 : index
    %c0_112 = arith.constant 0 : index
    %640 = vector.load %arg16[%c0_111, %c0_112] : memref<64x1xf32, #tpu.memory_space<vmem>>, vector<64x1xf32>
    tpu.vector_store %arg16[%c0_111, %c0_112], %639 {strides = array<i32>} : memref<64x1xf32, #tpu.memory_space<vmem>>, vector<64x1xf32>,
    return
  }
}

</mosaic_0001>

<llo_original>
// kernel: tpu_custom_call.1
$region0: #{tpu_custom_call.1}
  #allocation0 [shape = 'u32[]', space=smem, size = 0x4, offset = 0x4, fixed_abs, tag = 'smem constant byte address 0x4 - core index']
  #allocation1 [shape = 'u32[144,128]{1,0:T(1,128)}', space=vmem, size = 0x12000, scoped, tag = 'internal scratch']
  #allocation2 [shape = 'f32[1,1]{1,0:T(1,128)S(1)}', space=vmem, size = 0x200, scoped, tag = 'scoped memory for tpu_custom_call.1']
  %s0 = inlined_call_operand.vmem [shape: f32[64,5], index: 0, kind: input, shape index: {}]
  %s1 = inlined_call_operand.vmem [shape: f32[3,8,32], index: 1, kind: input, shape index: {}]
  %s2 = inlined_call_operand.hbm [shape: bf16[5,96], index: 2, kind: input, shape index: {}]
  %s3 = inlined_call_operand.vmem [shape: bf16[32,96], index: 3, kind: input, shape index: {}]
  %s4 = inlined_call_operand.vmem [shape: f32[1,96], index: 4, kind: input, shape index: {}]
  %s5 = inlined_call_operand.vmem [shape: f32[1,96], index: 5, kind: input, shape index: {}]
  %s6 = inlined_call_operand.vmem [shape: bf16[32,96], index: 6, kind: input, shape index: {}]
  %s7 = inlined_call_operand.vmem [shape: bf16[32,96], index: 7, kind: input, shape index: {}]
  %s8 = inlined_call_operand.vmem [shape: f32[1,96], index: 8, kind: input, shape index: {}]
  %s9 = inlined_call_operand.vmem [shape: f32[1,96], index: 9, kind: input, shape index: {}]
  %s10 = inlined_call_operand.vmem [shape: bf16[32,96], index: 10, kind: input, shape index: {}]
  %s11 = inlined_call_operand.vmem [shape: bf16[32,96], index: 11, kind: input, shape index: {}]
  %s12 = inlined_call_operand.vmem [shape: f32[1,96], index: 12, kind: input, shape index: {}]
  %s13 = inlined_call_operand.vmem [shape: f32[1,96], index: 13, kind: input, shape index: {}]
  %s14 = inlined_call_operand.vmem [shape: bf16[32,1], index: 14, kind: input, shape index: {}]
  %s15 = inlined_call_operand.<no memory space> [shape: f32[1,1], index: 15, kind: input, shape index: {}]
  %s16 = inlined_call_operand.vmem [shape: f32[64,1], index: 16, kind: output, shape index: {}]
  %s17 = sld [smem:[#allocation0]]
  $region78: #{tpu_custom_call.1} parent=0
    _
  %s19 = ssub.s32 1, %s17
  %s20 = scalar_select 0, %s19, %s17
  %v21 = vstv %s15
  %22 = vst [vmem:[#allocation2] sm:$0x1] %v21
  $region1: #{tpu_custom_call.1} parent=0
    #allocation3 [shape = 'u8[2048]{0}', space=vmem, size = 0x800, scoped, tag = 'input window, operand 2, single buffered']
    #allocation4 [shape = 's32[1]{0}', space=sflag, size = 0x4, scoped, tag = 'scoped memory for tpu_custom_call.1']
    %23 = vsyncpa [#allocation4], 0
    // Predicated region
    $region2: #{tpu_custom_call.1} parent=1 // pred_check
      _
    $region3: #{tpu_custom_call.1} parent=1 // pred_check_branch
      %25 = sbr.rel (0) target = $region5
    $region4: #{tpu_custom_call.1} parent=1 // pred_region
      _
    $region5: #{tpu_custom_call.1} parent=1 // pred_fallthru
      _
    // Predicated region
    $region6: #{tpu_custom_call.1} parent=1 // pred_check
      _
    $region7: #{tpu_custom_call.1} parent=1 // pred_check_branch
      %27 = sbr.rel (0) target = $region9
    $region8: #{tpu_custom_call.1} parent=1 // pred_region
      _
    $region9: #{tpu_custom_call.1} parent=1 // pred_fallthru
      _
    // Predicated region
    $region10: #{tpu_custom_call.1} parent=1 // pred_check
      _
    $region11: #{tpu_custom_call.1} parent=1 // pred_check_branch
      %29 = sbr.rel (0) target = $region13
    $region12: #{tpu_custom_call.1} parent=1 // pred_region
      %s31 = ssub.s32 64, 64
      %32 = vsyncadd [#allocation4], %s31
      %s34 = sshll.u32 [#allocation3], 4
      %s35 = int_to_ptr.vmem [resolvable:$true] %s34
      %37 = dma.hbm_to_vmem [thread:$0]  %s2, 64, %s35, [#allocation4]
    $region13: #{tpu_custom_call.1} parent=1 // pred_fallthru
      _
    // Predicated region
    $region14: #{tpu_custom_call.1} parent=1 // pred_check
      _
    $region15: #{tpu_custom_call.1} parent=1 // pred_check_branch
      %39 = sbr.rel (0) target = $region17
    $region16: #{tpu_custom_call.1} parent=1 // pred_region
      _
    $region17: #{tpu_custom_call.1} parent=1 // pred_fallthru
      _
    // Predicated region
    $region18: #{tpu_custom_call.1} parent=1 // pred_check
      _
    $region19: #{tpu_custom_call.1} parent=1 // pred_check_branch
      %41 = sbr.rel (0) target = $region21
    $region20: #{tpu_custom_call.1} parent=1 // pred_region
      _
    $region21: #{tpu_custom_call.1} parent=1 // pred_fallthru
      _
    // Predicated region
    $region22: #{tpu_custom_call.1} parent=1 // pred_check
      _
    $region23: #{tpu_custom_call.1} parent=1 // pred_check_branch
      %43 = sbr.rel (0) target = $region25
    $region24: #{tpu_custom_call.1} parent=1 // pred_region
      _
    $region25: #{tpu_custom_call.1} parent=1 // pred_fallthru
      _
    // Predicated region
    $region26: #{tpu_custom_call.1} parent=1 // pred_check
      _
    $region27: #{tpu_custom_call.1} parent=1 // pred_check_branch
      %45 = sbr.rel (0) target = $region29
    $region28: #{tpu_custom_call.1} parent=1 // pred_region
      _
    $region29: #{tpu_custom_call.1} parent=1 // pred_fallthru
      _
    // Predicated region
    $region30: #{tpu_custom_call.1} parent=1 // pred_check
      _
    $region31: #{tpu_custom_call.1} parent=1 // pred_check_branch
      %47 = sbr.rel (0) target = $region33
    $region32: #{tpu_custom_call.1} parent=1 // pred_region
      _
    $region33: #{tpu_custom_call.1} parent=1 // pred_fallthru
      _
    // Predicated region
    $region34: #{tpu_custom_call.1} parent=1 // pred_check
      _
    $region35: #{tpu_custom_call.1} parent=1 // pred_check_branch
      %49 = sbr.rel (0) target = $region37
    $region36: #{tpu_custom_call.1} parent=1 // pred_region
      _
    $region37: #{tpu_custom_call.1} parent=1 // pred_fallthru
      _
    // Predicated region
    $region38: #{tpu_custom_call.1} parent=1 // pred_check
      _
    $region39: #{tpu_custom_call.1} parent=1 // pred_check_branch
      %51 = sbr.rel (0) target = $region41
    $region40: #{tpu_custom_call.1} parent=1 // pred_region
      _
    $region41: #{tpu_custom_call.1} parent=1 // pred_fallthru
      _
    // Predicated region
    $region42: #{tpu_custom_call.1} parent=1 // pred_check
      _
    $region43: #{tpu_custom_call.1} parent=1 // pred_check_branch
      %53 = sbr.rel (0) target = $region45
    $region44: #{tpu_custom_call.1} parent=1 // pred_region
      _
    $region45: #{tpu_custom_call.1} parent=1 // pred_fallthru
      _
    // Predicated region
    $region46: #{tpu_custom_call.1} parent=1 // pred_check
      _
    $region47: #{tpu_custom_call.1} parent=1 // pred_check_branch
      %55 = sbr.rel (0) target = $region49
    $region48: #{tpu_custom_call.1} parent=1 // pred_region
      _
    $region49: #{tpu_custom_call.1} parent=1 // pred_fallthru
      _
    // Predicated region
    $region50: #{tpu_custom_call.1} parent=1 // pred_check
      _
    $region51: #{tpu_custom_call.1} parent=1 // pred_check_branch
      %57 = sbr.rel (0) target = $region53
    $region52: #{tpu_custom_call.1} parent=1 // pred_region
      _
    $region53: #{tpu_custom_call.1} parent=1 // pred_fallthru
      _
    // Predicated region
    $region54: #{tpu_custom_call.1} parent=1 // pred_check
      _
    $region55: #{tpu_custom_call.1} parent=1 // pred_check_branch
      %59 = sbr.rel (0) target = $region57
    $region56: #{tpu_custom_call.1} parent=1 // pred_region
      _
    $region57: #{tpu_custom_call.1} parent=1 // pred_fallthru
      _
    // Predicated region
    $region58: #{tpu_custom_call.1} parent=1 // pred_check
      _
    $region59: #{tpu_custom_call.1} parent=1 // pred_check_branch
      %61 = sbr.rel (0) target = $region61
    $region60: #{tpu_custom_call.1} parent=1 // pred_region
      _
    $region61: #{tpu_custom_call.1} parent=1 // pred_fallthru
      _
    // Predicated region
    $region62: #{tpu_custom_call.1} parent=1 // pred_check
      _
    $region63: #{tpu_custom_call.1} parent=1 // pred_check_branch
      %63 = sbr.rel (0) target = $region65
    $region64: #{tpu_custom_call.1} parent=1 // pred_region
      _
    $region65: #{tpu_custom_call.1} parent=1 // pred_fallthru
      _
    // Predicated region
    $region66: #{tpu_custom_call.1} parent=1 // pred_check
      _
    $region67: #{tpu_custom_call.1} parent=1 // pred_check_branch
      %65 = sbr.rel (0) target = $region69
    $region68: #{tpu_custom_call.1} parent=1 // pred_region
      %66 = dma.done [#allocation4], 64
    $region69: #{tpu_custom_call.1} parent=1 // pred_fallthru
      _
    %v68 = vld [vmem:[%s0] sm:$0xff]
    %v69 = vld [vmem:[%s0 + $0x8] sm:$0xff]
    %v70 = vld [vmem:[%s0 + $0x10] sm:$0xff]
    %v71 = vld [vmem:[%s0 + $0x18] sm:$0xff]
    %v72 = vld [vmem:[%s0 + $0x20] sm:$0xff]
    %v73 = vld [vmem:[%s0 + $0x28] sm:$0xff]
    %v74 = vld [vmem:[%s0 + $0x30] sm:$0xff]
    %v75 = vld [vmem:[%s0 + $0x38] sm:$0xff]
    %v76 = vpack.c.bf16 %v69, %v68
    %v77 = vpack.c.bf16 %v71, %v70
    %v78 = vpack.c.bf16 %v73, %v72
    %v79 = vpack.c.bf16 %v75, %v74
    %v80 = vld [vmem:[#allocation3] sm:$0x7]
    %v81 = vld [vmem:[%s3] sm:$0xf]
    %v82 = vld [vmem:[%s3 + $0x4] sm:$0xf]
    %v83 = vld [vmem:[%s3 + $0x8] sm:$0xf]
    %v84 = vld [vmem:[%s3 + $0xc] sm:$0xf]
    %v85 = vld [vmem:[%s4] sm:$0x1]
    %v86 = vld [vmem:[%s5] sm:$0x1]
    %v87 = vadd.f32 %v85, %v86
    %vm88 = vcmask 523264
    %v89 = vsel %vm88, %v87, %v85
    %v91 = vlaneseq
    %v92 = vshrl.u32 %v91, 7
    %v93 = vsub.s32 0, %v92
    %v94 = vrot.slane %v86, %v93
    %v96 = vlaneseq
    %v97 = vshrl.u32 %v96, 7
    %v98 = vsub.s32 0, %v97
    %v99 = vrot.slane %v89, %v98
    %vm100 = vcmask 39936
    %v102 = vsel %vm100, %v76, 0
    %v105 = vsel %vm100, %v77, 0
    %v108 = vsel %vm100, %v78, 0
    %v111 = vsel %vm100, %v79, 0
    %vm113 = vcmask 1041408
    %vm114 = vcmask 1042432
    %v115 = vsel %vm113, 4294967295, 65535
    %v116 = vsel %vm114, %v115, 0
    %v118 = vand.u32 %v80, %v116
    %120 = vmatprep.subr.bf16.mxu0 0
    %121 = vmatpush1.bf16.msra.mxu0 %v118
    %122 = vmatprep.subr.bf16.mxu0 0
    %123 = vmatpush1.bf16.msra.mxu0 0
    %124 = vmatprep.subr.bf16.mxu0 0
    %125 = vmatpush1.bf16.msra.mxu0 0
    %126 = vmatprep.subr.bf16.mxu0 0
    %127 = vmatpush1.bf16.msra.mxu0 0
    %128 = vmatprep.subr.bf16.mxu0 0
    %129 = vmatpush1.bf16.msra.mxu0 0
    %130 = vmatprep.subr.bf16.mxu0 0
    %131 = vmatpush1.bf16.msra.mxu0 0
    %132 = vmatprep.subr.bf16.mxu0 0
    %133 = vmatpush1.bf16.msra.mxu0 0
    %134 = vmatprep.subr.bf16.mxu0 0
    %135 = vmatpush1.bf16.msra.mxu0 0
    %136 = vmatprep.subr.bf16.mxu0 0
    %137 = vmatpush1.bf16.msra.mxu0 0
    %138 = vmatprep.subr.bf16.mxu0 0
    %139 = vmatpush1.bf16.msra.mxu0 0
    %140 = vmatprep.subr.bf16.mxu0 0
    %141 = vmatpush1.bf16.msra.mxu0 0
    %142 = vmatprep.subr.bf16.mxu0 0
    %143 = vmatpush1.bf16.msra.mxu0 0
    %144 = vmatprep.subr.bf16.mxu0 0
    %145 = vmatpush1.bf16.msra.mxu0 0
    %146 = vmatprep.subr.bf16.mxu0 0
    %147 = vmatpush1.bf16.msra.mxu0 0
    %148 = vmatprep.subr.bf16.mxu0 0
    %149 = vmatpush1.bf16.msra.mxu0 0
    %150 = vmatprep.subr.bf16.mxu0 0
    %151 = vmatpush1.bf16.msra.mxu0 0
    %152 = vmatprep.mubr.bf16.mxu0 0
    %153 = vmatmul.mubr.bf16.gmra.mrb[0].mxu0 %v102
    %v154 = vpop.f32.mrb[0].mxu0
    %v155 = vadd.f32 %v99, %v154
    %v156 = vpop.f32.mrb[0].mxu0
    %v157 = vpop.f32.mrb[0].mxu0
    %v158 = vadd.f32 %v99, %v157
    %v159 = vpop.f32.mrb[0].mxu0
    %160 = vmatprep.mubr.bf16.mxu0 0
    %161 = vmatmul.mubr.bf16.gmra.mrb[0].mxu0 %v105
    %v162 = vpop.f32.mrb[0].mxu0
    %v163 = vadd.f32 %v99, %v162
    %v164 = vpop.f32.mrb[0].mxu0
    %v165 = vpop.f32.mrb[0].mxu0
    %v166 = vadd.f32 %v99, %v165
    %v167 = vpop.f32.mrb[0].mxu0
    %168 = vmatprep.mubr.bf16.mxu0 0
    %169 = vmatmul.mubr.bf16.gmra.mrb[0].mxu0 %v108
    %v170 = vpop.f32.mrb[0].mxu0
    %v171 = vadd.f32 %v99, %v170
    %v172 = vpop.f32.mrb[0].mxu0
    %v173 = vpop.f32.mrb[0].mxu0
    %v174 = vadd.f32 %v99, %v173
    %v175 = vpop.f32.mrb[0].mxu0
    %176 = vmatprep.mubr.bf16.mxu0 0
    %177 = vmatmul.mubr.bf16.gmra.mrb[0].mxu0 %v111
    %v178 = vpop.f32.mrb[0].mxu0
    %v179 = vadd.f32 %v99, %v178
    %v180 = vpop.f32.mrb[0].mxu0
    %v181 = vpop.f32.mrb[0].mxu0
    %v182 = vadd.f32 %v99, %v181
    %v183 = vpop.f32.mrb[0].mxu0
    %184 = vdwg.mxu0
    %v185 = vld [vmem:[%s1] sm:$0xff]
    %v186 = vpack.c.bf16 %v185, %v185
    %v191 = vunpack.c.l.b16 %v81
    %v192 = vunpack.c.l.b16 %v82
    %v193 = vunpack.c.l.b16 %v83
    %v194 = vunpack.c.l.b16 %v84
    %v195 = vpack.c.b16 %v192, %v191
    %v196 = vpack.c.b16 %v194, %v193
    %vm199 = vcmask 261120
    %v201 = vsel %vm199, %v186, 0
    %203 = vmatprep.subr.bf16.mxu0 0
    %204 = vmatpush1.bf16.msra.mxu0 %v195
    %205 = vmatprep.subr.bf16.mxu0 0
    %206 = vmatpush1.bf16.msra.mxu0 %v196
    %207 = vmatprep.subr.bf16.mxu0 0
    %208 = vmatpush1.bf16.msra.mxu0 0
    %209 = vmatprep.subr.bf16.mxu0 0
    %210 = vmatpush1.bf16.msra.mxu0 0
    %211 = vmatprep.subr.bf16.mxu0 0
    %212 = vmatpush1.bf16.msra.mxu0 0
    %213 = vmatprep.subr.bf16.mxu0 0
    %214 = vmatpush1.bf16.msra.mxu0 0
    %215 = vmatprep.subr.bf16.mxu0 0
    %216 = vmatpush1.bf16.msra.mxu0 0
    %217 = vmatprep.subr.bf16.mxu0 0
    %218 = vmatpush1.bf16.msra.mxu0 0
    %219 = vmatprep.subr.bf16.mxu0 0
    %220 = vmatpush1.bf16.msra.mxu0 0
    %221 = vmatprep.subr.bf16.mxu0 0
    %222 = vmatpush1.bf16.msra.mxu0 0
    %223 = vmatprep.subr.bf16.mxu0 0
    %224 = vmatpush1.bf16.msra.mxu0 0
    %225 = vmatprep.subr.bf16.mxu0 0
    %226 = vmatpush1.bf16.msra.mxu0 0
    %227 = vmatprep.subr.bf16.mxu0 0
    %228 = vmatpush1.bf16.msra.mxu0 0
    %229 = vmatprep.subr.bf16.mxu0 0
    %230 = vmatpush1.bf16.msra.mxu0 0
    %231 = vmatprep.subr.bf16.mxu0 0
    %232 = vmatpush1.bf16.msra.mxu0 0
    %233 = vmatprep.subr.bf16.mxu0 0
    %234 = vmatpush1.bf16.msra.mxu0 0
    %235 = vmatprep.mubr.bf16.mxu0 0
    %236 = vmatmul.mubr.bf16.gmra.mrb[0].mxu0 %v201
    %v237 = vpop.f32.mrb[0].mxu0
    %v238 = vadd.f32 0.0, %v237
    %v239 = vpop.f32.mrb[0].mxu0
    %v240 = vpop.f32.mrb[0].mxu0
    %v241 = vpop.f32.mrb[0].mxu0
    %242 = vdwg.mxu0
    %v243 = vadd.f32 %v155, %v238
    %v244 = vxor.u32 %v243, 2147483648
    %v245 = vmul.f32 %v244, 1.442695
    %v246 = vpow.pop %v245
    %v247 = vadd.f32 %v246, 1.0
    %v248 = vrcp.pop %v247
    %v249 = vmul.f32 1.0, %v248
    %v250 = vadd.f32 %v238, %v94
    %252 = vrot.lane.b32.xlu0 %v250, 64
    %v253 = vpop.permute.xlu0 %252
    %v255 = vmul.f32 %v249, %v253
    %257 = vrot.lane.b32.xlu0 %v255, 64
    %v258 = vpop.permute.xlu0 %257
    %v260 = vadd.f32 %v155, %v258
    %v261 = vtanh.pop %v260
    %v262 = vsub.f32 1.0, %v249
    %264 = vrot.lane.b32.xlu0 %v261, 96
    %v265 = vpop.permute.xlu0 %264
    %v267 = vmul.f32 %v262, %v265
    %269 = vrot.lane.b32.xlu0 %v185, 32
    %v270 = vpop.permute.xlu0 %269
    %v272 = vmul.f32 %v249, %v270
    %v273 = vadd.f32 %v267, %v272
    %v274 = vpack.c.bf16 %v273, %v273
    %276 = vrot.lane.b32.xlu0 %v274, 96
    %v277 = vpop.permute.xlu0 %276
    %v279 = vsel %vm199, %v277, 0
    %281 = vmatprep.subr.bf16.mxu0 0
    %282 = vmatpush1.bf16.msra.mxu0 %v195
    %283 = vmatprep.subr.bf16.mxu0 0
    %284 = vmatpush1.bf16.msra.mxu0 %v196
    %285 = vmatprep.subr.bf16.mxu0 0
    %286 = vmatpush1.bf16.msra.mxu0 0
    %287 = vmatprep.subr.bf16.mxu0 0
    %288 = vmatpush1.bf16.msra.mxu0 0
    %289 = vmatprep.subr.bf16.mxu0 0
    %290 = vmatpush1.bf16.msra.mxu0 0
    %291 = vmatprep.subr.bf16.mxu0 0
    %292 = vmatpush1.bf16.msra.mxu0 0
    %293 = vmatprep.subr.bf16.mxu0 0
    %294 = vmatpush1.bf16.msra.mxu0 0
    %295 = vmatprep.subr.bf16.mxu0 0
    %296 = vmatpush1.bf16.msra.mxu0 0
    %297 = vmatprep.subr.bf16.mxu0 0
    %298 = vmatpush1.bf16.msra.mxu0 0
    %299 = vmatprep.subr.bf16.mxu0 0
    %300 = vmatpush1.bf16.msra.mxu0 0
    %301 = vmatprep.subr.bf16.mxu0 0
    %302 = vmatpush1.bf16.msra.mxu0 0
    %303 = vmatprep.subr.bf16.mxu0 0
    %304 = vmatpush1.bf16.msra.mxu0 0
    %305 = vmatprep.subr.bf16.mxu0 0
    %306 = vmatpush1.bf16.msra.mxu0 0
    %307 = vmatprep.subr.bf16.mxu0 0
    %308 = vmatpush1.bf16.msra.mxu0 0
    %309 = vmatprep.subr.bf16.mxu0 0
    %310 = vmatpush1.bf16.msra.mxu0 0
    %311 = vmatprep.subr.bf16.mxu0 0
    %312 = vmatpush1.bf16.msra.mxu0 0
    %313 = vmatprep.mubr.bf16.mxu0 0
    %314 = vmatmul.mubr.bf16.gmra.mrb[0].mxu0 %v279
    %v315 = vpop.f32.mrb[0].mxu0
    %v316 = vadd.f32 0.0, %v315
    %v317 = vpop.f32.mrb[0].mxu0
    %v318 = vpop.f32.mrb[0].mxu0
    %v319 = vpop.f32.mrb[0].mxu0
    %320 = vdwg.mxu0
    %v321 = vadd.f32 %v158, %v316
    %v322 = vxor.u32 %v321, 2147483648
    %v323 = vmul.f32 %v322, 1.442695
    %v324 = vpow.pop %v323
    %v325 = vadd.f32 %v324, 1.0
    %v326 = vrcp.pop %v325
    %v327 = vmul.f32 1.0, %v326
    %v328 = vadd.f32 %v316, %v94
    %330 = vrot.lane.b32.xlu0 %v328, 64
    %v331 = vpop.permute.xlu0 %330
    %v333 = vmul.f32 %v327, %v331
    %335 = vrot.lane.b32.xlu0 %v333, 64
    %v336 = vpop.permute.xlu0 %335
    %v338 = vadd.f32 %v158, %v336
    %v339 = vtanh.pop %v338
    %v340 = vsub.f32 1.0, %v327
    %342 = vrot.lane.b32.xlu0 %v339, 96
    %v343 = vpop.permute.xlu0 %342
    %v345 = vmul.f32 %v340, %v343
    %v346 = vmul.f32 %v327, %v273
    %v347 = vadd.f32 %v345, %v346
    %v348 = vpack.c.bf16 %v347, %v347
    %350 = vrot.lane.b32.xlu0 %v348, 96
    %v351 = vpop.permute.xlu0 %350
    %v353 = vsel %vm199, %v351, 0
    %355 = vmatprep.subr.bf16.mxu0 0
    %356 = vmatpush1.bf16.msra.mxu0 %v195
    %357 = vmatprep.subr.bf16.mxu0 0
    %358 = vmatpush1.bf16.msra.mxu0 %v196
    %359 = vmatprep.subr.bf16.mxu0 0
    %360 = vmatpush1.bf16.msra.mxu0 0
    %361 = vmatprep.subr.bf16.mxu0 0
    %362 = vmatpush1.bf16.msra.mxu0 0
    %363 = vmatprep.subr.bf16.mxu0 0
    %364 = vmatpush1.bf16.msra.mxu0 0
    %365 = vmatprep.subr.bf16.mxu0 0
    %366 = vmatpush1.bf16.msra.mxu0 0
    %367 = vmatprep.subr.bf16.mxu0 0
    %368 = vmatpush1.bf16.msra.mxu0 0
    %369 = vmatprep.subr.bf16.mxu0 0
    %370 = vmatpush1.bf16.msra.mxu0 0
    %371 = vmatprep.subr.bf16.mxu0 0
    %372 = vmatpush1.bf16.msra.mxu0 0
    %373 = vmatprep.subr.bf16.mxu0 0
    %374 = vmatpush1.bf16.msra.mxu0 0
    %375 = vmatprep.subr.bf16.mxu0 0
    %376 = vmatpush1.bf16.msra.mxu0 0
    %377 = vmatprep.subr.bf16.mxu0 0
    %378 = vmatpush1.bf16.msra.mxu0 0
    %379 = vmatprep.subr.bf16.mxu0 0
    %380 = vmatpush1.bf16.msra.mxu0 0
    %381 = vmatprep.subr.bf16.mxu0 0
    %382 = vmatpush1.bf16.msra.mxu0 0
    %383 = vmatprep.subr.bf16.mxu0 0
    %384 = vmatpush1.bf16.msra.mxu0 0
    %385 = vmatprep.subr.bf16.mxu0 0
    %386 = vmatpush1.bf16.msra.mxu0 0
    %387 = vmatprep.mubr.bf16.mxu0 0
    %388 = vmatmul.mubr.bf16.gmra.mrb[0].mxu0 %v353
    %v389 = vpop.f32.mrb[0].mxu0
    %v390 = vadd.f32 0.0, %v389
    %v391 = vpop.f32.mrb[0].mxu0
    %v392 = vpop.f32.mrb[0].mxu0
    %v393 = vpop.f32.mrb[0].mxu0
    %394 = vdwg.mxu0
    %v395 = vadd.f32 %v163, %v390
    %v396 = vxor.u32 %v395, 2147483648
    %v397 = vmul.f32 %v396, 1.442695
    %v398 = vpow.pop %v397
    %v399 = vadd.f32 %v398, 1.0
    %v400 = vrcp.pop %v399
    %v401 = vmul.f32 1.0, %v400
    %v402 = vadd.f32 %v390, %v94
    %404 = vrot.lane.b32.xlu0 %v402, 64
    %v405 = vpop.permute.xlu0 %404
    %v407 = vmul.f32 %v401, %v405
    %409 = vrot.lane.b32.xlu0 %v407, 64
    %v410 = vpop.permute.xlu0 %409
    %v412 = vadd.f32 %v163, %v410
    %v413 = vtanh.pop %v412
    %v414 = vsub.f32 1.0, %v401
    %416 = vrot.lane.b32.xlu0 %v413, 96
    %v417 = vpop.permute.xlu0 %416
    %v419 = vmul.f32 %v414, %v417
    %v420 = vmul.f32 %v401, %v347
    %v421 = vadd.f32 %v419, %v420
    %v422 = vpack.c.bf16 %v421, %v421
    %424 = vrot.lane.b32.xlu0 %v422, 96
    %v425 = vpop.permute.xlu0 %424
    %v427 = vsel %vm199, %v425, 0
    %429 = vmatprep.subr.bf16.mxu0 0
    %430 = vmatpush1.bf16.msra.mxu0 %v195
    %431 = vmatprep.subr.bf16.mxu0 0
    %432 = vmatpush1.bf16.msra.mxu0 %v196
    %433 = vmatprep.subr.bf16.mxu0 0
    %434 = vmatpush1.bf16.msra.mxu0 0
    %435 = vmatprep.subr.bf16.mxu0 0
    %436 = vmatpush1.bf16.msra.mxu0 0
    %437 = vmatprep.subr.bf16.mxu0 0
    %438 = vmatpush1.bf16.msra.mxu0 0
    %439 = vmatprep.subr.bf16.mxu0 0
    %440 = vmatpush1.bf16.msra.mxu0 0
    %441 = vmatprep.subr.bf16.mxu0 0
    %442 = vmatpush1.bf16.msra.mxu0 0
    %443 = vmatprep.subr.bf16.mxu0 0
    %444 = vmatpush1.bf16.msra.mxu0 0
    %445 = vmatprep.subr.bf16.mxu0 0
    %446 = vmatpush1.bf16.msra.mxu0 0
    %447 = vmatprep.subr.bf16.mxu0 0
    %448 = vmatpush1.bf16.msra.mxu0 0
    %449 = vmatprep.subr.bf16.mxu0 0
    %450 = vmatpush1.bf16.msra.mxu0 0
    %451 = vmatprep.subr.bf16.mxu0 0
    %452 = vmatpush1.bf16.msra.mxu0 0
    %453 = vmatprep.subr.bf16.mxu0 0
    %454 = vmatpush1.bf16.msra.mxu0 0
    %455 = vmatprep.subr.bf16.mxu0 0
    %456 = vmatpush1.bf16.msra.mxu0 0
    %457 = vmatprep.subr.bf16.mxu0 0
    %458 = vmatpush1.bf16.msra.mxu0 0
    %459 = vmatprep.subr.bf16.mxu0 0
    %460 = vmatpush1.bf16.msra.mxu0 0
    %461 = vmatprep.mubr.bf16.mxu0 0
    %462 = vmatmul.mubr.bf16.gmra.mrb[0].mxu0 %v427
    %v463 = vpop.f32.mrb[0].mxu0
    %v464 = vadd.f32 0.0, %v463
    %v465 = vpop.f32.mrb[0].mxu0
    %v466 = vpop.f32.mrb[0].mxu0
    %v467 = vpop.f32.mrb[0].mxu0
    %468 = vdwg.mxu0
    %v469 = vadd.f32 %v166, %v464
    %v470 = vxor.u32 %v469, 2147483648
    %v471 = vmul.f32 %v470, 1.442695
    %v472 = vpow.pop %v471
    %v473 = vadd.f32 %v472, 1.0
    %v474 = vrcp.pop %v473
    %v475 = vmul.f32 1.0, %v474
    %v476 = vadd.f32 %v464, %v94
    %478 = vrot.lane.b32.xlu0 %v476, 64
    %v479 = vpop.permute.xlu0 %478
    %v481 = vmul.f32 %v475, %v479
    %483 = vrot.lane.b32.xlu0 %v481, 64
    %v484 = vpop.permute.xlu0 %483
    %v486 = vadd.f32 %v166, %v484
    %v487 = vtanh.pop %v486
    %v488 = vsub.f32 1.0, %v475
    %490 = vrot.lane.b32.xlu0 %v487, 96
    %v491 = vpop.permute.xlu0 %490
    %v493 = vmul.f32 %v488, %v491
    %v494 = vmul.f32 %v475, %v421
    %v495 = vadd.f32 %v493, %v494
    %v496 = vpack.c.bf16 %v495, %v495
    %498 = vrot.lane.b32.xlu0 %v496, 96
    %v499 = vpop.permute.xlu0 %498
    %v501 = vsel %vm199, %v499, 0
    %503 = vmatprep.subr.bf16.mxu0 0
    %504 = vmatpush1.bf16.msra.mxu0 %v195
    %505 = vmatprep.subr.bf16.mxu0 0
    %506 = vmatpush1.bf16.msra.mxu0 %v196
    %507 = vmatprep.subr.bf16.mxu0 0
    %508 = vmatpush1.bf16.msra.mxu0 0
    %509 = vmatprep.subr.bf16.mxu0 0
    %510 = vmatpush1.bf16.msra.mxu0 0
    %511 = vmatprep.subr.bf16.mxu0 0
    %512 = vmatpush1.bf16.msra.mxu0 0
    %513 = vmatprep.subr.bf16.mxu0 0
    %514 = vmatpush1.bf16.msra.mxu0 0
    %515 = vmatprep.subr.bf16.mxu0 0
    %516 = vmatpush1.bf16.msra.mxu0 0
    %517 = vmatprep.subr.bf16.mxu0 0
    %518 = vmatpush1.bf16.msra.mxu0 0
    %519 = vmatprep.subr.bf16.mxu0 0
    %520 = vmatpush1.bf16.msra.mxu0 0
    %521 = vmatprep.subr.bf16.mxu0 0
    %522 = vmatpush1.bf16.msra.mxu0 0
    %523 = vmatprep.subr.bf16.mxu0 0
    %524 = vmatpush1.bf16.msra.mxu0 0
    %525 = vmatprep.subr.bf16.mxu0 0
    %526 = vmatpush1.bf16.msra.mxu0 0
    %527 = vmatprep.subr.bf16.mxu0 0
    %528 = vmatpush1.bf16.msra.mxu0 0
    %529 = vmatprep.subr.bf16.mxu0 0
    %530 = vmatpush1.bf16.msra.mxu0 0
    %531 = vmatprep.subr.bf16.mxu0 0
    %532 = vmatpush1.bf16.msra.mxu0 0
    %533 = vmatprep.subr.bf16.mxu0 0
    %534 = vmatpush1.bf16.msra.mxu0 0
    %535 = vmatprep.mubr.bf16.mxu0 0
    %536 = vmatmul.mubr.bf16.gmra.mrb[0].mxu0 %v501
    %v537 = vpop.f32.mrb[0].mxu0
    %v538 = vadd.f32 0.0, %v537
    %v539 = vpop.f32.mrb[0].mxu0
    %v540 = vpop.f32.mrb[0].mxu0
    %v541 = vpop.f32.mrb[0].mxu0
    %542 = vdwg.mxu0
    %v543 = vadd.f32 %v171, %v538
    %v544 = vxor.u32 %v543, 2147483648
    %v545 = vmul.f32 %v544, 1.442695
    %v546 = vpow.pop %v545
    %v547 = vadd.f32 %v546, 1.0
    %v548 = vrcp.pop %v547
    %v549 = vmul.f32 1.0, %v548
    %v550 = vadd.f32 %v538, %v94
    %552 = vrot.lane.b32.xlu0 %v550, 64
    %v553 = vpop.permute.xlu0 %552
    %v555 = vmul.f32 %v549, %v553
    %557 = vrot.lane.b32.xlu0 %v555, 64
    %v558 = vpop.permute.xlu0 %557
    %v560 = vadd.f32 %v171, %v558
    %v561 = vtanh.pop %v560
    %v562 = vsub.f32 1.0, %v549
    %564 = vrot.lane.b32.xlu0 %v561, 96
    %v565 = vpop.permute.xlu0 %564
    %v567 = vmul.f32 %v562, %v565
    %v568 = vmul.f32 %v549, %v495
    %v569 = vadd.f32 %v567, %v568
    %v570 = vpack.c.bf16 %v569, %v569
    %572 = vrot.lane.b32.xlu0 %v570, 96
    %v573 = vpop.permute.xlu0 %572
    %v575 = vsel %vm199, %v573, 0
    %577 = vmatprep.subr.bf16.mxu0 0
    %578 = vmatpush1.bf16.msra.mxu0 %v195
    %579 = vmatprep.subr.bf16.mxu0 0
    %580 = vmatpush1.bf16.msra.mxu0 %v196
    %581 = vmatprep.subr.bf16.mxu0 0
    %582 = vmatpush1.bf16.msra.mxu0 0
    %583 = vmatprep.subr.bf16.mxu0 0
    %584 = vmatpush1.bf16.msra.mxu0 0
    %585 = vmatprep.subr.bf16.mxu0 0
    %586 = vmatpush1.bf16.msra.mxu0 0
    %587 = vmatprep.subr.bf16.mxu0 0
    %588 = vmatpush1.bf16.msra.mxu0 0
    %589 = vmatprep.subr.bf16.mxu0 0
    %590 = vmatpush1.bf16.msra.mxu0 0
    %591 = vmatprep.subr.bf16.mxu0 0
    %592 = vmatpush1.bf16.msra.mxu0 0
    %593 = vmatprep.subr.bf16.mxu0 0
    %594 = vmatpush1.bf16.msra.mxu0 0
    %595 = vmatprep.subr.bf16.mxu0 0
    %596 = vmatpush1.bf16.msra.mxu0 0
    %597 = vmatprep.subr.bf16.mxu0 0
    %598 = vmatpush1.bf16.msra.mxu0 0
    %599 = vmatprep.subr.bf16.mxu0 0
    %600 = vmatpush1.bf16.msra.mxu0 0
    %601 = vmatprep.subr.bf16.mxu0 0
    %602 = vmatpush1.bf16.msra.mxu0 0
    %603 = vmatprep.subr.bf16.mxu0 0
    %604 = vmatpush1.bf16.msra.mxu0 0
    %605 = vmatprep.subr.bf16.mxu0 0
    %606 = vmatpush1.bf16.msra.mxu0 0
    %607 = vmatprep.subr.bf16.mxu0 0
    %608 = vmatpush1.bf16.msra.mxu0 0
    %609 = vmatprep.mubr.bf16.mxu0 0
    %610 = vmatmul.mubr.bf16.gmra.mrb[0].mxu0 %v575
    %v611 = vpop.f32.mrb[0].mxu0
    %v612 = vadd.f32 0.0, %v611
    %v613 = vpop.f32.mrb[0].mxu0
    %v614 = vpop.f32.mrb[0].mxu0
    %v615 = vpop.f32.mrb[0].mxu0
    %616 = vdwg.mxu0
    %v617 = vadd.f32 %v174, %v612
    %v618 = vxor.u32 %v617, 2147483648
    %v619 = vmul.f32 %v618, 1.442695
    %v620 = vpow.pop %v619
    %v621 = vadd.f32 %v620, 1.0
    %v622 = vrcp.pop %v621
    %v623 = vmul.f32 1.0, %v622
    %v624 = vadd.f32 %v612, %v94
    %626 = vrot.lane.b32.xlu0 %v624, 64
    %v627 = vpop.permute.xlu0 %626
    %v629 = vmul.f32 %v623, %v627
    %631 = vrot.lane.b32.xlu0 %v629, 64
    %v632 = vpop.permute.xlu0 %631
    %v634 = vadd.f32 %v174, %v632
    %v635 = vtanh.pop %v634
    %v636 = vsub.f32 1.0, %v623
    %638 = vrot.lane.b32.xlu0 %v635, 96
    %v639 = vpop.permute.xlu0 %638
    %v641 = vmul.f32 %v636, %v639
    %v642 = vmul.f32 %v623, %v569
    %v643 = vadd.f32 %v641, %v642
    %v644 = vpack.c.bf16 %v643, %v643
    %646 = vrot.lane.b32.xlu0 %v644, 96
    %v647 = vpop.permute.xlu0 %646
    %v649 = vsel %vm199, %v647, 0
    %651 = vmatprep.subr.bf16.mxu0 0
    %652 = vmatpush1.bf16.msra.mxu0 %v195
    %653 = vmatprep.subr.bf16.mxu0 0
    %654 = vmatpush1.bf16.msra.mxu0 %v196
    %655 = vmatprep.subr.bf16.mxu0 0
    %656 = vmatpush1.bf16.msra.mxu0 0
    %657 = vmatprep.subr.bf16.mxu0 0
    %658 = vmatpush1.bf16.msra.mxu0 0
    %659 = vmatprep.subr.bf16.mxu0 0
    %660 = vmatpush1.bf16.msra.mxu0 0
    %661 = vmatprep.subr.bf16.mxu0 0
    %662 = vmatpush1.bf16.msra.mxu0 0
    %663 = vmatprep.subr.bf16.mxu0 0
    %664 = vmatpush1.bf16.msra.mxu0 0
    %665 = vmatprep.subr.bf16.mxu0 0
    %666 = vmatpush1.bf16.msra.mxu0 0
    %667 = vmatprep.subr.bf16.mxu0 0
    %668 = vmatpush1.bf16.msra.mxu0 0
    %669 = vmatprep.subr.bf16.mxu0 0
    %670 = vmatpush1.bf16.msra.mxu0 0
    %671 = vmatprep.subr.bf16.mxu0 0
    %672 = vmatpush1.bf16.msra.mxu0 0
    %673 = vmatprep.subr.bf16.mxu0 0
    %674 = vmatpush1.bf16.msra.mxu0 0
    %675 = vmatprep.subr.bf16.mxu0 0
    %676 = vmatpush1.bf16.msra.mxu0 0
    %677 = vmatprep.subr.bf16.mxu0 0
    %678 = vmatpush1.bf16.msra.mxu0 0
    %679 = vmatprep.subr.bf16.mxu0 0
    %680 = vmatpush1.bf16.msra.mxu0 0
    %681 = vmatprep.subr.bf16.mxu0 0
    %682 = vmatpush1.bf16.msra.mxu0 0
    %683 = vmatprep.mubr.bf16.mxu0 0
    %684 = vmatmul.mubr.bf16.gmra.mrb[0].mxu0 %v649
    %v685 = vpop.f32.mrb[0].mxu0
    %v686 = vadd.f32 0.0, %v685
    %v687 = vpop.f32.mrb[0].mxu0
    %v688 = vpop.f32.mrb[0].mxu0
    %v689 = vpop.f32.mrb[0].mxu0
    %690 = vdwg.mxu0
    %v691 = vadd.f32 %v179, %v686
    %v692 = vxor.u32 %v691, 2147483648
    %v693 = vmul.f32 %v692, 1.442695
    %v694 = vpow.pop %v693
    %v695 = vadd.f32 %v694, 1.0
    %v696 = vrcp.pop %v695
    %v697 = vmul.f32 1.0, %v696
    %v698 = vadd.f32 %v686, %v94
    %700 = vrot.lane.b32.xlu0 %v698, 64
    %v701 = vpop.permute.xlu0 %700
    %v703 = vmul.f32 %v697, %v701
    %705 = vrot.lane.b32.xlu0 %v703, 64
    %v706 = vpop.permute.xlu0 %705
    %v708 = vadd.f32 %v179, %v706
    %v709 = vtanh.pop %v708
    %v710 = vsub.f32 1.0, %v697
    %712 = vrot.lane.b32.xlu0 %v709, 96
    %v713 = vpop.permute.xlu0 %712
    %v715 = vmul.f32 %v710, %v713
    %v716 = vmul.f32 %v697, %v643
    %v717 = vadd.f32 %v715, %v716
    %v718 = vpack.c.bf16 %v717, %v717
    %720 = vrot.lane.b32.xlu0 %v718, 96
    %v721 = vpop.permute.xlu0 %720
    %v723 = vsel %vm199, %v721, 0
    %725 = vmatprep.subr.bf16.mxu0 0
    %726 = vmatpush1.bf16.msra.mxu0 %v195
    %727 = vmatprep.subr.bf16.mxu0 0
    %728 = vmatpush1.bf16.msra.mxu0 %v196
    %729 = vmatprep.subr.bf16.mxu0 0
    %730 = vmatpush1.bf16.msra.mxu0 0
    %731 = vmatprep.subr.bf16.mxu0 0
    %732 = vmatpush1.bf16.msra.mxu0 0
    %733 = vmatprep.subr.bf16.mxu0 0
    %734 = vmatpush1.bf16.msra.mxu0 0
    %735 = vmatprep.subr.bf16.mxu0 0
    %736 = vmatpush1.bf16.msra.mxu0 0
    %737 = vmatprep.subr.bf16.mxu0 0
    %738 = vmatpush1.bf16.msra.mxu0 0
    %739 = vmatprep.subr.bf16.mxu0 0
    %740 = vmatpush1.bf16.msra.mxu0 0
    %741 = vmatprep.subr.bf16.mxu0 0
    %742 = vmatpush1.bf16.msra.mxu0 0
    %743 = vmatprep.subr.bf16.mxu0 0
    %744 = vmatpush1.bf16.msra.mxu0 0
    %745 = vmatprep.subr.bf16.mxu0 0
    %746 = vmatpush1.bf16.msra.mxu0 0
    %747 = vmatprep.subr.bf16.mxu0 0
    %748 = vmatpush1.bf16.msra.mxu0 0
    %749 = vmatprep.subr.bf16.mxu0 0
    %750 = vmatpush1.bf16.msra.mxu0 0
    %751 = vmatprep.subr.bf16.mxu0 0
    %752 = vmatpush1.bf16.msra.mxu0 0
    %753 = vmatprep.subr.bf16.mxu0 0
    %754 = vmatpush1.bf16.msra.mxu0 0
    %755 = vmatprep.subr.bf16.mxu0 0
    %756 = vmatpush1.bf16.msra.mxu0 0
    %757 = vmatprep.mubr.bf16.mxu0 0
    %758 = vmatmul.mubr.bf16.gmra.mrb[0].mxu0 %v723
    %v759 = vpop.f32.mrb[0].mxu0
    %v760 = vadd.f32 0.0, %v759
    %v761 = vpop.f32.mrb[0].mxu0
    %v762 = vpop.f32.mrb[0].mxu0
    %v763 = vpop.f32.mrb[0].mxu0
    %764 = vdwg.mxu0
    %v765 = vadd.f32 %v182, %v760
    %v766 = vxor.u32 %v765, 2147483648
    %v767 = vmul.f32 %v766, 1.442695
    %v768 = vpow.pop %v767
    %v769 = vadd.f32 %v768, 1.0
    %v770 = vrcp.pop %v769
    %v771 = vmul.f32 1.0, %v770
    %v772 = vadd.f32 %v760, %v94
    %774 = vrot.lane.b32.xlu0 %v772, 64
    %v775 = vpop.permute.xlu0 %774
    %v777 = vmul.f32 %v771, %v775
    %779 = vrot.lane.b32.xlu0 %v777, 64
    %v780 = vpop.permute.xlu0 %779
    %v782 = vadd.f32 %v182, %v780
    %v783 = vtanh.pop %v782
    %v784 = vsub.f32 1.0, %v771
    %786 = vrot.lane.b32.xlu0 %v783, 96
    %v787 = vpop.permute.xlu0 %786
    %v789 = vmul.f32 %v784, %v787
    %v790 = vmul.f32 %v771, %v717
    %v791 = vadd.f32 %v789, %v790
    %v792 = vpack.c.bf16 %v347, %v273
    %v793 = vpack.c.bf16 %v495, %v421
    %v794 = vpack.c.bf16 %v643, %v569
    %v795 = vpack.c.bf16 %v791, %v717
    %v796 = vld [vmem:[%s6] sm:$0xf]
    %v797 = vld [vmem:[%s6 + $0x4] sm:$0xf]
    %v798 = vld [vmem:[%s6 + $0x8] sm:$0xf]
    %v799 = vld [vmem:[%s6 + $0xc] sm:$0xf]
    %v800 = vld [vmem:[%s7] sm:$0xf]
    %v801 = vld [vmem:[%s7 + $0x4] sm:$0xf]
    %v802 = vld [vmem:[%s7 + $0x8] sm:$0xf]
    %v803 = vld [vmem:[%s7 + $0xc] sm:$0xf]
    %v804 = vld [vmem:[%s8] sm:$0x1]
    %v805 = vld [vmem:[%s9] sm:$0x1]
    %v806 = vadd.f32 %v804, %v805
    %v807 = vsel %vm88, %v806, %v804
    %v809 = vlaneseq
    %v810 = vshrl.u32 %v809, 7
    %v811 = vsub.s32 0, %v810
    %v812 = vrot.slane %v805, %v811
    %v814 = vlaneseq
    %v815 = vshrl.u32 %v814, 7
    %v816 = vsub.s32 0, %v815
    %v817 = vrot.slane %v807, %v816
    %822 = vrot.lane.b32.xlu0 %v792, 96
    %v823 = vpop.permute.xlu0 %822
    %824 = vrot.lane.b32.xlu0 %v793, 96
    %v825 = vpop.permute.xlu0 %824
    %826 = vrot.lane.b32.xlu0 %v794, 96
    %v827 = vpop.permute.xlu0 %826
    %828 = vrot.lane.b32.xlu0 %v795, 96
    %v829 = vpop.permute.xlu0 %828
    %v834 = vunpack.c.l.b16 %v796
    %v835 = vunpack.c.l.b16 %v797
    %v836 = vunpack.c.l.b16 %v798
    %v837 = vunpack.c.l.b16 %v799
    %v838 = vpack.c.b16 %v835, %v834
    %v839 = vpack.c.b16 %v837, %v836
    %v843 = vsel %vm199, %v823, 0
    %v846 = vsel %vm199, %v825, 0
    %v849 = vsel %vm199, %v827, 0
    %v852 = vsel %vm199, %v829, 0
    %854 = vmatprep.subr.bf16.mxu0 0
    %855 = vmatpush1.bf16.msra.mxu0 %v838
    %856 = vmatprep.subr.bf16.mxu0 0
    %857 = vmatpush1.bf16.msra.mxu0 %v839
    %858 = vmatprep.subr.bf16.mxu0 0
    %859 = vmatpush1.bf16.msra.mxu0 0
    %860 = vmatprep.subr.bf16.mxu0 0
    %861 = vmatpush1.bf16.msra.mxu0 0
    %862 = vmatprep.subr.bf16.mxu0 0
    %863 = vmatpush1.bf16.msra.mxu0 0
    %864 = vmatprep.subr.bf16.mxu0 0
    %865 = vmatpush1.bf16.msra.mxu0 0
    %866 = vmatprep.subr.bf16.mxu0 0
    %867 = vmatpush1.bf16.msra.mxu0 0
    %868 = vmatprep.subr.bf16.mxu0 0
    %869 = vmatpush1.bf16.msra.mxu0 0
    %870 = vmatprep.subr.bf16.mxu0 0
    %871 = vmatpush1.bf16.msra.mxu0 0
    %872 = vmatprep.subr.bf16.mxu0 0
    %873 = vmatpush1.bf16.msra.mxu0 0
    %874 = vmatprep.subr.bf16.mxu0 0
    %875 = vmatpush1.bf16.msra.mxu0 0
    %876 = vmatprep.subr.bf16.mxu0 0
    %877 = vmatpush1.bf16.msra.mxu0 0
    %878 = vmatprep.subr.bf16.mxu0 0
    %879 = vmatpush1.bf16.msra.mxu0 0
    %880 = vmatprep.subr.bf16.mxu0 0
    %881 = vmatpush1.bf16.msra.mxu0 0
    %882 = vmatprep.subr.bf16.mxu0 0
    %883 = vmatpush1.bf16.msra.mxu0 0
    %884 = vmatprep.subr.bf16.mxu0 0
    %885 = vmatpush1.bf16.msra.mxu0 0
    %886 = vmatprep.mubr.bf16.mxu0 0
    %887 = vmatmul.mubr.bf16.gmra.mrb[0].mxu0 %v843
    %v888 = vpop.f32.mrb[0].mxu0
    %v889 = vadd.f32 %v817, %v888
    %v890 = vpop.f32.mrb[0].mxu0
    %v891 = vpop.f32.mrb[0].mxu0
    %v892 = vadd.f32 %v817, %v891
    %v893 = vpop.f32.mrb[0].mxu0
    %894 = vmatprep.mubr.bf16.mxu0 0
    %895 = vmatmul.mubr.bf16.gmra.mrb[0].mxu0 %v846
    %v896 = vpop.f32.mrb[0].mxu0
    %v897 = vadd.f32 %v817, %v896
    %v898 = vpop.f32.mrb[0].mxu0
    %v899 = vpop.f32.mrb[0].mxu0
    %v900 = vadd.f32 %v817, %v899
    %v901 = vpop.f32.mrb[0].mxu0
    %902 = vmatprep.mubr.bf16.mxu0 0
    %903 = vmatmul.mubr.bf16.gmra.mrb[0].mxu0 %v849
    %v904 = vpop.f32.mrb[0].mxu0
    %v905 = vadd.f32 %v817, %v904
    %v906 = vpop.f32.mrb[0].mxu0
    %v907 = vpop.f32.mrb[0].mxu0
    %v908 = vadd.f32 %v817, %v907
    %v909 = vpop.f32.mrb[0].mxu0
    %910 = vmatprep.mubr.bf16.mxu0 0
    %911 = vmatmul.mubr.bf16.gmra.mrb[0].mxu0 %v852
    %v912 = vpop.f32.mrb[0].mxu0
    %v913 = vadd.f32 %v817, %v912
    %v914 = vpop.f32.mrb[0].mxu0
    %v915 = vpop.f32.mrb[0].mxu0
    %v916 = vadd.f32 %v817, %v915
    %v917 = vpop.f32.mrb[0].mxu0
    %918 = vdwg.mxu0
    %s919 = scalar_lea.vmem %s1, 8
    %v920 = vld [vmem:[%s919] sm:$0xff]
    %v921 = vpack.c.bf16 %v920, %v920
    %v926 = vunpack.c.l.b16 %v800
    %v927 = vunpack.c.l.b16 %v801
    %v928 = vunpack.c.l.b16 %v802
    %v929 = vunpack.c.l.b16 %v803
    %v930 = vpack.c.b16 %v927, %v926
    %v931 = vpack.c.b16 %v929, %v928
    %v935 = vsel %vm199, %v921, 0
    %937 = vmatprep.subr.bf16.mxu0 0
    %938 = vmatpush1.bf16.msra.mxu0 %v930
    %939 = vmatprep.subr.bf16.mxu0 0
    %940 = vmatpush1.bf16.msra.mxu0 %v931
    %941 = vmatprep.subr.bf16.mxu0 0
    %942 = vmatpush1.bf16.msra.mxu0 0
    %943 = vmatprep.subr.bf16.mxu0 0
    %944 = vmatpush1.bf16.msra.mxu0 0
    %945 = vmatprep.subr.bf16.mxu0 0
    %946 = vmatpush1.bf16.msra.mxu0 0
    %947 = vmatprep.subr.bf16.mxu0 0
    %948 = vmatpush1.bf16.msra.mxu0 0
    %949 = vmatprep.subr.bf16.mxu0 0
    %950 = vmatpush1.bf16.msra.mxu0 0
    %951 = vmatprep.subr.bf16.mxu0 0
    %952 = vmatpush1.bf16.msra.mxu0 0
    %953 = vmatprep.subr.bf16.mxu0 0
    %954 = vmatpush1.bf16.msra.mxu0 0
    %955 = vmatprep.subr.bf16.mxu0 0
    %956 = vmatpush1.bf16.msra.mxu0 0
    %957 = vmatprep.subr.bf16.mxu0 0
    %958 = vmatpush1.bf16.msra.mxu0 0
    %959 = vmatprep.subr.bf16.mxu0 0
    %960 = vmatpush1.bf16.msra.mxu0 0
    %961 = vmatprep.subr.bf16.mxu0 0
    %962 = vmatpush1.bf16.msra.mxu0 0
    %963 = vmatprep.subr.bf16.mxu0 0
    %964 = vmatpush1.bf16.msra.mxu0 0
    %965 = vmatprep.subr.bf16.mxu0 0
    %966 = vmatpush1.bf16.msra.mxu0 0
    %967 = vmatprep.subr.bf16.mxu0 0
    %968 = vmatpush1.bf16.msra.mxu0 0
    %969 = vmatprep.mubr.bf16.mxu0 0
    %970 = vmatmul.mubr.bf16.gmra.mrb[0].mxu0 %v935
    %v971 = vpop.f32.mrb[0].mxu0
    %v972 = vadd.f32 0.0, %v971
    %v973 = vpop.f32.mrb[0].mxu0
    %v974 = vpop.f32.mrb[0].mxu0
    %v975 = vpop.f32.mrb[0].mxu0
    %976 = vdwg.mxu0
    %v977 = vadd.f32 %v889, %v972
    %v978 = vxor.u32 %v977, 2147483648
    %v979 = vmul.f32 %v978, 1.442695
    %v980 = vpow.pop %v979
    %v981 = vadd.f32 %v980, 1.0
    %v982 = vrcp.pop %v981
    %v983 = vmul.f32 1.0, %v982
    %v984 = vadd.f32 %v972, %v812
    %986 = vrot.lane.b32.xlu0 %v984, 64
    %v987 = vpop.permute.xlu0 %986
    %v989 = vmul.f32 %v983, %v987
    %991 = vrot.lane.b32.xlu0 %v989, 64
    %v992 = vpop.permute.xlu0 %991
    %v994 = vadd.f32 %v889, %v992
    %v995 = vtanh.pop %v994
    %v996 = vsub.f32 1.0, %v983
    %998 = vrot.lane.b32.xlu0 %v995, 96
    %v999 = vpop.permute.xlu0 %998
    %v1001 = vmul.f32 %v996, %v999
    %1003 = vrot.lane.b32.xlu0 %v920, 32
    %v1004 = vpop.permute.xlu0 %1003
    %v1006 = vmul.f32 %v983, %v1004
    %v1007 = vadd.f32 %v1001, %v1006
    %v1008 = vpack.c.bf16 %v1007, %v1007
    %1010 = vrot.lane.b32.xlu0 %v1008, 96
    %v1011 = vpop.permute.xlu0 %1010
    %v1013 = vsel %vm199, %v1011, 0
    %1015 = vmatprep.subr.bf16.mxu0 0
    %1016 = vmatpush1.bf16.msra.mxu0 %v930
    %1017 = vmatprep.subr.bf16.mxu0 0
    %1018 = vmatpush1.bf16.msra.mxu0 %v931
    %1019 = vmatprep.subr.bf16.mxu0 0
    %1020 = vmatpush1.bf16.msra.mxu0 0
    %1021 = vmatprep.subr.bf16.mxu0 0
    %1022 = vmatpush1.bf16.msra.mxu0 0
    %1023 = vmatprep.subr.bf16.mxu0 0
    %1024 = vmatpush1.bf16.msra.mxu0 0
    %1025 = vmatprep.subr.bf16.mxu0 0
    %1026 = vmatpush1.bf16.msra.mxu0 0
    %1027 = vmatprep.subr.bf16.mxu0 0
    %1028 = vmatpush1.bf16.msra.mxu0 0
    %1029 = vmatprep.subr.bf16.mxu0 0
    %1030 = vmatpush1.bf16.msra.mxu0 0
    %1031 = vmatprep.subr.bf16.mxu0 0
    %1032 = vmatpush1.bf16.msra.mxu0 0
    %1033 = vmatprep.subr.bf16.mxu0 0
    %1034 = vmatpush1.bf16.msra.mxu0 0
    %1035 = vmatprep.subr.bf16.mxu0 0
    %1036 = vmatpush1.bf16.msra.mxu0 0
    %1037 = vmatprep.subr.bf16.mxu0 0
    %1038 = vmatpush1.bf16.msra.mxu0 0
    %1039 = vmatprep.subr.bf16.mxu0 0
    %1040 = vmatpush1.bf16.msra.mxu0 0
    %1041 = vmatprep.subr.bf16.mxu0 0
    %1042 = vmatpush1.bf16.msra.mxu0 0
    %1043 = vmatprep.subr.bf16.mxu0 0
    %1044 = vmatpush1.bf16.msra.mxu0 0
    %1045 = vmatprep.subr.bf16.mxu0 0
    %1046 = vmatpush1.bf16.msra.mxu0 0
    %1047 = vmatprep.mubr.bf16.mxu0 0
    %1048 = vmatmul.mubr.bf16.gmra.mrb[0].mxu0 %v1013
    %v1049 = vpop.f32.mrb[0].mxu0
    %v1050 = vadd.f32 0.0, %v1049
    %v1051 = vpop.f32.mrb[0].mxu0
    %v1052 = vpop.f32.mrb[0].mxu0
    %v1053 = vpop.f32.mrb[0].mxu0
    %1054 = vdwg.mxu0
    %v1055 = vadd.f32 %v892, %v1050
    %v1056 = vxor.u32 %v1055, 2147483648
    %v1057 = vmul.f32 %v1056, 1.442695
    %v1058 = vpow.pop %v1057
    %v1059 = vadd.f32 %v1058, 1.0
    %v1060 = vrcp.pop %v1059
    %v1061 = vmul.f32 1.0, %v1060
    %v1062 = vadd.f32 %v1050, %v812
    %1064 = vrot.lane.b32.xlu0 %v1062, 64
    %v1065 = vpop.permute.xlu0 %1064
    %v1067 = vmul.f32 %v1061, %v1065
    %1069 = vrot.lane.b32.xlu0 %v1067, 64
    %v1070 = vpop.permute.xlu0 %1069
    %v1072 = vadd.f32 %v892, %v1070
    %v1073 = vtanh.pop %v1072
    %v1074 = vsub.f32 1.0, %v1061
    %1076 = vrot.lane.b32.xlu0 %v1073, 96
    %v1077 = vpop.permute.xlu0 %1076
    %v1079 = vmul.f32 %v1074, %v1077
    %v1080 = vmul.f32 %v1061, %v1007
    %v1081 = vadd.f32 %v1079, %v1080
    %v1082 = vpack.c.bf16 %v1081, %v1081
    %1084 = vrot.lane.b32.xlu0 %v1082, 96
    %v1085 = vpop.permute.xlu0 %1084
    %v1087 = vsel %vm199, %v1085, 0
    %1089 = vmatprep.subr.bf16.mxu0 0
    %1090 = vmatpush1.bf16.msra.mxu0 %v930
    %1091 = vmatprep.subr.bf16.mxu0 0
    %1092 = vmatpush1.bf16.msra.mxu0 %v931
    %1093 = vmatprep.subr.bf16.mxu0 0
    %1094 = vmatpush1.bf16.msra.mxu0 0
    %1095 = vmatprep.subr.bf16.mxu0 0
    %1096 = vmatpush1.bf16.msra.mxu0 0
    %1097 = vmatprep.subr.bf16.mxu0 0
    %1098 = vmatpush1.bf16.msra.mxu0 0
    %1099 = vmatprep.subr.bf16.mxu0 0
    %1100 = vmatpush1.bf16.msra.mxu0 0
    %1101 = vmatprep.subr.bf16.mxu0 0
    %1102 = vmatpush1.bf16.msra.mxu0 0
    %1103 = vmatprep.subr.bf16.mxu0 0
    %1104 = vmatpush1.bf16.msra.mxu0 0
    %1105 = vmatprep.subr.bf16.mxu0 0
    %1106 = vmatpush1.bf16.msra.mxu0 0
    %1107 = vmatprep.subr.bf16.mxu0 0
    %1108 = vmatpush1.bf16.msra.mxu0 0
    %1109 = vmatprep.subr.bf16.mxu0 0
    %1110 = vmatpush1.bf16.msra.mxu0 0
    %1111 = vmatprep.subr.bf16.mxu0 0
    %1112 = vmatpush1.bf16.msra.mxu0 0
    %1113 = vmatprep.subr.bf16.mxu0 0
    %1114 = vmatpush1.bf16.msra.mxu0 0
    %1115 = vmatprep.subr.bf16.mxu0 0
    %1116 = vmatpush1.bf16.msra.mxu0 0
    %1117 = vmatprep.subr.bf16.mxu0 0
    %1118 = vmatpush1.bf16.msra.mxu0 0
    %1119 = vmatprep.subr.bf16.mxu0 0
    %1120 = vmatpush1.bf16.msra.mxu0 0
    %1121 = vmatprep.mubr.bf16.mxu0 0
    %1122 = vmatmul.mubr.bf16.gmra.mrb[0].mxu0 %v1087
    %v1123 = vpop.f32.mrb[0].mxu0
    %v1124 = vadd.f32 0.0, %v1123
    %v1125 = vpop.f32.mrb[0].mxu0
    %v1126 = vpop.f32.mrb[0].mxu0
    %v1127 = vpop.f32.mrb[0].mxu0
    %1128 = vdwg.mxu0
    %v1129 = vadd.f32 %v897, %v1124
    %v1130 = vxor.u32 %v1129, 2147483648
    %v1131 = vmul.f32 %v1130, 1.442695
    %v1132 = vpow.pop %v1131
    %v1133 = vadd.f32 %v1132, 1.0
    %v1134 = vrcp.pop %v1133
    %v1135 = vmul.f32 1.0, %v1134
    %v1136 = vadd.f32 %v1124, %v812
    %1138 = vrot.lane.b32.xlu0 %v1136, 64
    %v1139 = vpop.permute.xlu0 %1138
    %v1141 = vmul.f32 %v1135, %v1139
    %1143 = vrot.lane.b32.xlu0 %v1141, 64
    %v1144 = vpop.permute.xlu0 %1143
    %v1146 = vadd.f32 %v897, %v1144
    %v1147 = vtanh.pop %v1146
    %v1148 = vsub.f32 1.0, %v1135
    %1150 = vrot.lane.b32.xlu0 %v1147, 96
    %v1151 = vpop.permute.xlu0 %1150
    %v1153 = vmul.f32 %v1148, %v1151
    %v1154 = vmul.f32 %v1135, %v1081
    %v1155 = vadd.f32 %v1153, %v1154
    %v1156 = vpack.c.bf16 %v1155, %v1155
    %1158 = vrot.lane.b32.xlu0 %v1156, 96
    %v1159 = vpop.permute.xlu0 %1158
    %v1161 = vsel %vm199, %v1159, 0
    %1163 = vmatprep.subr.bf16.mxu0 0
    %1164 = vmatpush1.bf16.msra.mxu0 %v930
    %1165 = vmatprep.subr.bf16.mxu0 0
    %1166 = vmatpush1.bf16.msra.mxu0 %v931
    %1167 = vmatprep.subr.bf16.mxu0 0
    %1168 = vmatpush1.bf16.msra.mxu0 0
    %1169 = vmatprep.subr.bf16.mxu0 0
    %1170 = vmatpush1.bf16.msra.mxu0 0
    %1171 = vmatprep.subr.bf16.mxu0 0
    %1172 = vmatpush1.bf16.msra.mxu0 0
    %1173 = vmatprep.subr.bf16.mxu0 0
    %1174 = vmatpush1.bf16.msra.mxu0 0
    %1175 = vmatprep.subr.bf16.mxu0 0
    %1176 = vmatpush1.bf16.msra.mxu0 0
    %1177 = vmatprep.subr.bf16.mxu0 0
    %1178 = vmatpush1.bf16.msra.mxu0 0
    %1179 = vmatprep.subr.bf16.mxu0 0
    %1180 = vmatpush1.bf16.msra.mxu0 0
    %1181 = vmatprep.subr.bf16.mxu0 0
    %1182 = vmatpush1.bf16.msra.mxu0 0
    %1183 = vmatprep.subr.bf16.mxu0 0
    %1184 = vmatpush1.bf16.msra.mxu0 0
    %1185 = vmatprep.subr.bf16.mxu0 0
    %1186 = vmatpush1.bf16.msra.mxu0 0
    %1187 = vmatprep.subr.bf16.mxu0 0
    %1188 = vmatpush1.bf16.msra.mxu0 0
    %1189 = vmatprep.subr.bf16.mxu0 0
    %1190 = vmatpush1.bf16.msra.mxu0 0
    %1191 = vmatprep.subr.bf16.mxu0 0
    %1192 = vmatpush1.bf16.msra.mxu0 0
    %1193 = vmatprep.subr.bf16.mxu0 0
    %1194 = vmatpush1.bf16.msra.mxu0 0
    %1195 = vmatprep.mubr.bf16.mxu0 0
    %1196 = vmatmul.mubr.bf16.gmra.mrb[0].mxu0 %v1161
    %v1197 = vpop.f32.mrb[0].mxu0
    %v1198 = vadd.f32 0.0, %v1197
    %v1199 = vpop.f32.mrb[0].mxu0
    %v1200 = vpop.f32.mrb[0].mxu0
    %v1201 = vpop.f32.mrb[0].mxu0
    %1202 = vdwg.mxu0
    %v1203 = vadd.f32 %v900, %v1198
    %v1204 = vxor.u32 %v1203, 2147483648
    %v1205 = vmul.f32 %v1204, 1.442695
    %v1206 = vpow.pop %v1205
    %v1207 = vadd.f32 %v1206, 1.0
    %v1208 = vrcp.pop %v1207
    %v1209 = vmul.f32 1.0, %v1208
    %v1210 = vadd.f32 %v1198, %v812
    %1212 = vrot.lane.b32.xlu0 %v1210, 64
    %v1213 = vpop.permute.xlu0 %1212
    %v1215 = vmul.f32 %v1209, %v1213
    %1217 = vrot.lane.b32.xlu0 %v1215, 64
    %v1218 = vpop.permute.xlu0 %1217
    %v1220 = vadd.f32 %v900, %v1218
    %v1221 = vtanh.pop %v1220
    %v1222 = vsub.f32 1.0, %v1209
    %1224 = vrot.lane.b32.xlu0 %v1221, 96
    %v1225 = vpop.permute.xlu0 %1224
    %v1227 = vmul.f32 %v1222, %v1225
    %v1228 = vmul.f32 %v1209, %v1155
    %v1229 = vadd.f32 %v1227, %v1228
    %v1230 = vpack.c.bf16 %v1229, %v1229
    %1232 = vrot.lane.b32.xlu0 %v1230, 96
    %v1233 = vpop.permute.xlu0 %1232
    %v1235 = vsel %vm199, %v1233, 0
    %1237 = vmatprep.subr.bf16.mxu0 0
    %1238 = vmatpush1.bf16.msra.mxu0 %v930
    %1239 = vmatprep.subr.bf16.mxu0 0
    %1240 = vmatpush1.bf16.msra.mxu0 %v931
    %1241 = vmatprep.subr.bf16.mxu0 0
    %1242 = vmatpush1.bf16.msra.mxu0 0
    %1243 = vmatprep.subr.bf16.mxu0 0
    %1244 = vmatpush1.bf16.msra.mxu0 0
    %1245 = vmatprep.subr.bf16.mxu0 0
    %1246 = vmatpush1.bf16.msra.mxu0 0
    %1247 = vmatprep.subr.bf16.mxu0 0
    %1248 = vmatpush1.bf16.msra.mxu0 0
    %1249 = vmatprep.subr.bf16.mxu0 0
    %1250 = vmatpush1.bf16.msra.mxu0 0
    %1251 = vmatprep.subr.bf16.mxu0 0
    %1252 = vmatpush1.bf16.msra.mxu0 0
    %1253 = vmatprep.subr.bf16.mxu0 0
    %1254 = vmatpush1.bf16.msra.mxu0 0
    %1255 = vmatprep.subr.bf16.mxu0 0
    %1256 = vmatpush1.bf16.msra.mxu0 0
    %1257 = vmatprep.subr.bf16.mxu0 0
    %1258 = vmatpush1.bf16.msra.mxu0 0
    %1259 = vmatprep.subr.bf16.mxu0 0
    %1260 = vmatpush1.bf16.msra.mxu0 0
    %1261 = vmatprep.subr.bf16.mxu0 0
    %1262 = vmatpush1.bf16.msra.mxu0 0
    %1263 = vmatprep.subr.bf16.mxu0 0
    %1264 = vmatpush1.bf16.msra.mxu0 0
    %1265 = vmatprep.subr.bf16.mxu0 0
    %1266 = vmatpush1.bf16.msra.mxu0 0
    %1267 = vmatprep.subr.bf16.mxu0 0
    %1268 = vmatpush1.bf16.msra.mxu0 0
    %1269 = vmatprep.mubr.bf16.mxu0 0
    %1270 = vmatmul.mubr.bf16.gmra.mrb[0].mxu0 %v1235
    %v1271 = vpop.f32.mrb[0].mxu0
    %v1272 = vadd.f32 0.0, %v1271
    %v1273 = vpop.f32.mrb[0].mxu0
    %v1274 = vpop.f32.mrb[0].mxu0
    %v1275 = vpop.f32.mrb[0].mxu0
    %1276 = vdwg.mxu0
    %v1277 = vadd.f32 %v905, %v1272
    %v1278 = vxor.u32 %v1277, 2147483648
    %v1279 = vmul.f32 %v1278, 1.442695
    %v1280 = vpow.pop %v1279
    %v1281 = vadd.f32 %v1280, 1.0
    %v1282 = vrcp.pop %v1281
    %v1283 = vmul.f32 1.0, %v1282
    %v1284 = vadd.f32 %v1272, %v812
    %1286 = vrot.lane.b32.xlu0 %v1284, 64
    %v1287 = vpop.permute.xlu0 %1286
    %v1289 = vmul.f32 %v1283, %v1287
    %1291 = vrot.lane.b32.xlu0 %v1289, 64
    %v1292 = vpop.permute.xlu0 %1291
    %v1294 = vadd.f32 %v905, %v1292
    %v1295 = vtanh.pop %v1294
    %v1296 = vsub.f32 1.0, %v1283
    %1298 = vrot.lane.b32.xlu0 %v1295, 96
    %v1299 = vpop.permute.xlu0 %1298
    %v1301 = vmul.f32 %v1296, %v1299
    %v1302 = vmul.f32 %v1283, %v1229
    %v1303 = vadd.f32 %v1301, %v1302
    %v1304 = vpack.c.bf16 %v1303, %v1303
    %1306 = vrot.lane.b32.xlu0 %v1304, 96
    %v1307 = vpop.permute.xlu0 %1306
    %v1309 = vsel %vm199, %v1307, 0
    %1311 = vmatprep.subr.bf16.mxu0 0
    %1312 = vmatpush1.bf16.msra.mxu0 %v930
    %1313 = vmatprep.subr.bf16.mxu0 0
    %1314 = vmatpush1.bf16.msra.mxu0 %v931
    %1315 = vmatprep.subr.bf16.mxu0 0
    %1316 = vmatpush1.bf16.msra.mxu0 0
    %1317 = vmatprep.subr.bf16.mxu0 0
    %1318 = vmatpush1.bf16.msra.mxu0 0
    %1319 = vmatprep.subr.bf16.mxu0 0
    %1320 = vmatpush1.bf16.msra.mxu0 0
    %1321 = vmatprep.subr.bf16.mxu0 0
    %1322 = vmatpush1.bf16.msra.mxu0 0
    %1323 = vmatprep.subr.bf16.mxu0 0
    %1324 = vmatpush1.bf16.msra.mxu0 0
    %1325 = vmatprep.subr.bf16.mxu0 0
    %1326 = vmatpush1.bf16.msra.mxu0 0
    %1327 = vmatprep.subr.bf16.mxu0 0
    %1328 = vmatpush1.bf16.msra.mxu0 0
    %1329 = vmatprep.subr.bf16.mxu0 0
    %1330 = vmatpush1.bf16.msra.mxu0 0
    %1331 = vmatprep.subr.bf16.mxu0 0
    %1332 = vmatpush1.bf16.msra.mxu0 0
    %1333 = vmatprep.subr.bf16.mxu0 0
    %1334 = vmatpush1.bf16.msra.mxu0 0
    %1335 = vmatprep.subr.bf16.mxu0 0
    %1336 = vmatpush1.bf16.msra.mxu0 0
    %1337 = vmatprep.subr.bf16.mxu0 0
    %1338 = vmatpush1.bf16.msra.mxu0 0
    %1339 = vmatprep.subr.bf16.mxu0 0
    %1340 = vmatpush1.bf16.msra.mxu0 0
    %1341 = vmatprep.subr.bf16.mxu0 0
    %1342 = vmatpush1.bf16.msra.mxu0 0
    %1343 = vmatprep.mubr.bf16.mxu0 0
    %1344 = vmatmul.mubr.bf16.gmra.mrb[0].mxu0 %v1309
    %v1345 = vpop.f32.mrb[0].mxu0
    %v1346 = vadd.f32 0.0, %v1345
    %v1347 = vpop.f32.mrb[0].mxu0
    %v1348 = vpop.f32.mrb[0].mxu0
    %v1349 = vpop.f32.mrb[0].mxu0
    %1350 = vdwg.mxu0
    %v1351 = vadd.f32 %v908, %v1346
    %v1352 = vxor.u32 %v1351, 2147483648
    %v1353 = vmul.f32 %v1352, 1.442695
    %v1354 = vpow.pop %v1353
    %v1355 = vadd.f32 %v1354, 1.0
    %v1356 = vrcp.pop %v1355
    %v1357 = vmul.f32 1.0, %v1356
    %v1358 = vadd.f32 %v1346, %v812
    %1360 = vrot.lane.b32.xlu0 %v1358, 64
    %v1361 = vpop.permute.xlu0 %1360
    %v1363 = vmul.f32 %v1357, %v1361
    %1365 = vrot.lane.b32.xlu0 %v1363, 64
    %v1366 = vpop.permute.xlu0 %1365
    %v1368 = vadd.f32 %v908, %v1366
    %v1369 = vtanh.pop %v1368
    %v1370 = vsub.f32 1.0, %v1357
    %1372 = vrot.lane.b32.xlu0 %v1369, 96
    %v1373 = vpop.permute.xlu0 %1372
    %v1375 = vmul.f32 %v1370, %v1373
    %v1376 = vmul.f32 %v1357, %v1303
    %v1377 = vadd.f32 %v1375, %v1376
    %v1378 = vpack.c.bf16 %v1377, %v1377
    %1380 = vrot.lane.b32.xlu0 %v1378, 96
    %v1381 = vpop.permute.xlu0 %1380
    %v1383 = vsel %vm199, %v1381, 0
    %1385 = vmatprep.subr.bf16.mxu0 0
    %1386 = vmatpush1.bf16.msra.mxu0 %v930
    %1387 = vmatprep.subr.bf16.mxu0 0
    %1388 = vmatpush1.bf16.msra.mxu0 %v931
    %1389 = vmatprep.subr.bf16.mxu0 0
    %1390 = vmatpush1.bf16.msra.mxu0 0
    %1391 = vmatprep.subr.bf16.mxu0 0
    %1392 = vmatpush1.bf16.msra.mxu0 0
    %1393 = vmatprep.subr.bf16.mxu0 0
    %1394 = vmatpush1.bf16.msra.mxu0 0
    %1395 = vmatprep.subr.bf16.mxu0 0
    %1396 = vmatpush1.bf16.msra.mxu0 0
    %1397 = vmatprep.subr.bf16.mxu0 0
    %1398 = vmatpush1.bf16.msra.mxu0 0
    %1399 = vmatprep.subr.bf16.mxu0 0
    %1400 = vmatpush1.bf16.msra.mxu0 0
    %1401 = vmatprep.subr.bf16.mxu0 0
    %1402 = vmatpush1.bf16.msra.mxu0 0
    %1403 = vmatprep.subr.bf16.mxu0 0
    %1404 = vmatpush1.bf16.msra.mxu0 0
    %1405 = vmatprep.subr.bf16.mxu0 0
    %1406 = vmatpush1.bf16.msra.mxu0 0
    %1407 = vmatprep.subr.bf16.mxu0 0
    %1408 = vmatpush1.bf16.msra.mxu0 0
    %1409 = vmatprep.subr.bf16.mxu0 0
    %1410 = vmatpush1.bf16.msra.mxu0 0
    %1411 = vmatprep.subr.bf16.mxu0 0
    %1412 = vmatpush1.bf16.msra.mxu0 0
    %1413 = vmatprep.subr.bf16.mxu0 0
    %1414 = vmatpush1.bf16.msra.mxu0 0
    %1415 = vmatprep.subr.bf16.mxu0 0
    %1416 = vmatpush1.bf16.msra.mxu0 0
    %1417 = vmatprep.mubr.bf16.mxu0 0
    %1418 = vmatmul.mubr.bf16.gmra.mrb[0].mxu0 %v1383
    %v1419 = vpop.f32.mrb[0].mxu0
    %v1420 = vadd.f32 0.0, %v1419
    %v1421 = vpop.f32.mrb[0].mxu0
    %v1422 = vpop.f32.mrb[0].mxu0
    %v1423 = vpop.f32.mrb[0].mxu0
    %1424 = vdwg.mxu0
    %v1425 = vadd.f32 %v913, %v1420
    %v1426 = vxor.u32 %v1425, 2147483648
    %v1427 = vmul.f32 %v1426, 1.442695
    %v1428 = vpow.pop %v1427
    %v1429 = vadd.f32 %v1428, 1.0
    %v1430 = vrcp.pop %v1429
    %v1431 = vmul.f32 1.0, %v1430
    %v1432 = vadd.f32 %v1420, %v812
    %1434 = vrot.lane.b32.xlu0 %v1432, 64
    %v1435 = vpop.permute.xlu0 %1434
    %v1437 = vmul.f32 %v1431, %v1435
    %1439 = vrot.lane.b32.xlu0 %v1437, 64
    %v1440 = vpop.permute.xlu0 %1439
    %v1442 = vadd.f32 %v913, %v1440
    %v1443 = vtanh.pop %v1442
    %v1444 = vsub.f32 1.0, %v1431
    %1446 = vrot.lane.b32.xlu0 %v1443, 96
    %v1447 = vpop.permute.xlu0 %1446
    %v1449 = vmul.f32 %v1444, %v1447
    %v1450 = vmul.f32 %v1431, %v1377
    %v1451 = vadd.f32 %v1449, %v1450
    %v1452 = vpack.c.bf16 %v1451, %v1451
    %1454 = vrot.lane.b32.xlu0 %v1452, 96
    %v1455 = vpop.permute.xlu0 %1454
    %v1457 = vsel %vm199, %v1455, 0
    %1459 = vmatprep.subr.bf16.mxu0 0
    %1460 = vmatpush1.bf16.msra.mxu0 %v930
    %1461 = vmatprep.subr.bf16.mxu0 0
    %1462 = vmatpush1.bf16.msra.mxu0 %v931
    %1463 = vmatprep.subr.bf16.mxu0 0
    %1464 = vmatpush1.bf16.msra.mxu0 0
    %1465 = vmatprep.subr.bf16.mxu0 0
    %1466 = vmatpush1.bf16.msra.mxu0 0
    %1467 = vmatprep.subr.bf16.mxu0 0
    %1468 = vmatpush1.bf16.msra.mxu0 0
    %1469 = vmatprep.subr.bf16.mxu0 0
    %1470 = vmatpush1.bf16.msra.mxu0 0
    %1471 = vmatprep.subr.bf16.mxu0 0
    %1472 = vmatpush1.bf16.msra.mxu0 0
    %1473 = vmatprep.subr.bf16.mxu0 0
    %1474 = vmatpush1.bf16.msra.mxu0 0
    %1475 = vmatprep.subr.bf16.mxu0 0
    %1476 = vmatpush1.bf16.msra.mxu0 0
    %1477 = vmatprep.subr.bf16.mxu0 0
    %1478 = vmatpush1.bf16.msra.mxu0 0
    %1479 = vmatprep.subr.bf16.mxu0 0
    %1480 = vmatpush1.bf16.msra.mxu0 0
    %1481 = vmatprep.subr.bf16.mxu0 0
    %1482 = vmatpush1.bf16.msra.mxu0 0
    %1483 = vmatprep.subr.bf16.mxu0 0
    %1484 = vmatpush1.bf16.msra.mxu0 0
    %1485 = vmatprep.subr.bf16.mxu0 0
    %1486 = vmatpush1.bf16.msra.mxu0 0
    %1487 = vmatprep.subr.bf16.mxu0 0
    %1488 = vmatpush1.bf16.msra.mxu0 0
    %1489 = vmatprep.subr.bf16.mxu0 0
    %1490 = vmatpush1.bf16.msra.mxu0 0
    %1491 = vmatprep.mubr.bf16.mxu0 0
    %1492 = vmatmul.mubr.bf16.gmra.mrb[0].mxu0 %v1457
    %v1493 = vpop.f32.mrb[0].mxu0
    %v1494 = vadd.f32 0.0, %v1493
    %v1495 = vpop.f32.mrb[0].mxu0
    %v1496 = vpop.f32.mrb[0].mxu0
    %v1497 = vpop.f32.mrb[0].mxu0
    %1498 = vdwg.mxu0
    %v1499 = vadd.f32 %v916, %v1494
    %v1500 = vxor.u32 %v1499, 2147483648
    %v1501 = vmul.f32 %v1500, 1.442695
    %v1502 = vpow.pop %v1501
    %v1503 = vadd.f32 %v1502, 1.0
    %v1504 = vrcp.pop %v1503
    %v1505 = vmul.f32 1.0, %v1504
    %v1506 = vadd.f32 %v1494, %v812
    %1508 = vrot.lane.b32.xlu0 %v1506, 64
    %v1509 = vpop.permute.xlu0 %1508
    %v1511 = vmul.f32 %v1505, %v1509
    %1513 = vrot.lane.b32.xlu0 %v1511, 64
    %v1514 = vpop.permute.xlu0 %1513
    %v1516 = vadd.f32 %v916, %v1514
    %v1517 = vtanh.pop %v1516
    %v1518 = vsub.f32 1.0, %v1505
    %1520 = vrot.lane.b32.xlu0 %v1517, 96
    %v1521 = vpop.permute.xlu0 %1520
    %v1523 = vmul.f32 %v1518, %v1521
    %v1524 = vmul.f32 %v1505, %v1451
    %v1525 = vadd.f32 %v1523, %v1524
    %v1526 = vpack.c.bf16 %v1081, %v1007
    %v1527 = vpack.c.bf16 %v1229, %v1155
    %v1528 = vpack.c.bf16 %v1377, %v1303
    %v1529 = vpack.c.bf16 %v1525, %v1451
    %v1530 = vld [vmem:[%s10] sm:$0xf]
    %v1531 = vld [vmem:[%s10 + $0x4] sm:$0xf]
    %v1532 = vld [vmem:[%s10 + $0x8] sm:$0xf]
    %v1533 = vld [vmem:[%s10 + $0xc] sm:$0xf]
    %v1534 = vld [vmem:[%s11] sm:$0xf]
    %v1535 = vld [vmem:[%s11 + $0x4] sm:$0xf]
    %v1536 = vld [vmem:[%s11 + $0x8] sm:$0xf]
    %v1537 = vld [vmem:[%s11 + $0xc] sm:$0xf]
    %v1538 = vld [vmem:[%s12] sm:$0x1]
    %v1539 = vld [vmem:[%s13] sm:$0x1]
    %v1540 = vadd.f32 %v1538, %v1539
    %v1541 = vsel %vm88, %v1540, %v1538
    %v1543 = vlaneseq
    %v1544 = vshrl.u32 %v1543, 7
    %v1545 = vsub.s32 0, %v1544
    %v1546 = vrot.slane %v1539, %v1545
    %v1548 = vlaneseq
    %v1549 = vshrl.u32 %v1548, 7
    %v1550 = vsub.s32 0, %v1549
    %v1551 = vrot.slane %v1541, %v1550
    %1556 = vrot.lane.b32.xlu0 %v1526, 96
    %v1557 = vpop.permute.xlu0 %1556
    %1558 = vrot.lane.b32.xlu0 %v1527, 96
    %v1559 = vpop.permute.xlu0 %1558
    %1560 = vrot.lane.b32.xlu0 %v1528, 96
    %v1561 = vpop.permute.xlu0 %1560
    %1562 = vrot.lane.b32.xlu0 %v1529, 96
    %v1563 = vpop.permute.xlu0 %1562
    %v1568 = vunpack.c.l.b16 %v1530
    %v1569 = vunpack.c.l.b16 %v1531
    %v1570 = vunpack.c.l.b16 %v1532
    %v1571 = vunpack.c.l.b16 %v1533
    %v1572 = vpack.c.b16 %v1569, %v1568
    %v1573 = vpack.c.b16 %v1571, %v1570
    %v1577 = vsel %vm199, %v1557, 0
    %v1580 = vsel %vm199, %v1559, 0
    %v1583 = vsel %vm199, %v1561, 0
    %v1586 = vsel %vm199, %v1563, 0
    %1588 = vmatprep.subr.bf16.mxu0 0
    %1589 = vmatpush1.bf16.msra.mxu0 %v1572
    %1590 = vmatprep.subr.bf16.mxu0 0
    %1591 = vmatpush1.bf16.msra.mxu0 %v1573
    %1592 = vmatprep.subr.bf16.mxu0 0
    %1593 = vmatpush1.bf16.msra.mxu0 0
    %1594 = vmatprep.subr.bf16.mxu0 0
    %1595 = vmatpush1.bf16.msra.mxu0 0
    %1596 = vmatprep.subr.bf16.mxu0 0
    %1597 = vmatpush1.bf16.msra.mxu0 0
    %1598 = vmatprep.subr.bf16.mxu0 0
    %1599 = vmatpush1.bf16.msra.mxu0 0
    %1600 = vmatprep.subr.bf16.mxu0 0
    %1601 = vmatpush1.bf16.msra.mxu0 0
    %1602 = vmatprep.subr.bf16.mxu0 0
    %1603 = vmatpush1.bf16.msra.mxu0 0
    %1604 = vmatprep.subr.bf16.mxu0 0
    %1605 = vmatpush1.bf16.msra.mxu0 0
    %1606 = vmatprep.subr.bf16.mxu0 0
    %1607 = vmatpush1.bf16.msra.mxu0 0
    %1608 = vmatprep.subr.bf16.mxu0 0
    %1609 = vmatpush1.bf16.msra.mxu0 0
    %1610 = vmatprep.subr.bf16.mxu0 0
    %1611 = vmatpush1.bf16.msra.mxu0 0
    %1612 = vmatprep.subr.bf16.mxu0 0
    %1613 = vmatpush1.bf16.msra.mxu0 0
    %1614 = vmatprep.subr.bf16.mxu0 0
    %1615 = vmatpush1.bf16.msra.mxu0 0
    %1616 = vmatprep.subr.bf16.mxu0 0
    %1617 = vmatpush1.bf16.msra.mxu0 0
    %1618 = vmatprep.subr.bf16.mxu0 0
    %1619 = vmatpush1.bf16.msra.mxu0 0
    %1620 = vmatprep.mubr.bf16.mxu0 0
    %1621 = vmatmul.mubr.bf16.gmra.mrb[0].mxu0 %v1577
    %v1622 = vpop.f32.mrb[0].mxu0
    %v1623 = vadd.f32 %v1551, %v1622
    %v1624 = vpop.f32.mrb[0].mxu0
    %v1625 = vpop.f32.mrb[0].mxu0
    %v1626 = vadd.f32 %v1551, %v1625
    %v1627 = vpop.f32.mrb[0].mxu0
    %1628 = vmatprep.mubr.bf16.mxu0 0
    %1629 = vmatmul.mubr.bf16.gmra.mrb[0].mxu0 %v1580
    %v1630 = vpop.f32.mrb[0].mxu0
    %v1631 = vadd.f32 %v1551, %v1630
    %v1632 = vpop.f32.mrb[0].mxu0
    %v1633 = vpop.f32.mrb[0].mxu0
    %v1634 = vadd.f32 %v1551, %v1633
    %v1635 = vpop.f32.mrb[0].mxu0
    %1636 = vmatprep.mubr.bf16.mxu0 0
    %1637 = vmatmul.mubr.bf16.gmra.mrb[0].mxu0 %v1583
    %v1638 = vpop.f32.mrb[0].mxu0
    %v1639 = vadd.f32 %v1551, %v1638
    %v1640 = vpop.f32.mrb[0].mxu0
    %v1641 = vpop.f32.mrb[0].mxu0
    %v1642 = vadd.f32 %v1551, %v1641
    %v1643 = vpop.f32.mrb[0].mxu0
    %1644 = vmatprep.mubr.bf16.mxu0 0
    %1645 = vmatmul.mubr.bf16.gmra.mrb[0].mxu0 %v1586
    %v1646 = vpop.f32.mrb[0].mxu0
    %v1647 = vadd.f32 %v1551, %v1646
    %v1648 = vpop.f32.mrb[0].mxu0
    %v1649 = vpop.f32.mrb[0].mxu0
    %v1650 = vadd.f32 %v1551, %v1649
    %v1651 = vpop.f32.mrb[0].mxu0
    %1652 = vdwg.mxu0
    %s1653 = scalar_lea.vmem %s1, 16
    %v1654 = vld [vmem:[%s1653] sm:$0xff]
    %v1655 = vpack.c.bf16 %v1654, %v1654
    %v1660 = vunpack.c.l.b16 %v1534
    %v1661 = vunpack.c.l.b16 %v1535
    %v1662 = vunpack.c.l.b16 %v1536
    %v1663 = vunpack.c.l.b16 %v1537
    %v1664 = vpack.c.b16 %v1661, %v1660
    %v1665 = vpack.c.b16 %v1663, %v1662
    %v1669 = vsel %vm199, %v1655, 0
    %1671 = vmatprep.subr.bf16.mxu0 0
    %1672 = vmatpush1.bf16.msra.mxu0 %v1664
    %1673 = vmatprep.subr.bf16.mxu0 0
    %1674 = vmatpush1.bf16.msra.mxu0 %v1665
    %1675 = vmatprep.subr.bf16.mxu0 0
    %1676 = vmatpush1.bf16.msra.mxu0 0
    %1677 = vmatprep.subr.bf16.mxu0 0
    %1678 = vmatpush1.bf16.msra.mxu0 0
    %1679 = vmatprep.subr.bf16.mxu0 0
    %1680 = vmatpush1.bf16.msra.mxu0 0
    %1681 = vmatprep.subr.bf16.mxu0 0
    %1682 = vmatpush1.bf16.msra.mxu0 0
    %1683 = vmatprep.subr.bf16.mxu0 0
    %1684 = vmatpush1.bf16.msra.mxu0 0
    %1685 = vmatprep.subr.bf16.mxu0 0
    %1686 = vmatpush1.bf16.msra.mxu0 0
    %1687 = vmatprep.subr.bf16.mxu0 0
    %1688 = vmatpush1.bf16.msra.mxu0 0
    %1689 = vmatprep.subr.bf16.mxu0 0
    %1690 = vmatpush1.bf16.msra.mxu0 0
    %1691 = vmatprep.subr.bf16.mxu0 0
    %1692 = vmatpush1.bf16.msra.mxu0 0
    %1693 = vmatprep.subr.bf16.mxu0 0
    %1694 = vmatpush1.bf16.msra.mxu0 0
    %1695 = vmatprep.subr.bf16.mxu0 0
    %1696 = vmatpush1.bf16.msra.mxu0 0
    %1697 = vmatprep.subr.bf16.mxu0 0
    %1698 = vmatpush1.bf16.msra.mxu0 0
    %1699 = vmatprep.subr.bf16.mxu0 0
    %1700 = vmatpush1.bf16.msra.mxu0 0
    %1701 = vmatprep.subr.bf16.mxu0 0
    %1702 = vmatpush1.bf16.msra.mxu0 0
    %1703 = vmatprep.mubr.bf16.mxu0 0
    %1704 = vmatmul.mubr.bf16.gmra.mrb[0].mxu0 %v1669
    %v1705 = vpop.f32.mrb[0].mxu0
    %v1706 = vadd.f32 0.0, %v1705
    %v1707 = vpop.f32.mrb[0].mxu0
    %v1708 = vpop.f32.mrb[0].mxu0
    %v1709 = vpop.f32.mrb[0].mxu0
    %1710 = vdwg.mxu0
    %v1711 = vadd.f32 %v1623, %v1706
    %v1712 = vxor.u32 %v1711, 2147483648
    %v1713 = vmul.f32 %v1712, 1.442695
    %v1714 = vpow.pop %v1713
    %v1715 = vadd.f32 %v1714, 1.0
    %v1716 = vrcp.pop %v1715
    %v1717 = vmul.f32 1.0, %v1716
    %v1718 = vadd.f32 %v1706, %v1546
    %1720 = vrot.lane.b32.xlu0 %v1718, 64
    %v1721 = vpop.permute.xlu0 %1720
    %v1723 = vmul.f32 %v1717, %v1721
    %1725 = vrot.lane.b32.xlu0 %v1723, 64
    %v1726 = vpop.permute.xlu0 %1725
    %v1728 = vadd.f32 %v1623, %v1726
    %v1729 = vtanh.pop %v1728
    %v1730 = vsub.f32 1.0, %v1717
    %1732 = vrot.lane.b32.xlu0 %v1729, 96
    %v1733 = vpop.permute.xlu0 %1732
    %v1735 = vmul.f32 %v1730, %v1733
    %1737 = vrot.lane.b32.xlu0 %v1654, 32
    %v1738 = vpop.permute.xlu0 %1737
    %v1740 = vmul.f32 %v1717, %v1738
    %v1741 = vadd.f32 %v1735, %v1740
    %v1742 = vpack.c.bf16 %v1741, %v1741
    %1744 = vrot.lane.b32.xlu0 %v1742, 96
    %v1745 = vpop.permute.xlu0 %1744
    %v1747 = vsel %vm199, %v1745, 0
    %1749 = vmatprep.subr.bf16.mxu0 0
    %1750 = vmatpush1.bf16.msra.mxu0 %v1664
    %1751 = vmatprep.subr.bf16.mxu0 0
    %1752 = vmatpush1.bf16.msra.mxu0 %v1665
    %1753 = vmatprep.subr.bf16.mxu0 0
    %1754 = vmatpush1.bf16.msra.mxu0 0
    %1755 = vmatprep.subr.bf16.mxu0 0
    %1756 = vmatpush1.bf16.msra.mxu0 0
    %1757 = vmatprep.subr.bf16.mxu0 0
    %1758 = vmatpush1.bf16.msra.mxu0 0
    %1759 = vmatprep.subr.bf16.mxu0 0
    %1760 = vmatpush1.bf16.msra.mxu0 0
    %1761 = vmatprep.subr.bf16.mxu0 0
    %1762 = vmatpush1.bf16.msra.mxu0 0
    %1763 = vmatprep.subr.bf16.mxu0 0
    %1764 = vmatpush1.bf16.msra.mxu0 0
    %1765 = vmatprep.subr.bf16.mxu0 0
    %1766 = vmatpush1.bf16.msra.mxu0 0
    %1767 = vmatprep.subr.bf16.mxu0 0
    %1768 = vmatpush1.bf16.msra.mxu0 0
    %1769 = vmatprep.subr.bf16.mxu0 0
    %1770 = vmatpush1.bf16.msra.mxu0 0
    %1771 = vmatprep.subr.bf16.mxu0 0
    %1772 = vmatpush1.bf16.msra.mxu0 0
    %1773 = vmatprep.subr.bf16.mxu0 0
    %1774 = vmatpush1.bf16.msra.mxu0 0
    %1775 = vmatprep.subr.bf16.mxu0 0
    %1776 = vmatpush1.bf16.msra.mxu0 0
    %1777 = vmatprep.subr.bf16.mxu0 0
    %1778 = vmatpush1.bf16.msra.mxu0 0
    %1779 = vmatprep.subr.bf16.mxu0 0
    %1780 = vmatpush1.bf16.msra.mxu0 0
    %1781 = vmatprep.mubr.bf16.mxu0 0
    %1782 = vmatmul.mubr.bf16.gmra.mrb[0].mxu0 %v1747
    %v1783 = vpop.f32.mrb[0].mxu0
    %v1784 = vadd.f32 0.0, %v1783
    %v1785 = vpop.f32.mrb[0].mxu0
    %v1786 = vpop.f32.mrb[0].mxu0
    %v1787 = vpop.f32.mrb[0].mxu0
    %1788 = vdwg.mxu0
    %v1789 = vadd.f32 %v1626, %v1784
    %v1790 = vxor.u32 %v1789, 2147483648
    %v1791 = vmul.f32 %v1790, 1.442695
    %v1792 = vpow.pop %v1791
    %v1793 = vadd.f32 %v1792, 1.0
    %v1794 = vrcp.pop %v1793
    %v1795 = vmul.f32 1.0, %v1794
    %v1796 = vadd.f32 %v1784, %v1546
    %1798 = vrot.lane.b32.xlu0 %v1796, 64
    %v1799 = vpop.permute.xlu0 %1798
    %v1801 = vmul.f32 %v1795, %v1799
    %1803 = vrot.lane.b32.xlu0 %v1801, 64
    %v1804 = vpop.permute.xlu0 %1803
    %v1806 = vadd.f32 %v1626, %v1804
    %v1807 = vtanh.pop %v1806
    %v1808 = vsub.f32 1.0, %v1795
    %1810 = vrot.lane.b32.xlu0 %v1807, 96
    %v1811 = vpop.permute.xlu0 %1810
    %v1813 = vmul.f32 %v1808, %v1811
    %v1814 = vmul.f32 %v1795, %v1741
    %v1815 = vadd.f32 %v1813, %v1814
    %v1816 = vpack.c.bf16 %v1815, %v1815
    %1818 = vrot.lane.b32.xlu0 %v1816, 96
    %v1819 = vpop.permute.xlu0 %1818
    %v1821 = vsel %vm199, %v1819, 0
    %1823 = vmatprep.subr.bf16.mxu0 0
    %1824 = vmatpush1.bf16.msra.mxu0 %v1664
    %1825 = vmatprep.subr.bf16.mxu0 0
    %1826 = vmatpush1.bf16.msra.mxu0 %v1665
    %1827 = vmatprep.subr.bf16.mxu0 0
    %1828 = vmatpush1.bf16.msra.mxu0 0
    %1829 = vmatprep.subr.bf16.mxu0 0
    %1830 = vmatpush1.bf16.msra.mxu0 0
    %1831 = vmatprep.subr.bf16.mxu0 0
    %1832 = vmatpush1.bf16.msra.mxu0 0
    %1833 = vmatprep.subr.bf16.mxu0 0
    %1834 = vmatpush1.bf16.msra.mxu0 0
    %1835 = vmatprep.subr.bf16.mxu0 0
    %1836 = vmatpush1.bf16.msra.mxu0 0
    %1837 = vmatprep.subr.bf16.mxu0 0
    %1838 = vmatpush1.bf16.msra.mxu0 0
    %1839 = vmatprep.subr.bf16.mxu0 0
    %1840 = vmatpush1.bf16.msra.mxu0 0
    %1841 = vmatprep.subr.bf16.mxu0 0
    %1842 = vmatpush1.bf16.msra.mxu0 0
    %1843 = vmatprep.subr.bf16.mxu0 0
    %1844 = vmatpush1.bf16.msra.mxu0 0
    %1845 = vmatprep.subr.bf16.mxu0 0
    %1846 = vmatpush1.bf16.msra.mxu0 0
    %1847 = vmatprep.subr.bf16.mxu0 0
    %1848 = vmatpush1.bf16.msra.mxu0 0
    %1849 = vmatprep.subr.bf16.mxu0 0
    %1850 = vmatpush1.bf16.msra.mxu0 0
    %1851 = vmatprep.subr.bf16.mxu0 0
    %1852 = vmatpush1.bf16.msra.mxu0 0
    %1853 = vmatprep.subr.bf16.mxu0 0
    %1854 = vmatpush1.bf16.msra.mxu0 0
    %1855 = vmatprep.mubr.bf16.mxu0 0
    %1856 = vmatmul.mubr.bf16.gmra.mrb[0].mxu0 %v1821
    %v1857 = vpop.f32.mrb[0].mxu0
    %v1858 = vadd.f32 0.0, %v1857
    %v1859 = vpop.f32.mrb[0].mxu0
    %v1860 = vpop.f32.mrb[0].mxu0
    %v1861 = vpop.f32.mrb[0].mxu0
    %1862 = vdwg.mxu0
    %v1863 = vadd.f32 %v1631, %v1858
    %v1864 = vxor.u32 %v1863, 2147483648
    %v1865 = vmul.f32 %v1864, 1.442695
    %v1866 = vpow.pop %v1865
    %v1867 = vadd.f32 %v1866, 1.0
    %v1868 = vrcp.pop %v1867
    %v1869 = vmul.f32 1.0, %v1868
    %v1870 = vadd.f32 %v1858, %v1546
    %1872 = vrot.lane.b32.xlu0 %v1870, 64
    %v1873 = vpop.permute.xlu0 %1872
    %v1875 = vmul.f32 %v1869, %v1873
    %1877 = vrot.lane.b32.xlu0 %v1875, 64
    %v1878 = vpop.permute.xlu0 %1877
    %v1880 = vadd.f32 %v1631, %v1878
    %v1881 = vtanh.pop %v1880
    %v1882 = vsub.f32 1.0, %v1869
    %1884 = vrot.lane.b32.xlu0 %v1881, 96
    %v1885 = vpop.permute.xlu0 %1884
    %v1887 = vmul.f32 %v1882, %v1885
    %v1888 = vmul.f32 %v1869, %v1815
    %v1889 = vadd.f32 %v1887, %v1888
    %v1890 = vpack.c.bf16 %v1889, %v1889
    %1892 = vrot.lane.b32.xlu0 %v1890, 96
    %v1893 = vpop.permute.xlu0 %1892
    %v1895 = vsel %vm199, %v1893, 0
    %1897 = vmatprep.subr.bf16.mxu0 0
    %1898 = vmatpush1.bf16.msra.mxu0 %v1664
    %1899 = vmatprep.subr.bf16.mxu0 0
    %1900 = vmatpush1.bf16.msra.mxu0 %v1665
    %1901 = vmatprep.subr.bf16.mxu0 0
    %1902 = vmatpush1.bf16.msra.mxu0 0
    %1903 = vmatprep.subr.bf16.mxu0 0
    %1904 = vmatpush1.bf16.msra.mxu0 0
    %1905 = vmatprep.subr.bf16.mxu0 0
    %1906 = vmatpush1.bf16.msra.mxu0 0
    %1907 = vmatprep.subr.bf16.mxu0 0
    %1908 = vmatpush1.bf16.msra.mxu0 0
    %1909 = vmatprep.subr.bf16.mxu0 0
    %1910 = vmatpush1.bf16.msra.mxu0 0
    %1911 = vmatprep.subr.bf16.mxu0 0
    %1912 = vmatpush1.bf16.msra.mxu0 0
    %1913 = vmatprep.subr.bf16.mxu0 0
    %1914 = vmatpush1.bf16.msra.mxu0 0
    %1915 = vmatprep.subr.bf16.mxu0 0
    %1916 = vmatpush1.bf16.msra.mxu0 0
    %1917 = vmatprep.subr.bf16.mxu0 0
    %1918 = vmatpush1.bf16.msra.mxu0 0
    %1919 = vmatprep.subr.bf16.mxu0 0
    %1920 = vmatpush1.bf16.msra.mxu0 0
    %1921 = vmatprep.subr.bf16.mxu0 0
    %1922 = vmatpush1.bf16.msra.mxu0 0
    %1923 = vmatprep.subr.bf16.mxu0 0
    %1924 = vmatpush1.bf16.msra.mxu0 0
    %1925 = vmatprep.subr.bf16.mxu0 0
    %1926 = vmatpush1.bf16.msra.mxu0 0
    %1927 = vmatprep.subr.bf16.mxu0 0
    %1928 = vmatpush1.bf16.msra.mxu0 0
    %1929 = vmatprep.mubr.bf16.mxu0 0
    %1930 = vmatmul.mubr.bf16.gmra.mrb[0].mxu0 %v1895
    %v1931 = vpop.f32.mrb[0].mxu0
    %v1932 = vadd.f32 0.0, %v1931
    %v1933 = vpop.f32.mrb[0].mxu0
    %v1934 = vpop.f32.mrb[0].mxu0
    %v1935 = vpop.f32.mrb[0].mxu0
    %1936 = vdwg.mxu0
    %v1937 = vadd.f32 %v1634, %v1932
    %v1938 = vxor.u32 %v1937, 2147483648
    %v1939 = vmul.f32 %v1938, 1.442695
    %v1940 = vpow.pop %v1939
    %v1941 = vadd.f32 %v1940, 1.0
    %v1942 = vrcp.pop %v1941
    %v1943 = vmul.f32 1.0, %v1942
    %v1944 = vadd.f32 %v1932, %v1546
    %1946 = vrot.lane.b32.xlu0 %v1944, 64
    %v1947 = vpop.permute.xlu0 %1946
    %v1949 = vmul.f32 %v1943, %v1947
    %1951 = vrot.lane.b32.xlu0 %v1949, 64
    %v1952 = vpop.permute.xlu0 %1951
    %v1954 = vadd.f32 %v1634, %v1952
    %v1955 = vtanh.pop %v1954
    %v1956 = vsub.f32 1.0, %v1943
    %1958 = vrot.lane.b32.xlu0 %v1955, 96
    %v1959 = vpop.permute.xlu0 %1958
    %v1961 = vmul.f32 %v1956, %v1959
    %v1962 = vmul.f32 %v1943, %v1889
    %v1963 = vadd.f32 %v1961, %v1962
    %v1964 = vpack.c.bf16 %v1963, %v1963
    %1966 = vrot.lane.b32.xlu0 %v1964, 96
    %v1967 = vpop.permute.xlu0 %1966
    %v1969 = vsel %vm199, %v1967, 0
    %1971 = vmatprep.subr.bf16.mxu0 0
    %1972 = vmatpush1.bf16.msra.mxu0 %v1664
    %1973 = vmatprep.subr.bf16.mxu0 0
    %1974 = vmatpush1.bf16.msra.mxu0 %v1665
    %1975 = vmatprep.subr.bf16.mxu0 0
    %1976 = vmatpush1.bf16.msra.mxu0 0
    %1977 = vmatprep.subr.bf16.mxu0 0
    %1978 = vmatpush1.bf16.msra.mxu0 0
    %1979 = vmatprep.subr.bf16.mxu0 0
    %1980 = vmatpush1.bf16.msra.mxu0 0
    %1981 = vmatprep.subr.bf16.mxu0 0
    %1982 = vmatpush1.bf16.msra.mxu0 0
    %1983 = vmatprep.subr.bf16.mxu0 0
    %1984 = vmatpush1.bf16.msra.mxu0 0
    %1985 = vmatprep.subr.bf16.mxu0 0
    %1986 = vmatpush1.bf16.msra.mxu0 0
    %1987 = vmatprep.subr.bf16.mxu0 0
    %1988 = vmatpush1.bf16.msra.mxu0 0
    %1989 = vmatprep.subr.bf16.mxu0 0
    %1990 = vmatpush1.bf16.msra.mxu0 0
    %1991 = vmatprep.subr.bf16.mxu0 0
    %1992 = vmatpush1.bf16.msra.mxu0 0
    %1993 = vmatprep.subr.bf16.mxu0 0
    %1994 = vmatpush1.bf16.msra.mxu0 0
    %1995 = vmatprep.subr.bf16.mxu0 0
    %1996 = vmatpush1.bf16.msra.mxu0 0
    %1997 = vmatprep.subr.bf16.mxu0 0
    %1998 = vmatpush1.bf16.msra.mxu0 0
    %1999 = vmatprep.subr.bf16.mxu0 0
    %2000 = vmatpush1.bf16.msra.mxu0 0
    %2001 = vmatprep.subr.bf16.mxu0 0
    %2002 = vmatpush1.bf16.msra.mxu0 0
    %2003 = vmatprep.mubr.bf16.mxu0 0
    %2004 = vmatmul.mubr.bf16.gmra.mrb[0].mxu0 %v1969
    %v2005 = vpop.f32.mrb[0].mxu0
    %v2006 = vadd.f32 0.0, %v2005
    %v2007 = vpop.f32.mrb[0].mxu0
    %v2008 = vpop.f32.mrb[0].mxu0
    %v2009 = vpop.f32.mrb[0].mxu0
    %2010 = vdwg.mxu0
    %v2011 = vadd.f32 %v1639, %v2006
    %v2012 = vxor.u32 %v2011, 2147483648
    %v2013 = vmul.f32 %v2012, 1.442695
    %v2014 = vpow.pop %v2013
    %v2015 = vadd.f32 %v2014, 1.0
    %v2016 = vrcp.pop %v2015
    %v2017 = vmul.f32 1.0, %v2016
    %v2018 = vadd.f32 %v2006, %v1546
    %2020 = vrot.lane.b32.xlu0 %v2018, 64
    %v2021 = vpop.permute.xlu0 %2020
    %v2023 = vmul.f32 %v2017, %v2021
    %2025 = vrot.lane.b32.xlu0 %v2023, 64
    %v2026 = vpop.permute.xlu0 %2025
    %v2028 = vadd.f32 %v1639, %v2026
    %v2029 = vtanh.pop %v2028
    %v2030 = vsub.f32 1.0, %v2017
    %2032 = vrot.lane.b32.xlu0 %v2029, 96
    %v2033 = vpop.permute.xlu0 %2032
    %v2035 = vmul.f32 %v2030, %v2033
    %v2036 = vmul.f32 %v2017, %v1963
    %v2037 = vadd.f32 %v2035, %v2036
    %v2038 = vpack.c.bf16 %v2037, %v2037
    %2040 = vrot.lane.b32.xlu0 %v2038, 96
    %v2041 = vpop.permute.xlu0 %2040
    %v2043 = vsel %vm199, %v2041, 0
    %2045 = vmatprep.subr.bf16.mxu0 0
    %2046 = vmatpush1.bf16.msra.mxu0 %v1664
    %2047 = vmatprep.subr.bf16.mxu0 0
    %2048 = vmatpush1.bf16.msra.mxu0 %v1665
    %2049 = vmatprep.subr.bf16.mxu0 0
    %2050 = vmatpush1.bf16.msra.mxu0 0
    %2051 = vmatprep.subr.bf16.mxu0 0
    %2052 = vmatpush1.bf16.msra.mxu0 0
    %2053 = vmatprep.subr.bf16.mxu0 0
    %2054 = vmatpush1.bf16.msra.mxu0 0
    %2055 = vmatprep.subr.bf16.mxu0 0
    %2056 = vmatpush1.bf16.msra.mxu0 0
    %2057 = vmatprep.subr.bf16.mxu0 0
    %2058 = vmatpush1.bf16.msra.mxu0 0
    %2059 = vmatprep.subr.bf16.mxu0 0
    %2060 = vmatpush1.bf16.msra.mxu0 0
    %2061 = vmatprep.subr.bf16.mxu0 0
    %2062 = vmatpush1.bf16.msra.mxu0 0
    %2063 = vmatprep.subr.bf16.mxu0 0
    %2064 = vmatpush1.bf16.msra.mxu0 0
    %2065 = vmatprep.subr.bf16.mxu0 0
    %2066 = vmatpush1.bf16.msra.mxu0 0
    %2067 = vmatprep.subr.bf16.mxu0 0
    %2068 = vmatpush1.bf16.msra.mxu0 0
    %2069 = vmatprep.subr.bf16.mxu0 0
    %2070 = vmatpush1.bf16.msra.mxu0 0
    %2071 = vmatprep.subr.bf16.mxu0 0
    %2072 = vmatpush1.bf16.msra.mxu0 0
    %2073 = vmatprep.subr.bf16.mxu0 0
    %2074 = vmatpush1.bf16.msra.mxu0 0
    %2075 = vmatprep.subr.bf16.mxu0 0
    %2076 = vmatpush1.bf16.msra.mxu0 0
    %2077 = vmatprep.mubr.bf16.mxu0 0
    %2078 = vmatmul.mubr.bf16.gmra.mrb[0].mxu0 %v2043
    %v2079 = vpop.f32.mrb[0].mxu0
    %v2080 = vadd.f32 0.0, %v2079
    %v2081 = vpop.f32.mrb[0].mxu0
    %v2082 = vpop.f32.mrb[0].mxu0
    %v2083 = vpop.f32.mrb[0].mxu0
    %2084 = vdwg.mxu0
    %v2085 = vadd.f32 %v1642, %v2080
    %v2086 = vxor.u32 %v2085, 2147483648
    %v2087 = vmul.f32 %v2086, 1.442695
    %v2088 = vpow.pop %v2087
    %v2089 = vadd.f32 %v2088, 1.0
    %v2090 = vrcp.pop %v2089
    %v2091 = vmul.f32 1.0, %v2090
    %v2092 = vadd.f32 %v2080, %v1546
    %2094 = vrot.lane.b32.xlu0 %v2092, 64
    %v2095 = vpop.permute.xlu0 %2094
    %v2097 = vmul.f32 %v2091, %v2095
    %2099 = vrot.lane.b32.xlu0 %v2097, 64
    %v2100 = vpop.permute.xlu0 %2099
    %v2102 = vadd.f32 %v1642, %v2100
    %v2103 = vtanh.pop %v2102
    %v2104 = vsub.f32 1.0, %v2091
    %2106 = vrot.lane.b32.xlu0 %v2103, 96
    %v2107 = vpop.permute.xlu0 %2106
    %v2109 = vmul.f32 %v2104, %v2107
    %v2110 = vmul.f32 %v2091, %v2037
    %v2111 = vadd.f32 %v2109, %v2110
    %v2112 = vpack.c.bf16 %v2111, %v2111
    %2114 = vrot.lane.b32.xlu0 %v2112, 96
    %v2115 = vpop.permute.xlu0 %2114
    %v2117 = vsel %vm199, %v2115, 0
    %2119 = vmatprep.subr.bf16.mxu0 0
    %2120 = vmatpush1.bf16.msra.mxu0 %v1664
    %2121 = vmatprep.subr.bf16.mxu0 0
    %2122 = vmatpush1.bf16.msra.mxu0 %v1665
    %2123 = vmatprep.subr.bf16.mxu0 0
    %2124 = vmatpush1.bf16.msra.mxu0 0
    %2125 = vmatprep.subr.bf16.mxu0 0
    %2126 = vmatpush1.bf16.msra.mxu0 0
    %2127 = vmatprep.subr.bf16.mxu0 0
    %2128 = vmatpush1.bf16.msra.mxu0 0
    %2129 = vmatprep.subr.bf16.mxu0 0
    %2130 = vmatpush1.bf16.msra.mxu0 0
    %2131 = vmatprep.subr.bf16.mxu0 0
    %2132 = vmatpush1.bf16.msra.mxu0 0
    %2133 = vmatprep.subr.bf16.mxu0 0
    %2134 = vmatpush1.bf16.msra.mxu0 0
    %2135 = vmatprep.subr.bf16.mxu0 0
    %2136 = vmatpush1.bf16.msra.mxu0 0
    %2137 = vmatprep.subr.bf16.mxu0 0
    %2138 = vmatpush1.bf16.msra.mxu0 0
    %2139 = vmatprep.subr.bf16.mxu0 0
    %2140 = vmatpush1.bf16.msra.mxu0 0
    %2141 = vmatprep.subr.bf16.mxu0 0
    %2142 = vmatpush1.bf16.msra.mxu0 0
    %2143 = vmatprep.subr.bf16.mxu0 0
    %2144 = vmatpush1.bf16.msra.mxu0 0
    %2145 = vmatprep.subr.bf16.mxu0 0
    %2146 = vmatpush1.bf16.msra.mxu0 0
    %2147 = vmatprep.subr.bf16.mxu0 0
    %2148 = vmatpush1.bf16.msra.mxu0 0
    %2149 = vmatprep.subr.bf16.mxu0 0
    %2150 = vmatpush1.bf16.msra.mxu0 0
    %2151 = vmatprep.mubr.bf16.mxu0 0
    %2152 = vmatmul.mubr.bf16.gmra.mrb[0].mxu0 %v2117
    %v2153 = vpop.f32.mrb[0].mxu0
    %v2154 = vadd.f32 0.0, %v2153
    %v2155 = vpop.f32.mrb[0].mxu0
    %v2156 = vpop.f32.mrb[0].mxu0
    %v2157 = vpop.f32.mrb[0].mxu0
    %2158 = vdwg.mxu0
    %v2159 = vadd.f32 %v1647, %v2154
    %v2160 = vxor.u32 %v2159, 2147483648
    %v2161 = vmul.f32 %v2160, 1.442695
    %v2162 = vpow.pop %v2161
    %v2163 = vadd.f32 %v2162, 1.0
    %v2164 = vrcp.pop %v2163
    %v2165 = vmul.f32 1.0, %v2164
    %v2166 = vadd.f32 %v2154, %v1546
    %2168 = vrot.lane.b32.xlu0 %v2166, 64
    %v2169 = vpop.permute.xlu0 %2168
    %v2171 = vmul.f32 %v2165, %v2169
    %2173 = vrot.lane.b32.xlu0 %v2171, 64
    %v2174 = vpop.permute.xlu0 %2173
    %v2176 = vadd.f32 %v1647, %v2174
    %v2177 = vtanh.pop %v2176
    %v2178 = vsub.f32 1.0, %v2165
    %2180 = vrot.lane.b32.xlu0 %v2177, 96
    %v2181 = vpop.permute.xlu0 %2180
    %v2183 = vmul.f32 %v2178, %v2181
    %v2184 = vmul.f32 %v2165, %v2111
    %v2185 = vadd.f32 %v2183, %v2184
    %v2186 = vpack.c.bf16 %v2185, %v2185
    %2188 = vrot.lane.b32.xlu0 %v2186, 96
    %v2189 = vpop.permute.xlu0 %2188
    %v2191 = vsel %vm199, %v2189, 0
    %2193 = vmatprep.subr.bf16.mxu0 0
    %2194 = vmatpush1.bf16.msra.mxu0 %v1664
    %2195 = vmatprep.subr.bf16.mxu0 0
    %2196 = vmatpush1.bf16.msra.mxu0 %v1665
    %2197 = vmatprep.subr.bf16.mxu0 0
    %2198 = vmatpush1.bf16.msra.mxu0 0
    %2199 = vmatprep.subr.bf16.mxu0 0
    %2200 = vmatpush1.bf16.msra.mxu0 0
    %2201 = vmatprep.subr.bf16.mxu0 0
    %2202 = vmatpush1.bf16.msra.mxu0 0
    %2203 = vmatprep.subr.bf16.mxu0 0
    %2204 = vmatpush1.bf16.msra.mxu0 0
    %2205 = vmatprep.subr.bf16.mxu0 0
    %2206 = vmatpush1.bf16.msra.mxu0 0
    %2207 = vmatprep.subr.bf16.mxu0 0
    %2208 = vmatpush1.bf16.msra.mxu0 0
    %2209 = vmatprep.subr.bf16.mxu0 0
    %2210 = vmatpush1.bf16.msra.mxu0 0
    %2211 = vmatprep.subr.bf16.mxu0 0
    %2212 = vmatpush1.bf16.msra.mxu0 0
    %2213 = vmatprep.subr.bf16.mxu0 0
    %2214 = vmatpush1.bf16.msra.mxu0 0
    %2215 = vmatprep.subr.bf16.mxu0 0
    %2216 = vmatpush1.bf16.msra.mxu0 0
    %2217 = vmatprep.subr.bf16.mxu0 0
    %2218 = vmatpush1.bf16.msra.mxu0 0
    %2219 = vmatprep.subr.bf16.mxu0 0
    %2220 = vmatpush1.bf16.msra.mxu0 0
    %2221 = vmatprep.subr.bf16.mxu0 0
    %2222 = vmatpush1.bf16.msra.mxu0 0
    %2223 = vmatprep.subr.bf16.mxu0 0
    %2224 = vmatpush1.bf16.msra.mxu0 0
    %2225 = vmatprep.mubr.bf16.mxu0 0
    %2226 = vmatmul.mubr.bf16.gmra.mrb[0].mxu0 %v2191
    %v2227 = vpop.f32.mrb[0].mxu0
    %v2228 = vadd.f32 0.0, %v2227
    %v2229 = vpop.f32.mrb[0].mxu0
    %v2230 = vpop.f32.mrb[0].mxu0
    %v2231 = vpop.f32.mrb[0].mxu0
    %2232 = vdwg.mxu0
    %v2233 = vadd.f32 %v1650, %v2228
    %v2234 = vxor.u32 %v2233, 2147483648
    %v2235 = vmul.f32 %v2234, 1.442695
    %v2236 = vpow.pop %v2235
    %v2237 = vadd.f32 %v2236, 1.0
    %v2238 = vrcp.pop %v2237
    %v2239 = vmul.f32 1.0, %v2238
    %v2240 = vadd.f32 %v2228, %v1546
    %2242 = vrot.lane.b32.xlu0 %v2240, 64
    %v2243 = vpop.permute.xlu0 %2242
    %v2245 = vmul.f32 %v2239, %v2243
    %2247 = vrot.lane.b32.xlu0 %v2245, 64
    %v2248 = vpop.permute.xlu0 %2247
    %v2250 = vadd.f32 %v1650, %v2248
    %v2251 = vtanh.pop %v2250
    %v2252 = vsub.f32 1.0, %v2239
    %2254 = vrot.lane.b32.xlu0 %v2251, 96
    %v2255 = vpop.permute.xlu0 %2254
    %v2257 = vmul.f32 %v2252, %v2255
    %v2258 = vmul.f32 %v2239, %v2185
    %v2259 = vadd.f32 %v2257, %v2258
    %v2260 = vpack.c.bf16 %v1815, %v1741
    %v2261 = vpack.c.bf16 %v1963, %v1889
    %v2262 = vpack.c.bf16 %v2111, %v2037
    %v2263 = vpack.c.bf16 %v2259, %v2185
    %v2264 = vld [vmem:[%s14] sm:$0xf]
    %v2265 = vld [vmem:[%s14 + $0x4] sm:$0xf]
    %v2266 = vld [vmem:[%s14 + $0x8] sm:$0xf]
    %v2267 = vld [vmem:[%s14 + $0xc] sm:$0xf]
    %v2268 = vld [vmem:[#allocation2] sm:$0x1]
    %v2270 = vlaneseq
    %v2271 = vshrl.u32 %v2270, 7
    %v2272 = vsub.s32 0, %v2271
    %v2273 = vrot.slane %v2268, %v2272
    %2279 = vrot.lane.b32.xlu0 %v2260, 96
    %v2280 = vpop.permute.xlu0 %2279
    %2281 = vrot.lane.b32.xlu0 %v2261, 96
    %v2282 = vpop.permute.xlu0 %2281
    %2283 = vrot.lane.b32.xlu0 %v2262, 96
    %v2284 = vpop.permute.xlu0 %2283
    %2285 = vrot.lane.b32.xlu0 %v2263, 96
    %v2286 = vpop.permute.xlu0 %2285
    %v2291 = vunpack.c.l.b16 %v2264
    %v2292 = vunpack.c.l.b16 %v2265
    %v2293 = vunpack.c.l.b16 %v2266
    %v2294 = vunpack.c.l.b16 %v2267
    %v2295 = vpack.c.b16 %v2292, %v2291
    %v2296 = vpack.c.b16 %v2294, %v2293
    %v2300 = vsel %vm199, %v2280, 0
    %v2303 = vsel %vm199, %v2282, 0
    %v2306 = vsel %vm199, %v2284, 0
    %v2309 = vsel %vm199, %v2286, 0
    %2311 = vmatprep.subr.bf16.mxu0 0
    %2312 = vmatpush1.bf16.msra.mxu0 %v2295
    %2313 = vmatprep.subr.bf16.mxu0 0
    %2314 = vmatpush1.bf16.msra.mxu0 %v2296
    %2315 = vmatprep.subr.bf16.mxu0 0
    %2316 = vmatpush1.bf16.msra.mxu0 0
    %2317 = vmatprep.subr.bf16.mxu0 0
    %2318 = vmatpush1.bf16.msra.mxu0 0
    %2319 = vmatprep.subr.bf16.mxu0 0
    %2320 = vmatpush1.bf16.msra.mxu0 0
    %2321 = vmatprep.subr.bf16.mxu0 0
    %2322 = vmatpush1.bf16.msra.mxu0 0
    %2323 = vmatprep.subr.bf16.mxu0 0
    %2324 = vmatpush1.bf16.msra.mxu0 0
    %2325 = vmatprep.subr.bf16.mxu0 0
    %2326 = vmatpush1.bf16.msra.mxu0 0
    %2327 = vmatprep.subr.bf16.mxu0 0
    %2328 = vmatpush1.bf16.msra.mxu0 0
    %2329 = vmatprep.subr.bf16.mxu0 0
    %2330 = vmatpush1.bf16.msra.mxu0 0
    %2331 = vmatprep.subr.bf16.mxu0 0
    %2332 = vmatpush1.bf16.msra.mxu0 0
    %2333 = vmatprep.subr.bf16.mxu0 0
    %2334 = vmatpush1.bf16.msra.mxu0 0
    %2335 = vmatprep.subr.bf16.mxu0 0
    %2336 = vmatpush1.bf16.msra.mxu0 0
    %2337 = vmatprep.subr.bf16.mxu0 0
    %2338 = vmatpush1.bf16.msra.mxu0 0
    %2339 = vmatprep.subr.bf16.mxu0 0
    %2340 = vmatpush1.bf16.msra.mxu0 0
    %2341 = vmatprep.subr.bf16.mxu0 0
    %2342 = vmatpush1.bf16.msra.mxu0 0
    %2343 = vmatprep.mubr.bf16.mxu0 0
    %2344 = vmatmul.mubr.bf16.gmra.mrb[0].mxu0 %v2300
    %v2345 = vpop.f32.mrb[0].mxu0
    %v2346 = vadd.f32 %v2273, %v2345
    %v2347 = vpop.f32.mrb[0].mxu0
    %v2348 = vpop.f32.mrb[0].mxu0
    %v2349 = vadd.f32 %v2273, %v2348
    %v2350 = vpop.f32.mrb[0].mxu0
    %2351 = vmatprep.mubr.bf16.mxu0 0
    %2352 = vmatmul.mubr.bf16.gmra.mrb[0].mxu0 %v2303
    %v2353 = vpop.f32.mrb[0].mxu0
    %v2354 = vadd.f32 %v2273, %v2353
    %v2355 = vpop.f32.mrb[0].mxu0
    %v2356 = vpop.f32.mrb[0].mxu0
    %v2357 = vadd.f32 %v2273, %v2356
    %v2358 = vpop.f32.mrb[0].mxu0
    %2359 = vmatprep.mubr.bf16.mxu0 0
    %2360 = vmatmul.mubr.bf16.gmra.mrb[0].mxu0 %v2306
    %v2361 = vpop.f32.mrb[0].mxu0
    %v2362 = vadd.f32 %v2273, %v2361
    %v2363 = vpop.f32.mrb[0].mxu0
    %v2364 = vpop.f32.mrb[0].mxu0
    %v2365 = vadd.f32 %v2273, %v2364
    %v2366 = vpop.f32.mrb[0].mxu0
    %2367 = vmatprep.mubr.bf16.mxu0 0
    %2368 = vmatmul.mubr.bf16.gmra.mrb[0].mxu0 %v2309
    %v2369 = vpop.f32.mrb[0].mxu0
    %v2370 = vadd.f32 %v2273, %v2369
    %v2371 = vpop.f32.mrb[0].mxu0
    %v2372 = vpop.f32.mrb[0].mxu0
    %v2373 = vadd.f32 %v2273, %v2372
    %v2374 = vpop.f32.mrb[0].mxu0
    %2375 = vdwg.mxu0
    %vm2376 = vcmask 7168
    %2377 = vst.msk [vmem:[%s16] sm:$0xff] %vm2376, %v2346
    %2378 = vst.msk [vmem:[%s16 + $0x8] sm:$0xff] %vm2376, %v2349
    %2379 = vst.msk [vmem:[%s16 + $0x10] sm:$0xff] %vm2376, %v2354
    %2380 = vst.msk [vmem:[%s16 + $0x18] sm:$0xff] %vm2376, %v2357
    %2381 = vst.msk [vmem:[%s16 + $0x20] sm:$0xff] %vm2376, %v2362
    %2382 = vst.msk [vmem:[%s16 + $0x28] sm:$0xff] %vm2376, %v2365
    %2383 = vst.msk [vmem:[%s16 + $0x30] sm:$0xff] %vm2376, %v2370
    %2384 = vst.msk [vmem:[%s16 + $0x38] sm:$0xff] %vm2376, %v2373
    // Predicated region
    $region70: #{tpu_custom_call.1} parent=1 // pred_check
      _
    $region71: #{tpu_custom_call.1} parent=1 // pred_check_branch
      %2386 = sbr.rel (0) target = $region73
    $region72: #{tpu_custom_call.1} parent=1 // pred_region
      _
    $region73: #{tpu_custom_call.1} parent=1 // pred_fallthru
      _
    // Predicated region
    $region74: #{tpu_custom_call.1} parent=1 // pred_check
      _
    $region75: #{tpu_custom_call.1} parent=1 // pred_check_branch
      %2388 = sbr.rel (0) target = $region77
    $region76: #{tpu_custom_call.1} parent=1 // pred_region
      _
    $region77: #{tpu_custom_call.1} parent=1 // pred_fallthru
      _
    %2389 = vsyncpa [#allocation4], 1

</llo_original>
